<compile_context>
chip_gen: v5e
topology: v5e:2x2
jax: 0.10.0
libtpu: 0.0.40
codegen_flags: <defaults>
</compile_context>

<pallas_src>
import functools

import jax
import jax.numpy as jnp
from jax.experimental import pallas as pl
from jax.experimental.pallas import tpu as pltpu

HIDDEN = 128            # LSTM hidden units
C1, C2, C3 = 128, 256, 128
K1, K2, K3 = 8, 5, 3    # conv kernel sizes
P_ZERO = 0.5            # DefenseModule.RandomZero default p


# ------------------------------------------------------------------
# (1) Fused FCN branch (per batch sample):
#     RandomZero mask + conv1(K=8)+BN+ReLU + conv2(K=5)+BN+ReLU
#     + conv3(K=3)+BN+ReLU + global average pool over time.
# ------------------------------------------------------------------
def _fcn_kernel(x_ref, u_ref, w1_ref, s1_ref, t1_ref,
                w2_ref, s2_ref, t2_ref, w3_ref, s3_ref, t3_ref,
                o_ref, buf1, buf2):
    # x_ref / u_ref: (1, L+7, 1), already padded (left 3, right 4) for the K=8 'same' conv.
    Lp = x_ref.shape[1]
    L = Lp - (K1 - 1)

    keep = (u_ref[0] >= jnp.float32(P_ZERO)).astype(jnp.float32)   # ~ (rand < p)
    xm = x_ref[0] * keep                                           # RandomZero, (L+7, 1)

    # conv1: Cin=1, K=8 -> (L, 128).  Rank-1 taps -> cheap VPU broadcast multiply-add.
    acc1 = jnp.zeros((L, C1), jnp.float32)
    for k in range(K1):
        acc1 = acc1 + xm[k:k + L, :] * w1_ref[k:k + 1, :]
    y1 = jnp.maximum(acc1 * s1_ref[...] + t1_ref[...], 0.0)        # folded BN + ReLU

    # zero-pad y1 (2 left / 2 right) in VMEM scratch for the K=5 'same' conv
    buf1[...] = jnp.zeros_like(buf1)
    buf1[2:2 + L, :] = y1

    # conv2: 128 -> 256, K=5 shifted matmuls on the MXU, bf16 operands / f32 accumulation
    acc2 = jnp.zeros((L, C2), jnp.float32)
    for k in range(K2):
        acc2 = acc2 + jnp.dot(buf1[k:k + L, :].astype(jnp.bfloat16), w2_ref[k],
                              preferred_element_type=jnp.float32)
    y2 = jnp.maximum(acc2 * s2_ref[...] + t2_ref[...], 0.0)

    buf2[...] = jnp.zeros_like(buf2)
    buf2[1:1 + L, :] = y2

    # conv3: 256 -> 128, K=3
    acc3 = jnp.zeros((L, C3), jnp.float32)
    for k in range(K3):
        acc3 = acc3 + jnp.dot(buf2[k:k + L, :].astype(jnp.bfloat16), w3_ref[k],
                              preferred_element_type=jnp.float32)
    y3 = jnp.maximum(acc3 * s3_ref[...] + t3_ref[...], 0.0)

    # global average pool over time -> lane-dense (1, 1, 128) output block
    o_ref[...] = jnp.mean(y3, axis=0).reshape(1, 1, C3)


def fcn_branch(x_pad, u_pad, p):
    N, Lp, _ = x_pad.shape
    L = Lp - (K1 - 1)
    return pl.pallas_call(
        _fcn_kernel,
        out_shape=jax.ShapeDtypeStruct((N, 1, C3), jnp.float32),
        grid=(N,),
        in_specs=[
            pl.BlockSpec((1, Lp, 1), lambda n: (n, 0, 0)),
            pl.BlockSpec((1, Lp, 1), lambda n: (n, 0, 0)),
            pl.BlockSpec((K1, C1), lambda n: (0, 0)),
            pl.BlockSpec((1, C1), lambda n: (0, 0)),
            pl.BlockSpec((1, C1), lambda n: (0, 0)),
            pl.BlockSpec((K2, C1, C2), lambda n: (0, 0, 0)),
            pl.BlockSpec((1, C2), lambda n: (0, 0)),
            pl.BlockSpec((1, C2), lambda n: (0, 0)),
            pl.BlockSpec((K3, C2, C3), lambda n: (0, 0, 0)),
            pl.BlockSpec((1, C3), lambda n: (0, 0)),
            pl.BlockSpec((1, C3), lambda n: (0, 0)),
        ],
        out_specs=pl.BlockSpec((1, 1, C3), lambda n: (n, 0, 0)),
        scratch_shapes=[pltpu.VMEM((L + K2 - 1, C1), jnp.float32),
                        pltpu.VMEM((L + K3 - 1, C2), jnp.float32)],
        compiler_params=pltpu.CompilerParams(dimension_semantics=("parallel",)),
    )(x_pad, u_pad, p["w1"], p["s1"], p["t1"],
      p["w2"], p["s2"], p["t2"], p["w3"], p["s3"], p["t3"])


# ------------------------------------------------------------------
# (2) LSTM branch: RandomZero mask + LSTM(input_size=1, hidden=128) over time,
#     returning the last hidden state.  Single kernel, fori_loop recurrence.
# ------------------------------------------------------------------
def _lstm_kernel(x_ref, u_ref, wih_ref, whh_ref, b_ref, o_ref):
    # x_ref / u_ref: (L, N, 1) time-major.  o_ref: (N, H)
    L = x_ref.shape[0]
    N = o_ref.shape[0]
    H = HIDDEN

    wih = wih_ref[...]     # (1, 4H)  (input_size == 1)
    whh = whh_ref[...]     # (H, 4H)
    b = b_ref[...]         # (1, 4H)  (b_ih + b_hh)

    def step(t, carry):
        h, c = carry
        keep = (u_ref[t] >= jnp.float32(P_ZERO)).astype(jnp.float32)   # (N, 1)
        x_t = x_ref[t] * keep                                          # RandomZero
        gates = (x_t * wih
                 + jnp.dot(h, whh, preferred_element_type=jnp.float32)
                 + b)                                                   # (N, 4H)
        i = jax.nn.sigmoid(gates[:, 0:H])
        f = jax.nn.sigmoid(gates[:, H:2 * H])
        g = jnp.tanh(gates[:, 2 * H:3 * H])
        o = jax.nn.sigmoid(gates[:, 3 * H:4 * H])
        c = f * c + i * g
        h = o * jnp.tanh(c)
        return h, c

    h0 = jnp.zeros((N, H), jnp.float32)
    c0 = jnp.zeros((N, H), jnp.float32)
    h_last, _ = jax.lax.fori_loop(0, L, step, (h0, c0))
    # TODO(synk): nn.Dropout(0.8) on the LSTM output is eval-mode identity here.
    o_ref[...] = h_last


def lstm_branch(x_lstm, u_lstm, p):
    _, N, _ = x_lstm.shape
    return pl.pallas_call(
        _lstm_kernel,
        out_shape=jax.ShapeDtypeStruct((N, HIDDEN), jnp.float32),
    )(x_lstm, u_lstm, p["w_ih"], p["w_hh"], p["b_lstm"])


# ------------------------------------------------------------------
# (3) Head: concat([lstm_last, gap]) @ W + b, done as two row-slice matmuls.
# ------------------------------------------------------------------
def _head_kernel(lstm_ref, fcn_ref, w_ref, b_ref, o_ref):
    h = lstm_ref[...]          # (N, 128)
    g = fcn_ref[:, 0, :]       # (N, 128)
    # TODO(synk): concat order assumed [lstm_features, fcn_gap_features].
    o_ref[...] = (jnp.dot(h, w_ref[0:HIDDEN, :], preferred_element_type=jnp.float32)
                  + jnp.dot(g, w_ref[HIDDEN:HIDDEN + C3, :],
                            preferred_element_type=jnp.float32)
                  + b_ref[...])


def head(h_last, fcn_feat, p):
    N = h_last.shape[0]
    nb_classes = p["fc_w"].shape[1]
    return pl.pallas_call(
        _head_kernel,
        out_shape=jax.ShapeDtypeStruct((N, nb_classes), jnp.float32),
    )(h_last, fcn_feat, p["fc_w"], p["fc_b"])


# ------------------------------------------------------------------
# Parameters (random, PyTorch-default-style shapes; BN inference with fresh
# running stats, conv biases folded into the BN shift).
# ------------------------------------------------------------------
def init_params(key, nb_classes):
    ks = jax.random.split(key, 10)
    eps = 1e-5

    def bn_fold(conv_bias):
        c = conv_bias.shape[0]
        gamma = jnp.ones((c,), jnp.float32)
        beta = jnp.zeros((c,), jnp.float32)
        mean = jnp.zeros((c,), jnp.float32)
        var = jnp.ones((c,), jnp.float32)
        scale = gamma / jnp.sqrt(var + eps)
        shift = beta + scale * (conv_bias - mean)
        return scale.reshape(1, c), shift.reshape(1, c)

    w1 = 0.1 * jax.random.normal(ks[0], (K1, C1), jnp.float32)          # (K, Cout), Cin = 1
    b1 = 0.05 * jax.random.normal(ks[1], (C1,), jnp.float32)
    s1, t1 = bn_fold(b1)
    w2 = 0.05 * jax.random.normal(ks[2], (K2, C1, C2), jnp.float32)     # (K, Cin, Cout)
    b2 = 0.05 * jax.random.normal(ks[3], (C2,), jnp.float32)
    s2, t2 = bn_fold(b2)
    w3 = 0.05 * jax.random.normal(ks[4], (K3, C2, C3), jnp.float32)
    b3 = 0.05 * jax.random.normal(ks[5], (C3,), jnp.float32)
    s3, t3 = bn_fold(b3)

    w_ih = 0.1 * jax.random.normal(ks[6], (1, 4 * HIDDEN), jnp.float32)       # (input, 4H)
    w_hh = 0.1 * jax.random.normal(ks[7], (HIDDEN, 4 * HIDDEN), jnp.float32)  # (H, 4H)
    b_lstm = jnp.zeros((1, 4 * HIDDEN), jnp.float32)                          # b_ih + b_hh

    fc_w = 0.1 * jax.random.normal(ks[8], (HIDDEN + C3, nb_classes), jnp.float32)
    fc_b = jnp.zeros((1, nb_classes), jnp.float32)

    return {"w1": w1, "s1": s1, "t1": t1,
            "w2": w2.astype(jnp.bfloat16), "s2": s2, "t2": t2,
            "w3": w3.astype(jnp.bfloat16), "s3": s3, "t3": t3,
            "w_ih": w_ih, "w_hh": w_hh, "b_lstm": b_lstm,
            "fc_w": fc_w, "fc_b": fc_b}


# ------------------------------------------------------------------
# Forward: RandomZero (fused into both branch kernels) -> LSTMFCN -> logits
# ------------------------------------------------------------------
@jax.jit
def forward(params, x, key):
    # x: (N, C=1, L) — PyTorch Conv1d convention; LSTMFCN(input_shape=1) is univariate.
    N, C, L = x.shape
    x_nl = x[:, 0, :]                                           # (N, L)

    # DefenseModule.RandomZero mask source; resampled per call via `key`.
    u = jax.random.uniform(key, (N, L), jnp.float32)

    # FCN branch: channels-last; pad the raw input once for the K=8 'same' conv
    # (PyTorch 'same' even-kernel padding: left 3, right 4).
    x_fcn = jnp.pad(x_nl[:, :, None], ((0, 0), (3, 4), (0, 0)))
    u_fcn = jnp.pad(u[:, :, None], ((0, 0), (3, 4), (0, 0)), constant_values=1.0)
    fcn_feat = fcn_branch(x_fcn, u_fcn, params)                 # (N, 1, 128)

    # LSTM branch: time-major (L, N, 1).
    x_lstm = jnp.transpose(x_nl)[:, :, None]
    u_lstm = jnp.transpose(u)[:, :, None]
    h_last = lstm_branch(x_lstm, u_lstm, params)                # (N, 128)

    return head(h_last, fcn_feat, params)                       # (N, nb_classes) logits


if __name__ == "__main__":
    key = jax.random.PRNGKey(0)
    k_x, k_p, k_noise = jax.random.split(key, 3)

    N, C, L = 2, 1, 64
    nb_classes = 5

    x = jax.random.normal(k_x, (N, C, L), jnp.float32)
    params = init_params(k_p, nb_classes)

    out = forward(params, x, k_noise)
    out = jax.block_until_ready(out)
    assert out.shape == (N, nb_classes)
    assert bool(jnp.all(jnp.isfinite(out)))
    print("KERNEL_OK")
</pallas_src>

<mosaic_0001>
module attributes {stable_mosaic.version = 11 : i64} {
  func.func @_lstm_kernel(%arg0: memref<64x2x1xf32, #tpu.memory_space<vmem>>, %arg1: memref<64x2x1xf32, #tpu.memory_space<vmem>>, %arg2: memref<1x512xf32, #tpu.memory_space<vmem>>, %arg3: memref<128x512xf32, #tpu.memory_space<vmem>>, %arg4: memref<1x512xf32, #tpu.memory_space<vmem>>, %arg5: memref<2x128xf32, #tpu.memory_space<vmem>>) attributes {dimension_semantics = [], scalar_prefetch = 0 : i64, scratch_operands = 0 : i64, tpu.core_type = #tpu.core_type<tc>} {
    %c0 = arith.constant 0 : index
    %c0_0 = arith.constant 0 : index
    %0 = vector.load %arg2[%c0, %c0_0] : memref<1x512xf32, #tpu.memory_space<vmem>>, vector<1x512xf32>
    %c0_1 = arith.constant 0 : index
    %c0_2 = arith.constant 0 : index
    %1 = vector.load %arg3[%c0_1, %c0_2] : memref<128x512xf32, #tpu.memory_space<vmem>>, vector<128x512xf32>
    %c0_3 = arith.constant 0 : index
    %c0_4 = arith.constant 0 : index
    %2 = vector.load %arg4[%c0_3, %c0_4] : memref<1x512xf32, #tpu.memory_space<vmem>>, vector<1x512xf32>
    %cst = arith.constant 0.000000e+00 : f32
    %3 = vector.broadcast %cst : f32 to vector<2x128xf32>
    %cst_5 = arith.constant 0.000000e+00 : f32
    %4 = vector.broadcast %cst_5 : f32 to vector<2x128xf32>
    %c0_i32 = arith.constant 0 : i32
    %c64_i32 = arith.constant 64 : i32
    %5 = arith.addi %c0_i32, %c64_i32 : i32
    %c1_i32 = arith.constant 1 : i32
    %6:2 = scf.for %arg6 = %c0_i32 to %5 step %c1_i32 iter_args(%arg7 = %3, %arg8 = %4) -> (vector<2x128xf32>, vector<2x128xf32>)  : i32 {
      %8 = arith.index_cast %arg6 : i32 to index
      %c0_9 = arith.constant 0 : index
      %c0_10 = arith.constant 0 : index
      %9 = vector.load %arg1[%8, %c0_9, %c0_10] : memref<64x2x1xf32, #tpu.memory_space<vmem>>, vector<1x2x1xf32>
      %10 = vector.shape_cast %9 : vector<1x2x1xf32> to vector<2x1xf32>
      %cst_11 = arith.constant 5.000000e-01 : f32
      %11 = vector.broadcast %cst_11 : f32 to vector<2x1xf32>
      %12 = arith.cmpf oge, %10, %11 : vector<2x1xf32>
      %13 = arith.extui %12 : vector<2x1xi1> to vector<2x1xi32>
      %14 = arith.sitofp %13 : vector<2x1xi32> to vector<2x1xf32>
      %15 = arith.index_cast %arg6 : i32 to index
      %c0_12 = arith.constant 0 : index
      %c0_13 = arith.constant 0 : index
      %16 = vector.load %arg0[%15, %c0_12, %c0_13] : memref<64x2x1xf32, #tpu.memory_space<vmem>>, vector<1x2x1xf32>
      %17 = vector.shape_cast %16 : vector<1x2x1xf32> to vector<2x1xf32>
      %18 = arith.mulf %17, %14 : vector<2x1xf32>
      %19 = vector.broadcast %18 : vector<2x1xf32> to vector<2x512xf32>
      %20 = vector.broadcast %0 : vector<1x512xf32> to vector<2x512xf32>
      %21 = arith.mulf %19, %20 : vector<2x512xf32>
      %cst_14 = arith.constant dense<0.000000e+00> : vector<2x512xf32>
      %22 = tpu.matmul %arg7, %1, %cst_14 {dimension_numbers = #tpu.dot_dimension_numbers<[1], [0], [0], [1], [0, 0, 1, 1], [], []>} : vector<2x128xf32>, vector<128x512xf32>, vector<2x512xf32> -> vector<2x512xf32>
      %23 = arith.addf %21, %22 : vector<2x512xf32>
      %24 = vector.broadcast %2 : vector<1x512xf32> to vector<2x512xf32>
      %25 = arith.addf %23, %24 : vector<2x512xf32>
      %26 = vector.extract_strided_slice %25 {offsets = [0, 0], sizes = [2, 128], strides = [1, 1]} : vector<2x512xf32> to vector<2x128xf32>
      %27 = arith.negf %26 : vector<2x128xf32>
      %28 = math.exp %27 : vector<2x128xf32>
      %cst_15 = arith.constant 1.000000e+00 : f32
      %29 = vector.broadcast %cst_15 : f32 to vector<2x128xf32>
      %30 = arith.addf %29, %28 : vector<2x128xf32>
      %31 = arith.divf %29, %30 : vector<2x128xf32>
      %32 = vector.extract_strided_slice %25 {offsets = [0, 128], sizes = [2, 128], strides = [1, 1]} : vector<2x512xf32> to vector<2x128xf32>
      %33 = arith.negf %32 : vector<2x128xf32>
      %34 = math.exp %33 : vector<2x128xf32>
      %cst_16 = arith.constant 1.000000e+00 : f32
      %35 = vector.broadcast %cst_16 : f32 to vector<2x128xf32>
      %36 = arith.addf %35, %34 : vector<2x128xf32>
      %37 = arith.divf %35, %36 : vector<2x128xf32>
      %38 = vector.extract_strided_slice %25 {offsets = [0, 256], sizes = [2, 128], strides = [1, 1]} : vector<2x512xf32> to vector<2x128xf32>
      %39 = math.tanh %38 : vector<2x128xf32>
      %40 = vector.extract_strided_slice %25 {offsets = [0, 384], sizes = [2, 128], strides = [1, 1]} : vector<2x512xf32> to vector<2x128xf32>
      %41 = arith.negf %40 : vector<2x128xf32>
      %42 = math.exp %41 : vector<2x128xf32>
      %cst_17 = arith.constant 1.000000e+00 : f32
      %43 = vector.broadcast %cst_17 : f32 to vector<2x128xf32>
      %44 = arith.addf %43, %42 : vector<2x128xf32>
      %45 = arith.divf %43, %44 : vector<2x128xf32>
      %46 = arith.mulf %37, %arg8 : vector<2x128xf32>
      %47 = arith.mulf %31, %39 : vector<2x128xf32>
      %48 = arith.addf %46, %47 : vector<2x128xf32>
      %49 = math.tanh %48 : vector<2x128xf32>
      %50 = arith.mulf %45, %49 : vector<2x128xf32>
      scf.yield %50, %48 : vector<2x128xf32>, vector<2x128xf32>
    }
    %c64_i32_6 = arith.constant 64 : i32
    %c0_7 = arith.constant 0 : index
    %c0_8 = arith.constant 0 : index
    %7 = vector.load %arg5[%c0_7, %c0_8] : memref<2x128xf32, #tpu.memory_space<vmem>>, vector<2x128xf32>
    tpu.vector_store %arg5[%c0_7, %c0_8], %6#0 {strides = array<i32>} : memref<2x128xf32, #tpu.memory_space<vmem>>, vector<2x128xf32>,
    return
  }
}

module attributes {stable_mosaic.version = 11 : i64} {
  func.func @_fcn_kernel(%arg0: i32, %arg1: memref<1x71x1xf32, #tpu.memory_space<vmem>>, %arg2: memref<1x71x1xf32, #tpu.memory_space<vmem>>, %arg3: memref<8x128xf32, #tpu.memory_space<vmem>>, %arg4: memref<1x128xf32, #tpu.memory_space<vmem>>, %arg5: memref<1x128xf32, #tpu.memory_space<vmem>>, %arg6: memref<5x128x256xbf16, #tpu.memory_space<vmem>>, %arg7: memref<1x256xf32, #tpu.memory_space<vmem>>, %arg8: memref<1x256xf32, #tpu.memory_space<vmem>>, %arg9: memref<3x256x128xbf16, #tpu.memory_space<vmem>>, %arg10: memref<1x128xf32, #tpu.memory_space<vmem>>, %arg11: memref<1x128xf32, #tpu.memory_space<vmem>>, %arg12: memref<1x1x128xf32, #tpu.memory_space<vmem>>, %arg13: memref<68x128xf32, #tpu.memory_space<vmem>>, %arg14: memref<66x256xf32, #tpu.memory_space<vmem>>) attributes {dimension_semantics = [#tpu.dimension_semantics<parallel>], iteration_bounds = array<i64: 2>, scalar_prefetch = 0 : i64, scratch_operands = 2 : i64, tpu.core_type = #tpu.core_type<tc>, window_params = [{transform_indices = @transform_0, window_bounds = array<i64: 1, 71, 1>}, {transform_indices = @transform_1, window_bounds = array<i64: 1, 71, 1>}, {pipeline_mode = #tpu.pipeline_mode<synchronous>, transform_indices = @transform_2, window_bounds = array<i64: 8, 128>}, {pipeline_mode = #tpu.pipeline_mode<synchronous>, transform_indices = @transform_3, window_bounds = array<i64: 1, 128>}, {pipeline_mode = #tpu.pipeline_mode<synchronous>, transform_indices = @transform_4, window_bounds = array<i64: 1, 128>}, {pipeline_mode = #tpu.pipeline_mode<synchronous>, transform_indices = @transform_5, window_bounds = array<i64: 5, 128, 256>}, {pipeline_mode = #tpu.pipeline_mode<synchronous>, transform_indices = @transform_6, window_bounds = array<i64: 1, 256>}, {pipeline_mode = #tpu.pipeline_mode<synchronous>, transform_indices = @transform_7, window_bounds = array<i64: 1, 256>}, {pipeline_mode = #tpu.pipeline_mode<synchronous>, transform_indices = @transform_8, window_bounds = array<i64: 3, 256, 128>}, {pipeline_mode = #tpu.pipeline_mode<synchronous>, transform_indices = @transform_9, window_bounds = array<i64: 1, 128>}, {pipeline_mode = #tpu.pipeline_mode<synchronous>, transform_indices = @transform_10, window_bounds = array<i64: 1, 128>}, {transform_indices = @transform_11, window_bounds = array<i64: 1, 1, 128>}]} {
    %c0 = arith.constant 0 : index
    %c0_0 = arith.constant 0 : index
    %c0_1 = arith.constant 0 : index
    %0 = vector.load %arg2[%c0, %c0_0, %c0_1] : memref<1x71x1xf32, #tpu.memory_space<vmem>>, vector<1x71x1xf32>
    %1 = vector.shape_cast %0 : vector<1x71x1xf32> to vector<71x1xf32>
    %cst = arith.constant 5.000000e-01 : f32
    %2 = vector.broadcast %cst : f32 to vector<71x1xf32>
    %3 = arith.cmpf oge, %1, %2 : vector<71x1xf32>
    %4 = arith.extui %3 : vector<71x1xi1> to vector<71x1xi32>
    %5 = arith.sitofp %4 : vector<71x1xi32> to vector<71x1xf32>
    %c0_2 = arith.constant 0 : index
    %c0_3 = arith.constant 0 : index
    %c0_4 = arith.constant 0 : index
    %6 = vector.load %arg1[%c0_2, %c0_3, %c0_4] : memref<1x71x1xf32, #tpu.memory_space<vmem>>, vector<1x71x1xf32>
    %7 = vector.shape_cast %6 : vector<1x71x1xf32> to vector<71x1xf32>
    %8 = arith.mulf %7, %5 : vector<71x1xf32>
    %cst_5 = arith.constant 0.000000e+00 : f32
    %9 = vector.broadcast %cst_5 : f32 to vector<64x128xf32>
    %10 = vector.extract_strided_slice %8 {offsets = [0, 0], sizes = [64, 1], strides = [1, 1]} : vector<71x1xf32> to vector<64x1xf32>
    %c0_6 = arith.constant 0 : index
    %c0_7 = arith.constant 0 : index
    %11 = vector.load %arg3[%c0_6, %c0_7] : memref<8x128xf32, #tpu.memory_space<vmem>>, vector<1x128xf32>
    %12 = vector.broadcast %10 : vector<64x1xf32> to vector<64x128xf32>
    %13 = vector.broadcast %11 : vector<1x128xf32> to vector<64x128xf32>
    %14 = arith.mulf %12, %13 : vector<64x128xf32>
    %15 = arith.addf %9, %14 : vector<64x128xf32>
    %16 = vector.extract_strided_slice %8 {offsets = [1, 0], sizes = [64, 1], strides = [1, 1]} : vector<71x1xf32> to vector<64x1xf32>
    %c1 = arith.constant 1 : index
    %c0_8 = arith.constant 0 : index
    %17 = vector.load %arg3[%c1, %c0_8] : memref<8x128xf32, #tpu.memory_space<vmem>>, vector<1x128xf32>
    %18 = vector.broadcast %16 : vector<64x1xf32> to vector<64x128xf32>
    %19 = vector.broadcast %17 : vector<1x128xf32> to vector<64x128xf32>
    %20 = arith.mulf %18, %19 : vector<64x128xf32>
    %21 = arith.addf %15, %20 : vector<64x128xf32>
    %22 = vector.extract_strided_slice %8 {offsets = [2, 0], sizes = [64, 1], strides = [1, 1]} : vector<71x1xf32> to vector<64x1xf32>
    %c2 = arith.constant 2 : index
    %c0_9 = arith.constant 0 : index
    %23 = vector.load %arg3[%c2, %c0_9] : memref<8x128xf32, #tpu.memory_space<vmem>>, vector<1x128xf32>
    %24 = vector.broadcast %22 : vector<64x1xf32> to vector<64x128xf32>
    %25 = vector.broadcast %23 : vector<1x128xf32> to vector<64x128xf32>
    %26 = arith.mulf %24, %25 : vector<64x128xf32>
    %27 = arith.addf %21, %26 : vector<64x128xf32>
    %28 = vector.extract_strided_slice %8 {offsets = [3, 0], sizes = [64, 1], strides = [1, 1]} : vector<71x1xf32> to vector<64x1xf32>
    %c3 = arith.constant 3 : index
    %c0_10 = arith.constant 0 : index
    %29 = vector.load %arg3[%c3, %c0_10] : memref<8x128xf32, #tpu.memory_space<vmem>>, vector<1x128xf32>
    %30 = vector.broadcast %28 : vector<64x1xf32> to vector<64x128xf32>
    %31 = vector.broadcast %29 : vector<1x128xf32> to vector<64x128xf32>
    %32 = arith.mulf %30, %31 : vector<64x128xf32>
    %33 = arith.addf %27, %32 : vector<64x128xf32>
    %34 = vector.extract_strided_slice %8 {offsets = [4, 0], sizes = [64, 1], strides = [1, 1]} : vector<71x1xf32> to vector<64x1xf32>
    %c4 = arith.constant 4 : index
    %c0_11 = arith.constant 0 : index
    %35 = vector.load %arg3[%c4, %c0_11] : memref<8x128xf32, #tpu.memory_space<vmem>>, vector<1x128xf32>
    %36 = vector.broadcast %34 : vector<64x1xf32> to vector<64x128xf32>
    %37 = vector.broadcast %35 : vector<1x128xf32> to vector<64x128xf32>
    %38 = arith.mulf %36, %37 : vector<64x128xf32>
    %39 = arith.addf %33, %38 : vector<64x128xf32>
    %40 = vector.extract_strided_slice %8 {offsets = [5, 0], sizes = [64, 1], strides = [1, 1]} : vector<71x1xf32> to vector<64x1xf32>
    %c5 = arith.constant 5 : index
    %c0_12 = arith.constant 0 : index
    %41 = vector.load %arg3[%c5, %c0_12] : memref<8x128xf32, #tpu.memory_space<vmem>>, vector<1x128xf32>
    %42 = vector.broadcast %40 : vector<64x1xf32> to vector<64x128xf32>
    %43 = vector.broadcast %41 : vector<1x128xf32> to vector<64x128xf32>
    %44 = arith.mulf %42, %43 : vector<64x128xf32>
    %45 = arith.addf %39, %44 : vector<64x128xf32>
    %46 = vector.extract_strided_slice %8 {offsets = [6, 0], sizes = [64, 1], strides = [1, 1]} : vector<71x1xf32> to vector<64x1xf32>
    %c6 = arith.constant 6 : index
    %c0_13 = arith.constant 0 : index
    %47 = vector.load %arg3[%c6, %c0_13] : memref<8x128xf32, #tpu.memory_space<vmem>>, vector<1x128xf32>
    %48 = vector.broadcast %46 : vector<64x1xf32> to vector<64x128xf32>
    %49 = vector.broadcast %47 : vector<1x128xf32> to vector<64x128xf32>
    %50 = arith.mulf %48, %49 : vector<64x128xf32>
    %51 = arith.addf %45, %50 : vector<64x128xf32>
    %52 = vector.extract_strided_slice %8 {offsets = [7, 0], sizes = [64, 1], strides = [1, 1]} : vector<71x1xf32> to vector<64x1xf32>
    %c7 = arith.constant 7 : index
    %c0_14 = arith.constant 0 : index
    %53 = vector.load %arg3[%c7, %c0_14] : memref<8x128xf32, #tpu.memory_space<vmem>>, vector<1x128xf32>
    %54 = vector.broadcast %52 : vector<64x1xf32> to vector<64x128xf32>
    %55 = vector.broadcast %53 : vector<1x128xf32> to vector<64x128xf32>
    %56 = arith.mulf %54, %55 : vector<64x128xf32>
    %57 = arith.addf %51, %56 : vector<64x128xf32>
    %c0_15 = arith.constant 0 : index
    %c0_16 = arith.constant 0 : index
    %58 = vector.load %arg4[%c0_15, %c0_16] : memref<1x128xf32, #tpu.memory_space<vmem>>, vector<1x128xf32>
    %59 = vector.broadcast %58 : vector<1x128xf32> to vector<64x128xf32>
    %60 = arith.mulf %57, %59 : vector<64x128xf32>
    %c0_17 = arith.constant 0 : index
    %c0_18 = arith.constant 0 : index
    %61 = vector.load %arg5[%c0_17, %c0_18] : memref<1x128xf32, #tpu.memory_space<vmem>>, vector<1x128xf32>
    %62 = vector.broadcast %61 : vector<1x128xf32> to vector<64x128xf32>
    %63 = arith.addf %60, %62 : vector<64x128xf32>
    %cst_19 = arith.constant 0.000000e+00 : f32
    %64 = vector.broadcast %cst_19 : f32 to vector<64x128xf32>
    %65 = arith.maximumf %63, %64 : vector<64x128xf32>
    %cst_20 = arith.constant 0.000000e+00 : f32
    %66 = vector.broadcast %cst_20 : f32 to vector<68x128xf32>
    %c0_21 = arith.constant 0 : index
    %c0_22 = arith.constant 0 : index
    %67 = vector.load %arg13[%c0_21, %c0_22] : memref<68x128xf32, #tpu.memory_space<vmem>>, vector<68x128xf32>
    tpu.vector_store %arg13[%c0_21, %c0_22], %66 {strides = array<i32>} : memref<68x128xf32, #tpu.memory_space<vmem>>, vector<68x128xf32>,
    %c2_23 = arith.constant 2 : index
    %c0_24 = arith.constant 0 : index
    %68 = vector.load %arg13[%c2_23, %c0_24] : memref<68x128xf32, #tpu.memory_space<vmem>>, vector<64x128xf32>
    tpu.vector_store %arg13[%c2_23, %c0_24], %65 {strides = array<i32>} : memref<68x128xf32, #tpu.memory_space<vmem>>, vector<64x128xf32>,
    %cst_25 = arith.constant 0.000000e+00 : f32
    %69 = vector.broadcast %cst_25 : f32 to vector<64x256xf32>
    %c0_26 = arith.constant 0 : index
    %c0_27 = arith.constant 0 : index
    %70 = vector.load %arg13[%c0_26, %c0_27] : memref<68x128xf32, #tpu.memory_space<vmem>>, vector<64x128xf32>
    %71 = arith.truncf %70 : vector<64x128xf32> to vector<64x128xbf16>
    %c0_28 = arith.constant 0 : index
    %c0_29 = arith.constant 0 : index
    %c0_30 = arith.constant 0 : index
    %72 = vector.load %arg6[%c0_28, %c0_29, %c0_30] : memref<5x128x256xbf16, #tpu.memory_space<vmem>>, vector<1x128x256xbf16>
    %73 = vector.shape_cast %72 : vector<1x128x256xbf16> to vector<128x256xbf16>
    %cst_31 = arith.constant dense<0.000000e+00> : vector<64x256xf32>
    %74 = tpu.matmul %71, %73, %cst_31 {dimension_numbers = #tpu.dot_dimension_numbers<[1], [0], [0], [1], [0, 0, 1, 1], [], []>} : vector<64x128xbf16>, vector<128x256xbf16>, vector<64x256xf32> -> vector<64x256xf32>
    %75 = arith.addf %69, %74 : vector<64x256xf32>
    %c1_32 = arith.constant 1 : index
    %c0_33 = arith.constant 0 : index
    %76 = vector.load %arg13[%c1_32, %c0_33] : memref<68x128xf32, #tpu.memory_space<vmem>>, vector<64x128xf32>
    %77 = arith.truncf %76 : vector<64x128xf32> to vector<64x128xbf16>
    %c1_34 = arith.constant 1 : index
    %c0_35 = arith.constant 0 : index
    %c0_36 = arith.constant 0 : index
    %78 = vector.load %arg6[%c1_34, %c0_35, %c0_36] : memref<5x128x256xbf16, #tpu.memory_space<vmem>>, vector<1x128x256xbf16>
    %79 = vector.shape_cast %78 : vector<1x128x256xbf16> to vector<128x256xbf16>
    %cst_37 = arith.constant dense<0.000000e+00> : vector<64x256xf32>
    %80 = tpu.matmul %77, %79, %cst_37 {dimension_numbers = #tpu.dot_dimension_numbers<[1], [0], [0], [1], [0, 0, 1, 1], [], []>} : vector<64x128xbf16>, vector<128x256xbf16>, vector<64x256xf32> -> vector<64x256xf32>
    %81 = arith.addf %75, %80 : vector<64x256xf32>
    %c2_38 = arith.constant 2 : index
    %c0_39 = arith.constant 0 : index
    %82 = vector.load %arg13[%c2_38, %c0_39] : memref<68x128xf32, #tpu.memory_space<vmem>>, vector<64x128xf32>
    %83 = arith.truncf %82 : vector<64x128xf32> to vector<64x128xbf16>
    %c2_40 = arith.constant 2 : index
    %c0_41 = arith.constant 0 : index
    %c0_42 = arith.constant 0 : index
    %84 = vector.load %arg6[%c2_40, %c0_41, %c0_42] : memref<5x128x256xbf16, #tpu.memory_space<vmem>>, vector<1x128x256xbf16>
    %85 = vector.shape_cast %84 : vector<1x128x256xbf16> to vector<128x256xbf16>
    %cst_43 = arith.constant dense<0.000000e+00> : vector<64x256xf32>
    %86 = tpu.matmul %83, %85, %cst_43 {dimension_numbers = #tpu.dot_dimension_numbers<[1], [0], [0], [1], [0, 0, 1, 1], [], []>} : vector<64x128xbf16>, vector<128x256xbf16>, vector<64x256xf32> -> vector<64x256xf32>
    %87 = arith.addf %81, %86 : vector<64x256xf32>
    %c3_44 = arith.constant 3 : index
    %c0_45 = arith.constant 0 : index
    %88 = vector.load %arg13[%c3_44, %c0_45] : memref<68x128xf32, #tpu.memory_space<vmem>>, vector<64x128xf32>
    %89 = arith.truncf %88 : vector<64x128xf32> to vector<64x128xbf16>
    %c3_46 = arith.constant 3 : index
    %c0_47 = arith.constant 0 : index
    %c0_48 = arith.constant 0 : index
    %90 = vector.load %arg6[%c3_46, %c0_47, %c0_48] : memref<5x128x256xbf16, #tpu.memory_space<vmem>>, vector<1x128x256xbf16>
    %91 = vector.shape_cast %90 : vector<1x128x256xbf16> to vector<128x256xbf16>
    %cst_49 = arith.constant dense<0.000000e+00> : vector<64x256xf32>
    %92 = tpu.matmul %89, %91, %cst_49 {dimension_numbers = #tpu.dot_dimension_numbers<[1], [0], [0], [1], [0, 0, 1, 1], [], []>} : vector<64x128xbf16>, vector<128x256xbf16>, vector<64x256xf32> -> vector<64x256xf32>
    %93 = arith.addf %87, %92 : vector<64x256xf32>
    %c4_50 = arith.constant 4 : index
    %c0_51 = arith.constant 0 : index
    %94 = vector.load %arg13[%c4_50, %c0_51] : memref<68x128xf32, #tpu.memory_space<vmem>>, vector<64x128xf32>
    %95 = arith.truncf %94 : vector<64x128xf32> to vector<64x128xbf16>
    %c4_52 = arith.constant 4 : index
    %c0_53 = arith.constant 0 : index
    %c0_54 = arith.constant 0 : index
    %96 = vector.load %arg6[%c4_52, %c0_53, %c0_54] : memref<5x128x256xbf16, #tpu.memory_space<vmem>>, vector<1x128x256xbf16>
    %97 = vector.shape_cast %96 : vector<1x128x256xbf16> to vector<128x256xbf16>
    %cst_55 = arith.constant dense<0.000000e+00> : vector<64x256xf32>
    %98 = tpu.matmul %95, %97, %cst_55 {dimension_numbers = #tpu.dot_dimension_numbers<[1], [0], [0], [1], [0, 0, 1, 1], [], []>} : vector<64x128xbf16>, vector<128x256xbf16>, vector<64x256xf32> -> vector<64x256xf32>
    %99 = arith.addf %93, %98 : vector<64x256xf32>
    %c0_56 = arith.constant 0 : index
    %c0_57 = arith.constant 0 : index
    %100 = vector.load %arg7[%c0_56, %c0_57] : memref<1x256xf32, #tpu.memory_space<vmem>>, vector<1x256xf32>
    %101 = vector.broadcast %100 : vector<1x256xf32> to vector<64x256xf32>
    %102 = arith.mulf %99, %101 : vector<64x256xf32>
    %c0_58 = arith.constant 0 : index
    %c0_59 = arith.constant 0 : index
    %103 = vector.load %arg8[%c0_58, %c0_59] : memref<1x256xf32, #tpu.memory_space<vmem>>, vector<1x256xf32>
    %104 = vector.broadcast %103 : vector<1x256xf32> to vector<64x256xf32>
    %105 = arith.addf %102, %104 : vector<64x256xf32>
    %cst_60 = arith.constant 0.000000e+00 : f32
    %106 = vector.broadcast %cst_60 : f32 to vector<64x256xf32>
    %107 = arith.maximumf %105, %106 : vector<64x256xf32>
    %cst_61 = arith.constant 0.000000e+00 : f32
    %108 = vector.broadcast %cst_61 : f32 to vector<66x256xf32>
    %c0_62 = arith.constant 0 : index
    %c0_63 = arith.constant 0 : index
    %109 = vector.load %arg14[%c0_62, %c0_63] : memref<66x256xf32, #tpu.memory_space<vmem>>, vector<66x256xf32>
    tpu.vector_store %arg14[%c0_62, %c0_63], %108 {strides = array<i32>} : memref<66x256xf32, #tpu.memory_space<vmem>>, vector<66x256xf32>,
    %c1_64 = arith.constant 1 : index
    %c0_65 = arith.constant 0 : index
    %110 = vector.load %arg14[%c1_64, %c0_65] : memref<66x256xf32, #tpu.memory_space<vmem>>, vector<64x256xf32>
    tpu.vector_store %arg14[%c1_64, %c0_65], %107 {strides = array<i32>} : memref<66x256xf32, #tpu.memory_space<vmem>>, vector<64x256xf32>,
    %cst_66 = arith.constant 0.000000e+00 : f32
    %111 = vector.broadcast %cst_66 : f32 to vector<64x128xf32>
    %c0_67 = arith.constant 0 : index
    %c0_68 = arith.constant 0 : index
    %112 = vector.load %arg14[%c0_67, %c0_68] : memref<66x256xf32, #tpu.memory_space<vmem>>, vector<64x256xf32>
    %113 = arith.truncf %112 : vector<64x256xf32> to vector<64x256xbf16>
    %c0_69 = arith.constant 0 : index
    %c0_70 = arith.constant 0 : index
    %c0_71 = arith.constant 0 : index
    %114 = vector.load %arg9[%c0_69, %c0_70, %c0_71] : memref<3x256x128xbf16, #tpu.memory_space<vmem>>, vector<1x256x128xbf16>
    %115 = vector.shape_cast %114 : vector<1x256x128xbf16> to vector<256x128xbf16>
    %cst_72 = arith.constant dense<0.000000e+00> : vector<64x128xf32>
    %116 = tpu.matmul %113, %115, %cst_72 {dimension_numbers = #tpu.dot_dimension_numbers<[1], [0], [0], [1], [0, 0, 1, 1], [], []>} : vector<64x256xbf16>, vector<256x128xbf16>, vector<64x128xf32> -> vector<64x128xf32>
    %117 = arith.addf %111, %116 : vector<64x128xf32>
    %c1_73 = arith.constant 1 : index
    %c0_74 = arith.constant 0 : index
    %118 = vector.load %arg14[%c1_73, %c0_74] : memref<66x256xf32, #tpu.memory_space<vmem>>, vector<64x256xf32>
    %119 = arith.truncf %118 : vector<64x256xf32> to vector<64x256xbf16>
    %c1_75 = arith.constant 1 : index
    %c0_76 = arith.constant 0 : index
    %c0_77 = arith.constant 0 : index
    %120 = vector.load %arg9[%c1_75, %c0_76, %c0_77] : memref<3x256x128xbf16, #tpu.memory_space<vmem>>, vector<1x256x128xbf16>
    %121 = vector.shape_cast %120 : vector<1x256x128xbf16> to vector<256x128xbf16>
    %cst_78 = arith.constant dense<0.000000e+00> : vector<64x128xf32>
    %122 = tpu.matmul %119, %121, %cst_78 {dimension_numbers = #tpu.dot_dimension_numbers<[1], [0], [0], [1], [0, 0, 1, 1], [], []>} : vector<64x256xbf16>, vector<256x128xbf16>, vector<64x128xf32> -> vector<64x128xf32>
    %123 = arith.addf %117, %122 : vector<64x128xf32>
    %c2_79 = arith.constant 2 : index
    %c0_80 = arith.constant 0 : index
    %124 = vector.load %arg14[%c2_79, %c0_80] : memref<66x256xf32, #tpu.memory_space<vmem>>, vector<64x256xf32>
    %125 = arith.truncf %124 : vector<64x256xf32> to vector<64x256xbf16>
    %c2_81 = arith.constant 2 : index
    %c0_82 = arith.constant 0 : index
    %c0_83 = arith.constant 0 : index
    %126 = vector.load %arg9[%c2_81, %c0_82, %c0_83] : memref<3x256x128xbf16, #tpu.memory_space<vmem>>, vector<1x256x128xbf16>
    %127 = vector.shape_cast %126 : vector<1x256x128xbf16> to vector<256x128xbf16>
    %cst_84 = arith.constant dense<0.000000e+00> : vector<64x128xf32>
    %128 = tpu.matmul %125, %127, %cst_84 {dimension_numbers = #tpu.dot_dimension_numbers<[1], [0], [0], [1], [0, 0, 1, 1], [], []>} : vector<64x256xbf16>, vector<256x128xbf16>, vector<64x128xf32> -> vector<64x128xf32>
    %129 = arith.addf %123, %128 : vector<64x128xf32>
    %c0_85 = arith.constant 0 : index
    %c0_86 = arith.constant 0 : index
    %130 = vector.load %arg10[%c0_85, %c0_86] : memref<1x128xf32, #tpu.memory_space<vmem>>, vector<1x128xf32>
    %131 = vector.broadcast %130 : vector<1x128xf32> to vector<64x128xf32>
    %132 = arith.mulf %129, %131 : vector<64x128xf32>
    %c0_87 = arith.constant 0 : index
    %c0_88 = arith.constant 0 : index
    %133 = vector.load %arg11[%c0_87, %c0_88] : memref<1x128xf32, #tpu.memory_space<vmem>>, vector<1x128xf32>
    %134 = vector.broadcast %133 : vector<1x128xf32> to vector<64x128xf32>
    %135 = arith.addf %132, %134 : vector<64x128xf32>
    %cst_89 = arith.constant 0.000000e+00 : f32
    %136 = vector.broadcast %cst_89 : f32 to vector<64x128xf32>
    %137 = arith.maximumf %135, %136 : vector<64x128xf32>
    %cst_90 = arith.constant dense<0.000000e+00> : vector<128xf32>
    %138 = vector.multi_reduction <add>, %137, %cst_90 [0] : vector<64x128xf32> to vector<128xf32>
    %cst_91 = arith.constant 6.400000e+01 : f32
    %139 = vector.broadcast %cst_91 : f32 to vector<128xf32>
    %140 = arith.divf %138, %139 : vector<128xf32>
    %141 = vector.shape_cast %140 : vector<128xf32> to vector<1x1x128xf32>
    %c0_92 = arith.constant 0 : index
    %c0_93 = arith.constant 0 : index
    %c0_94 = arith.constant 0 : index
    %142 = vector.load %arg12[%c0_92, %c0_93, %c0_94] : memref<1x1x128xf32, #tpu.memory_space<vmem>>, vector<1x1x128xf32>
    tpu.vector_store %arg12[%c0_92, %c0_93, %c0_94], %141 {strides = array<i32>} : memref<1x1x128xf32, #tpu.memory_space<vmem>>, vector<1x1x128xf32>,
    return
  }
  func.func @transform_0(%arg0: i32) -> (i32, i32, i32) {
    %c0_i32 = arith.constant 0 : i32
    %c0_i32_0 = arith.constant 0 : i32
    %c0_i32_1 = arith.constant 0 : i32
    return %arg0, %c0_i32, %c0_i32_0 : i32, i32, i32
  }
  func.func @transform_1(%arg0: i32) -> (i32, i32, i32) {
    %c0_i32 = arith.constant 0 : i32
    %c0_i32_0 = arith.constant 0 : i32
    %c0_i32_1 = arith.constant 0 : i32
    return %arg0, %c0_i32, %c0_i32_0 : i32, i32, i32
  }
  func.func @transform_2(%arg0: i32) -> (i32, i32) {
    %c0_i32 = arith.constant 0 : i32
    %c0_i32_0 = arith.constant 0 : i32
    %c0_i32_1 = arith.constant 0 : i32
    return %c0_i32, %c0_i32_0 : i32, i32
  }
  func.func @transform_3(%arg0: i32) -> (i32, i32) {
    %c0_i32 = arith.constant 0 : i32
    %c0_i32_0 = arith.constant 0 : i32
    %c0_i32_1 = arith.constant 0 : i32
    return %c0_i32, %c0_i32_0 : i32, i32
  }
  func.func @transform_4(%arg0: i32) -> (i32, i32) {
    %c0_i32 = arith.constant 0 : i32
    %c0_i32_0 = arith.constant 0 : i32
    %c0_i32_1 = arith.constant 0 : i32
    return %c0_i32, %c0_i32_0 : i32, i32
  }
  func.func @transform_5(%arg0: i32) -> (i32, i32, i32) {
    %c0_i32 = arith.constant 0 : i32
    %c0_i32_0 = arith.constant 0 : i32
    %c0_i32_1 = arith.constant 0 : i32
    %c0_i32_2 = arith.constant 0 : i32
    return %c0_i32, %c0_i32_0, %c0_i32_1 : i32, i32, i32
  }
  func.func @transform_6(%arg0: i32) -> (i32, i32) {
    %c0_i32 = arith.constant 0 : i32
    %c0_i32_0 = arith.constant 0 : i32
    %c0_i32_1 = arith.constant 0 : i32
    return %c0_i32, %c0_i32_0 : i32, i32
  }
  func.func @transform_7(%arg0: i32) -> (i32, i32) {
    %c0_i32 = arith.constant 0 : i32
    %c0_i32_0 = arith.constant 0 : i32
    %c0_i32_1 = arith.constant 0 : i32
    return %c0_i32, %c0_i32_0 : i32, i32
  }
  func.func @transform_8(%arg0: i32) -> (i32, i32, i32) {
    %c0_i32 = arith.constant 0 : i32
    %c0_i32_0 = arith.constant 0 : i32
    %c0_i32_1 = arith.constant 0 : i32
    %c0_i32_2 = arith.constant 0 : i32
    return %c0_i32, %c0_i32_0, %c0_i32_1 : i32, i32, i32
  }
  func.func @transform_9(%arg0: i32) -> (i32, i32) {
    %c0_i32 = arith.constant 0 : i32
    %c0_i32_0 = arith.constant 0 : i32
    %c0_i32_1 = arith.constant 0 : i32
    return %c0_i32, %c0_i32_0 : i32, i32
  }
  func.func @transform_10(%arg0: i32) -> (i32, i32) {
    %c0_i32 = arith.constant 0 : i32
    %c0_i32_0 = arith.constant 0 : i32
    %c0_i32_1 = arith.constant 0 : i32
    return %c0_i32, %c0_i32_0 : i32, i32
  }
  func.func @transform_11(%arg0: i32) -> (i32, i32, i32) {
    %c0_i32 = arith.constant 0 : i32
    %c0_i32_0 = arith.constant 0 : i32
    %c0_i32_1 = arith.constant 0 : i32
    return %arg0, %c0_i32, %c0_i32_0 : i32, i32, i32
  }
}

module attributes {stable_mosaic.version = 11 : i64} {
  func.func @_head_kernel(%arg0: memref<2x128xf32, #tpu.memory_space<vmem>>, %arg1: memref<2x1x128xf32, #tpu.memory_space<vmem>>, %arg2: memref<256x5xf32, #tpu.memory_space<vmem>>, %arg3: memref<1x5xf32, #tpu.memory_space<vmem>>, %arg4: memref<2x5xf32, #tpu.memory_space<vmem>>) attributes {dimension_semantics = [], scalar_prefetch = 0 : i64, scratch_operands = 0 : i64, tpu.core_type = #tpu.core_type<tc>} {
    %c0 = arith.constant 0 : index
    %c0_0 = arith.constant 0 : index
    %0 = vector.load %arg0[%c0, %c0_0] : memref<2x128xf32, #tpu.memory_space<vmem>>, vector<2x128xf32>
    %c0_1 = arith.constant 0 : index
    %c0_2 = arith.constant 0 : index
    %c0_3 = arith.constant 0 : index
    %1 = vector.load %arg1[%c0_1, %c0_2, %c0_3] : memref<2x1x128xf32, #tpu.memory_space<vmem>>, vector<2x1x128xf32>
    %2 = vector.shape_cast %1 : vector<2x1x128xf32> to vector<2x128xf32>
    %c0_4 = arith.constant 0 : index
    %c0_5 = arith.constant 0 : index
    %3 = vector.load %arg2[%c0_4, %c0_5] : memref<256x5xf32, #tpu.memory_space<vmem>>, vector<128x5xf32>
    %cst = arith.constant dense<0.000000e+00> : vector<2x5xf32>
    %4 = tpu.matmul %0, %3, %cst {dimension_numbers = #tpu.dot_dimension_numbers<[1], [0], [0], [1], [0, 0, 1, 1], [], []>} : vector<2x128xf32>, vector<128x5xf32>, vector<2x5xf32> -> vector<2x5xf32>
    %c128 = arith.constant 128 : index
    %c0_6 = arith.constant 0 : index
    %5 = vector.load %arg2[%c128, %c0_6] : memref<256x5xf32, #tpu.memory_space<vmem>>, vector<128x5xf32>
    %cst_7 = arith.constant dense<0.000000e+00> : vector<2x5xf32>
    %6 = tpu.matmul %2, %5, %cst_7 {dimension_numbers = #tpu.dot_dimension_numbers<[1], [0], [0], [1], [0, 0, 1, 1], [], []>} : vector<2x128xf32>, vector<128x5xf32>, vector<2x5xf32> -> vector<2x5xf32>
    %7 = arith.addf %4, %6 : vector<2x5xf32>
    %c0_8 = arith.constant 0 : index
    %c0_9 = arith.constant 0 : index
    %8 = vector.load %arg3[%c0_8, %c0_9] : memref<1x5xf32, #tpu.memory_space<vmem>>, vector<1x5xf32>
    %9 = vector.broadcast %8 : vector<1x5xf32> to vector<2x5xf32>
    %10 = arith.addf %7, %9 : vector<2x5xf32>
    %c0_10 = arith.constant 0 : index
    %c0_11 = arith.constant 0 : index
    %11 = vector.load %arg4[%c0_10, %c0_11] : memref<2x5xf32, #tpu.memory_space<vmem>>, vector<2x5xf32>
    tpu.vector_store %arg4[%c0_10, %c0_11], %10 {strides = array<i32>} : memref<2x5xf32, #tpu.memory_space<vmem>>, vector<2x5xf32>,
    return
  }
}

</mosaic_0001>

<llo_original>
// kernel: forward.3
$region0: #{forward.3}
  #allocation0 [shape = 'u32[]', space=smem, size = 0x4, offset = 0x4, fixed_abs, tag = 'smem constant byte address 0x4 - core index']
  #allocation1 [shape = 'u32[72,128]{1,0:T(1,128)}', space=vmem, size = 0x9000, scoped, tag = 'internal scratch']
  %s0 = inlined_call_operand.vmem [shape: f32[64,2,1], index: 0, kind: input, shape index: {}]
  %s1 = inlined_call_operand.vmem [shape: f32[64,2,1], index: 1, kind: input, shape index: {}]
  %s2 = inlined_call_operand.vmem [shape: f32[1,512], index: 2, kind: input, shape index: {}]
  %s3 = inlined_call_operand.hbm [shape: f32[128,512], index: 3, kind: input, shape index: {}]
  %s4 = inlined_call_operand.vmem [shape: f32[1,512], index: 4, kind: input, shape index: {}]
  %s5 = inlined_call_operand.vmem [shape: f32[2,128], index: 5, kind: output, shape index: {}]
  %s6 = sld [smem:[#allocation0]]
  $region41: #{forward.3} parent=0
    _
  %s8 = ssub.s32 1, %s6
  %s9 = scalar_select 0, %s8, %s6
  $region1: #{forward.3} parent=0
    #allocation2 [shape = 'u8[262144]{0}', space=vmem, size = 0x40000, scoped, tag = 'input window, operand 3, single buffered']
    #allocation3 [shape = 's32[1]{0}', space=sflag, size = 0x4, scoped, tag = 'scoped memory for forward.3']
    %10 = vsyncpa [#allocation3], 0
    // Predicated region
    $region2: #{forward.3} parent=1 // pred_check
      _
    $region3: #{forward.3} parent=1 // pred_check_branch
      %12 = sbr.rel (0) target = $region5
    $region4: #{forward.3} parent=1 // pred_region
      _
    $region5: #{forward.3} parent=1 // pred_fallthru
      _
    // Predicated region
    $region6: #{forward.3} parent=1 // pred_check
      _
    $region7: #{forward.3} parent=1 // pred_check_branch
      %14 = sbr.rel (0) target = $region9
    $region8: #{forward.3} parent=1 // pred_region
      _
    $region9: #{forward.3} parent=1 // pred_fallthru
      _
    // Predicated region
    $region10: #{forward.3} parent=1 // pred_check
      _
    $region11: #{forward.3} parent=1 // pred_check_branch
      %16 = sbr.rel (0) target = $region13
    $region12: #{forward.3} parent=1 // pred_region
      _
    $region13: #{forward.3} parent=1 // pred_fallthru
      _
    // Predicated region
    $region14: #{forward.3} parent=1 // pred_check
      _
    $region15: #{forward.3} parent=1 // pred_check_branch
      %18 = sbr.rel (0) target = $region17
    $region16: #{forward.3} parent=1 // pred_region
      %20 = vsyncadd [#allocation3], 0
      %s21 = sshll.u32 %s3, 4
      %s22 = int_to_ptr.hbm [resolvable:$true] %s21
      %s23 = sshll.u32 [#allocation2], 4
      %s24 = int_to_ptr.vmem [resolvable:$true] %s23
      %29 = dma.hbm_to_vmem [thread:$0]  %s22, 8192, %s24, [#allocation3], 512, 512, 32
    $region17: #{forward.3} parent=1 // pred_fallthru
      _
    // Predicated region
    $region18: #{forward.3} parent=1 // pred_check
      _
    $region19: #{forward.3} parent=1 // pred_check_branch
      %31 = sbr.rel (0) target = $region21
    $region20: #{forward.3} parent=1 // pred_region
      _
    $region21: #{forward.3} parent=1 // pred_fallthru
      _
    // Predicated region
    $region22: #{forward.3} parent=1 // pred_check
      _
    $region23: #{forward.3} parent=1 // pred_check_branch
      %33 = sbr.rel (0) target = $region25
    $region24: #{forward.3} parent=1 // pred_region
      %35 = dma.done [#allocation3], 8192
    $region25: #{forward.3} parent=1 // pred_fallthru
      _
    %v36 = vld [vmem:[%s2] sm:$0xf]
    %v37 = vld [vmem:[#allocation2] sm:$0xff]
    %v38 = vld [vmem:[#allocation2 + $0x8] sm:$0xff]
    %v39 = vld [vmem:[#allocation2 + $0x10] sm:$0xff]
    %v40 = vld [vmem:[#allocation2 + $0x18] sm:$0xff]
    %v41 = vld [vmem:[#allocation2 + $0x20] sm:$0xff]
    %v42 = vld [vmem:[#allocation2 + $0x28] sm:$0xff]
    %v43 = vld [vmem:[#allocation2 + $0x30] sm:$0xff]
    %v44 = vld [vmem:[#allocation2 + $0x38] sm:$0xff]
    %v45 = vld [vmem:[#allocation2 + $0x40] sm:$0xff]
    %v46 = vld [vmem:[#allocation2 + $0x48] sm:$0xff]
    %v47 = vld [vmem:[#allocation2 + $0x50] sm:$0xff]
    %v48 = vld [vmem:[#allocation2 + $0x58] sm:$0xff]
    %v49 = vld [vmem:[#allocation2 + $0x60] sm:$0xff]
    %v50 = vld [vmem:[#allocation2 + $0x68] sm:$0xff]
    %v51 = vld [vmem:[#allocation2 + $0x70] sm:$0xff]
    %v52 = vld [vmem:[#allocation2 + $0x78] sm:$0xff]
    %v53 = vld [vmem:[#allocation2 + $0x80] sm:$0xff]
    %v54 = vld [vmem:[#allocation2 + $0x88] sm:$0xff]
    %v55 = vld [vmem:[#allocation2 + $0x90] sm:$0xff]
    %v56 = vld [vmem:[#allocation2 + $0x98] sm:$0xff]
    %v57 = vld [vmem:[#allocation2 + $0xa0] sm:$0xff]
    %v58 = vld [vmem:[#allocation2 + $0xa8] sm:$0xff]
    %v59 = vld [vmem:[#allocation2 + $0xb0] sm:$0xff]
    %v60 = vld [vmem:[#allocation2 + $0xb8] sm:$0xff]
    %v61 = vld [vmem:[#allocation2 + $0xc0] sm:$0xff]
    %v62 = vld [vmem:[#allocation2 + $0xc8] sm:$0xff]
    %v63 = vld [vmem:[#allocation2 + $0xd0] sm:$0xff]
    %v64 = vld [vmem:[#allocation2 + $0xd8] sm:$0xff]
    %v65 = vld [vmem:[#allocation2 + $0xe0] sm:$0xff]
    %v66 = vld [vmem:[#allocation2 + $0xe8] sm:$0xff]
    %v67 = vld [vmem:[#allocation2 + $0xf0] sm:$0xff]
    %v68 = vld [vmem:[#allocation2 + $0xf8] sm:$0xff]
    %v69 = vld [vmem:[#allocation2 + $0x100] sm:$0xff]
    %v70 = vld [vmem:[#allocation2 + $0x108] sm:$0xff]
    %v71 = vld [vmem:[#allocation2 + $0x110] sm:$0xff]
    %v72 = vld [vmem:[#allocation2 + $0x118] sm:$0xff]
    %v73 = vld [vmem:[#allocation2 + $0x120] sm:$0xff]
    %v74 = vld [vmem:[#allocation2 + $0x128] sm:$0xff]
    %v75 = vld [vmem:[#allocation2 + $0x130] sm:$0xff]
    %v76 = vld [vmem:[#allocation2 + $0x138] sm:$0xff]
    %v77 = vld [vmem:[#allocation2 + $0x140] sm:$0xff]
    %v78 = vld [vmem:[#allocation2 + $0x148] sm:$0xff]
    %v79 = vld [vmem:[#allocation2 + $0x150] sm:$0xff]
    %v80 = vld [vmem:[#allocation2 + $0x158] sm:$0xff]
    %v81 = vld [vmem:[#allocation2 + $0x160] sm:$0xff]
    %v82 = vld [vmem:[#allocation2 + $0x168] sm:$0xff]
    %v83 = vld [vmem:[#allocation2 + $0x170] sm:$0xff]
    %v84 = vld [vmem:[#allocation2 + $0x178] sm:$0xff]
    %v85 = vld [vmem:[#allocation2 + $0x180] sm:$0xff]
    %v86 = vld [vmem:[#allocation2 + $0x188] sm:$0xff]
    %v87 = vld [vmem:[#allocation2 + $0x190] sm:$0xff]
    %v88 = vld [vmem:[#allocation2 + $0x198] sm:$0xff]
    %v89 = vld [vmem:[#allocation2 + $0x1a0] sm:$0xff]
    %v90 = vld [vmem:[#allocation2 + $0x1a8] sm:$0xff]
    %v91 = vld [vmem:[#allocation2 + $0x1b0] sm:$0xff]
    %v92 = vld [vmem:[#allocation2 + $0x1b8] sm:$0xff]
    %v93 = vld [vmem:[#allocation2 + $0x1c0] sm:$0xff]
    %v94 = vld [vmem:[#allocation2 + $0x1c8] sm:$0xff]
    %v95 = vld [vmem:[#allocation2 + $0x1d0] sm:$0xff]
    %v96 = vld [vmem:[#allocation2 + $0x1d8] sm:$0xff]
    %v97 = vld [vmem:[#allocation2 + $0x1e0] sm:$0xff]
    %v98 = vld [vmem:[#allocation2 + $0x1e8] sm:$0xff]
    %v99 = vld [vmem:[#allocation2 + $0x1f0] sm:$0xff]
    %v100 = vld [vmem:[#allocation2 + $0x1f8] sm:$0xff]
    %v101 = vld [vmem:[%s4] sm:$0xf]
    loop: start=0, step=1, limit=64
    $region26: #{forward.3} parent=1 // loop_pre_header
      _
    $region27: #{forward.3} parent=1 // loop_header
      %s103 = sphi 0, %s107
      %p104 = scmp.ge.s32.totalorder %s103, 64
      %v108 = vphi 0.0, %v296
      %v109 = vphi 0.0, %v294
    $region28: #{forward.3} parent=1 // loop_header_branch
      %106 = sbr.rel (%p104) target = $region32
    $region29: #{forward.3} parent=1 // loop_body
      %s110 = smul.u32 %s103, 2
      %s111 = scalar_lea.vmem %s1, %s110
      %v112 = vld [vmem:[%s111] sm:$0x3]
      %vm113 = vcmp.ge.f32.partialorder %v112, 0.5
      %v114 = vsel %vm113, 1, 0
      %v115 = vcvt.s32.f32 %v114
      %s116 = scalar_lea.vmem %s0, %s110
      %v117 = vld [vmem:[%s116] sm:$0x3]
      %v118 = vmul.f32 %v117, %v115
      %120 = vset.pattern.permute.xlu0 0
      %121 = vperm.xlu0 %120, %v118
      %v122 = vpop.permute.xlu0 %121
      %v125 = vperm.slane %v36, 0
      %v126 = vperm.slane %v36, 1
      %v127 = vperm.slane %v36, 2
      %v128 = vperm.slane %v36, 3
      %v133 = vmul.f32 %v122, %v125
      %v134 = vmul.f32 %v122, %v126
      %v135 = vmul.f32 %v122, %v127
      %v136 = vmul.f32 %v122, %v128
      %137 = vmatpush.msra.mxu0 %v97
      %138 = vmatpush.msra.mxu0 %v93
      %139 = vmatpush.msra.mxu0 %v89
      %140 = vmatpush.msra.mxu0 %v85
      %141 = vmatpush.msra.mxu0 %v81
      %142 = vmatpush.msra.mxu0 %v77
      %143 = vmatpush.msra.mxu0 %v73
      %144 = vmatpush.msra.mxu0 %v69
      %145 = vmatpush.msra.mxu0 %v65
      %146 = vmatpush.msra.mxu0 %v61
      %147 = vmatpush.msra.mxu0 %v57
      %148 = vmatpush.msra.mxu0 %v53
      %149 = vmatpush.msra.mxu0 %v49
      %150 = vmatpush.msra.mxu0 %v45
      %151 = vmatpush.msra.mxu0 %v41
      %152 = vmatpush.msra.mxu0 %v37
      %153 = vmatmul.f32.gmra.mxu0 %v108
      %v154 = vpop.f32.mrf.mxu0
      %v155 = vadd.f32 0.0, %v154
      %156 = vdwg.mxu0
      %157 = vmatpush.msra.mxu0 %v98
      %158 = vmatpush.msra.mxu0 %v94
      %159 = vmatpush.msra.mxu0 %v90
      %160 = vmatpush.msra.mxu0 %v86
      %161 = vmatpush.msra.mxu0 %v82
      %162 = vmatpush.msra.mxu0 %v78
      %163 = vmatpush.msra.mxu0 %v74
      %164 = vmatpush.msra.mxu0 %v70
      %165 = vmatpush.msra.mxu0 %v66
      %166 = vmatpush.msra.mxu0 %v62
      %167 = vmatpush.msra.mxu0 %v58
      %168 = vmatpush.msra.mxu0 %v54
      %169 = vmatpush.msra.mxu0 %v50
      %170 = vmatpush.msra.mxu0 %v46
      %171 = vmatpush.msra.mxu0 %v42
      %172 = vmatpush.msra.mxu0 %v38
      %173 = vmatmul.f32.gmra.mxu0 %v108
      %v174 = vpop.f32.mrf.mxu0
      %v175 = vadd.f32 0.0, %v174
      %176 = vdwg.mxu0
      %177 = vmatpush.msra.mxu0 %v99
      %178 = vmatpush.msra.mxu0 %v95
      %179 = vmatpush.msra.mxu0 %v91
      %180 = vmatpush.msra.mxu0 %v87
      %181 = vmatpush.msra.mxu0 %v83
      %182 = vmatpush.msra.mxu0 %v79
      %183 = vmatpush.msra.mxu0 %v75
      %184 = vmatpush.msra.mxu0 %v71
      %185 = vmatpush.msra.mxu0 %v67
      %186 = vmatpush.msra.mxu0 %v63
      %187 = vmatpush.msra.mxu0 %v59
      %188 = vmatpush.msra.mxu0 %v55
      %189 = vmatpush.msra.mxu0 %v51
      %190 = vmatpush.msra.mxu0 %v47
      %191 = vmatpush.msra.mxu0 %v43
      %192 = vmatpush.msra.mxu0 %v39
      %193 = vmatmul.f32.gmra.mxu0 %v108
      %v194 = vpop.f32.mrf.mxu0
      %v195 = vadd.f32 0.0, %v194
      %196 = vdwg.mxu0
      %197 = vmatpush.msra.mxu0 %v100
      %198 = vmatpush.msra.mxu0 %v96
      %199 = vmatpush.msra.mxu0 %v92
      %200 = vmatpush.msra.mxu0 %v88
      %201 = vmatpush.msra.mxu0 %v84
      %202 = vmatpush.msra.mxu0 %v80
      %203 = vmatpush.msra.mxu0 %v76
      %204 = vmatpush.msra.mxu0 %v72
      %205 = vmatpush.msra.mxu0 %v68
      %206 = vmatpush.msra.mxu0 %v64
      %207 = vmatpush.msra.mxu0 %v60
      %208 = vmatpush.msra.mxu0 %v56
      %209 = vmatpush.msra.mxu0 %v52
      %210 = vmatpush.msra.mxu0 %v48
      %211 = vmatpush.msra.mxu0 %v44
      %212 = vmatpush.msra.mxu0 %v40
      %213 = vmatmul.f32.gmra.mxu0 %v108
      %v214 = vpop.f32.mrf.mxu0
      %v215 = vadd.f32 0.0, %v214
      %216 = vdwg.mxu0
      %v217 = vadd.f32 %v133, %v155
      %v218 = vadd.f32 %v134, %v175
      %v219 = vadd.f32 %v135, %v195
      %v220 = vadd.f32 %v136, %v215
      %v222 = vperm.slane %v101, 0
      %v223 = vperm.slane %v101, 1
      %v224 = vperm.slane %v101, 2
      %v225 = vperm.slane %v101, 3
      %v230 = vadd.f32 %v217, %v222
      %v231 = vadd.f32 %v218, %v223
      %v232 = vadd.f32 %v219, %v224
      %v233 = vadd.f32 %v220, %v225
      %v234 = vxor.u32 %v230, 2147483648
      %v235 = vmul.f32 %v234, 1.442695
      %v236 = vpow.pop %v235
      %v237 = vadd.f32 %v236, 1.0
      %v238 = vrcp.pop %v237
      %v239 = vmul.f32 %v237, %v238
      %v240 = vsub.f32 1.0, %v239
      %v241 = vmul.f32 %v238, %v240
      %v242 = vadd.f32 %v238, %v241
      %vm243 = vweird.f32 %v237
      %vm244 = vweird.f32 %v238
      %vm245 = vmor %vm243, %vm244
      %v246 = vsel %vm245, %v238, %v242
      %v247 = vand.u32 2147483647, %v237
      %vm248 = vcmp.eq.f32.partialorder %v247, 8.507059e+37
      %v249 = vand.u32 %v237, 2147483648
      %v250 = vor.u32 1.1754944e-38, %v249
      %v251 = vsel %vm248, %v250, %v246
      %v252 = vmul.f32 1.0, %v251
      %v253 = vxor.u32 %v231, 2147483648
      %v254 = vmul.f32 %v253, 1.442695
      %v255 = vpow.pop %v254
      %v256 = vadd.f32 %v255, 1.0
      %v257 = vrcp.pop %v256
      %v258 = vmul.f32 %v256, %v257
      %v259 = vsub.f32 1.0, %v258
      %v260 = vmul.f32 %v257, %v259
      %v261 = vadd.f32 %v257, %v260
      %vm262 = vweird.f32 %v256
      %vm263 = vweird.f32 %v257
      %vm264 = vmor %vm262, %vm263
      %v265 = vsel %vm264, %v257, %v261
      %v266 = vand.u32 2147483647, %v256
      %vm267 = vcmp.eq.f32.partialorder %v266, 8.507059e+37
      %v268 = vand.u32 %v256, 2147483648
      %v269 = vor.u32 1.1754944e-38, %v268
      %v270 = vsel %vm267, %v269, %v265
      %v271 = vmul.f32 1.0, %v270
      %v272 = vtanh.pop %v232
      %v273 = vxor.u32 %v233, 2147483648
      %v274 = vmul.f32 %v273, 1.442695
      %v275 = vpow.pop %v274
      %v276 = vadd.f32 %v275, 1.0
      %v277 = vrcp.pop %v276
      %v278 = vmul.f32 %v276, %v277
      %v279 = vsub.f32 1.0, %v278
      %v280 = vmul.f32 %v277, %v279
      %v281 = vadd.f32 %v277, %v280
      %vm282 = vweird.f32 %v276
      %vm283 = vweird.f32 %v277
      %vm284 = vmor %vm282, %vm283
      %v285 = vsel %vm284, %v277, %v281
      %v286 = vand.u32 2147483647, %v276
      %vm287 = vcmp.eq.f32.partialorder %v286, 8.507059e+37
      %v288 = vand.u32 %v276, 2147483648
      %v289 = vor.u32 1.1754944e-38, %v288
      %v290 = vsel %vm287, %v289, %v285
      %v291 = vmul.f32 1.0, %v290
      %v292 = vmul.f32 %v271, %v109
      %v293 = vmul.f32 %v252, %v272
      %v294 = vadd.f32 %v292, %v293
      %v295 = vtanh.pop %v294
      %v296 = vmul.f32 %v291, %v295
    $region30: #{forward.3} parent=1 // loop_footer
      %s107 = sadd.s32 1, %s103
    $region31: #{forward.3} parent=1 // loop_footer_branch
      %102 = sbr.rel target = $region27
    $region32: #{forward.3} parent=1 // loop_exit
      _
    %297 = vst [vmem:[%s5] sm:$0x3] %v108
    // Predicated region
    $region33: #{forward.3} parent=1 // pred_check
      _
    $region34: #{forward.3} parent=1 // pred_check_branch
      %299 = sbr.rel (0) target = $region36
    $region35: #{forward.3} parent=1 // pred_region
      _
    $region36: #{forward.3} parent=1 // pred_fallthru
      _
    // Predicated region
    $region37: #{forward.3} parent=1 // pred_check
      _
    $region38: #{forward.3} parent=1 // pred_check_branch
      %301 = sbr.rel (0) target = $region40
    $region39: #{forward.3} parent=1 // pred_region
      _
    $region40: #{forward.3} parent=1 // pred_fallthru
      _
    %302 = vsyncpa [#allocation3], 1

// kernel: forward.5
$region0: #{forward.5}
  #allocation0 [shape = 'u32[]', space=smem, size = 0x4, offset = 0x4, fixed_abs, tag = 'smem constant byte address 0x4 - core index']
  #allocation1 [shape = 'u32[72,128]{1,0:T(1,128)}', space=vmem, size = 0x9000, scoped, tag = 'internal scratch']
  %s0 = inlined_call_operand.vmem [shape: f32[2,128], index: 0, kind: input, shape index: {}]
  %s1 = inlined_call_operand.vmem [shape: f32[2,1,128], index: 1, kind: input, shape index: {}]
  %s2 = inlined_call_operand.vmem [shape: f32[256,5], index: 2, kind: input, shape index: {}]
  %s3 = inlined_call_operand.vmem [shape: f32[1,5], index: 3, kind: input, shape index: {}]
  %s4 = inlined_call_operand.hbm [shape: f32[2,5], index: 4, kind: output, shape index: {}]
  %s5 = sld [smem:[#allocation0]]
  $region26: #{forward.5} parent=0
    _
  %s7 = ssub.s32 1, %s5
  %s8 = scalar_select 0, %s7, %s5
  $region1: #{forward.5} parent=0
    #allocation2 [shape = 'u8[1024]{0}', space=vmem, size = 0x400, scoped, tag = 'output window, operand 0, single buffered']
    #allocation3 [shape = 's32[1]{0}', space=sflag, size = 0x4, scoped, tag = 'scoped memory for forward.5']
    %9 = vsyncpa [#allocation3], 0
    // Predicated region
    $region2: #{forward.5} parent=1 // pred_check
      _
    $region3: #{forward.5} parent=1 // pred_check_branch
      %11 = sbr.rel (0) target = $region5
    $region4: #{forward.5} parent=1 // pred_region
      _
    $region5: #{forward.5} parent=1 // pred_fallthru
      _
    // Predicated region
    $region6: #{forward.5} parent=1 // pred_check
      _
    $region7: #{forward.5} parent=1 // pred_check_branch
      %13 = sbr.rel (0) target = $region9
    $region8: #{forward.5} parent=1 // pred_region
      _
    $region9: #{forward.5} parent=1 // pred_fallthru
      _
    // Predicated region
    $region10: #{forward.5} parent=1 // pred_check
      _
    $region11: #{forward.5} parent=1 // pred_check_branch
      %15 = sbr.rel (0) target = $region13
    $region12: #{forward.5} parent=1 // pred_region
      _
    $region13: #{forward.5} parent=1 // pred_fallthru
      _
    // Predicated region
    $region14: #{forward.5} parent=1 // pred_check
      _
    $region15: #{forward.5} parent=1 // pred_check_branch
      %17 = sbr.rel (0) target = $region17
    $region16: #{forward.5} parent=1 // pred_region
      _
    $region17: #{forward.5} parent=1 // pred_fallthru
      _
    %v18 = vld [vmem:[%s0] sm:$0x3]
    %v19 = vld [vmem:[%s1] sm:$0x1]
    %v20 = vld [vmem:[%s1 + $0x1] sm:$0x1]
    %v21 = vld [vmem:[%s2] sm:$0xff]
    %v22 = vld [vmem:[%s2 + $0x8] sm:$0xff]
    %v23 = vld [vmem:[%s2 + $0x10] sm:$0xff]
    %v24 = vld [vmem:[%s2 + $0x18] sm:$0xff]
    %v25 = vld [vmem:[%s2 + $0x20] sm:$0xff]
    %v26 = vld [vmem:[%s2 + $0x28] sm:$0xff]
    %v27 = vld [vmem:[%s2 + $0x30] sm:$0xff]
    %v28 = vld [vmem:[%s2 + $0x38] sm:$0xff]
    %v29 = vld [vmem:[%s2 + $0x40] sm:$0xff]
    %v30 = vld [vmem:[%s2 + $0x48] sm:$0xff]
    %v31 = vld [vmem:[%s2 + $0x50] sm:$0xff]
    %v32 = vld [vmem:[%s2 + $0x58] sm:$0xff]
    %v33 = vld [vmem:[%s2 + $0x60] sm:$0xff]
    %v34 = vld [vmem:[%s2 + $0x68] sm:$0xff]
    %v35 = vld [vmem:[%s2 + $0x70] sm:$0xff]
    %v36 = vld [vmem:[%s2 + $0x78] sm:$0xff]
    %v37 = vld [vmem:[%s2 + $0x80] sm:$0xff]
    %v38 = vld [vmem:[%s2 + $0x88] sm:$0xff]
    %v39 = vld [vmem:[%s2 + $0x90] sm:$0xff]
    %v40 = vld [vmem:[%s2 + $0x98] sm:$0xff]
    %v41 = vld [vmem:[%s2 + $0xa0] sm:$0xff]
    %v42 = vld [vmem:[%s2 + $0xa8] sm:$0xff]
    %v43 = vld [vmem:[%s2 + $0xb0] sm:$0xff]
    %v44 = vld [vmem:[%s2 + $0xb8] sm:$0xff]
    %v45 = vld [vmem:[%s2 + $0xc0] sm:$0xff]
    %v46 = vld [vmem:[%s2 + $0xc8] sm:$0xff]
    %v47 = vld [vmem:[%s2 + $0xd0] sm:$0xff]
    %v48 = vld [vmem:[%s2 + $0xd8] sm:$0xff]
    %v49 = vld [vmem:[%s2 + $0xe0] sm:$0xff]
    %v50 = vld [vmem:[%s2 + $0xe8] sm:$0xff]
    %v51 = vld [vmem:[%s2 + $0xf0] sm:$0xff]
    %v52 = vld [vmem:[%s2 + $0xf8] sm:$0xff]
    %55 = vst [vmem:[#allocation1] ss:$9 sm:$0xff] %v19
    %s56 = scalar_lea.vmem [#allocation1], 1
    %57 = vst [vmem:[%s56] ss:$9 sm:$0xff] %v20
    %v58 = vld [vmem:[#allocation1] sm:$0xff]
    %60 = vmatpush.msra.mxu0 %v52
    %61 = vmatpush.msra.mxu0 %v51
    %62 = vmatpush.msra.mxu0 %v50
    %63 = vmatpush.msra.mxu0 %v49
    %64 = vmatpush.msra.mxu0 %v48
    %65 = vmatpush.msra.mxu0 %v47
    %66 = vmatpush.msra.mxu0 %v46
    %67 = vmatpush.msra.mxu0 %v45
    %68 = vmatpush.msra.mxu0 %v44
    %69 = vmatpush.msra.mxu0 %v43
    %70 = vmatpush.msra.mxu0 %v42
    %71 = vmatpush.msra.mxu0 %v41
    %72 = vmatpush.msra.mxu0 %v40
    %73 = vmatpush.msra.mxu0 %v39
    %74 = vmatpush.msra.mxu0 %v38
    %75 = vmatpush.msra.mxu0 %v37
    %76 = vmatmul.f32.gmra.mxu0 %v58
    %v77 = vpop.f32.mrf.mxu0
    %v78 = vadd.f32 0.0, %v77
    %79 = vdwg.mxu0
    %80 = vmatpush.msra.mxu0 %v36
    %81 = vmatpush.msra.mxu0 %v35
    %82 = vmatpush.msra.mxu0 %v34
    %83 = vmatpush.msra.mxu0 %v33
    %84 = vmatpush.msra.mxu0 %v32
    %85 = vmatpush.msra.mxu0 %v31
    %86 = vmatpush.msra.mxu0 %v30
    %87 = vmatpush.msra.mxu0 %v29
    %88 = vmatpush.msra.mxu0 %v28
    %89 = vmatpush.msra.mxu0 %v27
    %90 = vmatpush.msra.mxu0 %v26
    %91 = vmatpush.msra.mxu0 %v25
    %92 = vmatpush.msra.mxu0 %v24
    %93 = vmatpush.msra.mxu0 %v23
    %94 = vmatpush.msra.mxu0 %v22
    %95 = vmatpush.msra.mxu0 %v21
    %96 = vmatmul.f32.gmra.mxu0 %v18
    %v97 = vpop.f32.mrf.mxu0
    %v98 = vadd.f32 %v78, %v97
    %99 = vdwg.mxu0
    %v100 = vld [vmem:[%s3] sm:$0x1]
    %v102 = vperm.slane %v100, 0
    %v104 = vadd.f32 %v98, %v102
    %vm105 = vcmask 33792
    %106 = vst.msk [vmem:[#allocation2] sm:$0x3] %vm105, %v104
    // Predicated region
    $region18: #{forward.5} parent=1 // pred_check
      _
    $region19: #{forward.5} parent=1 // pred_check_branch
      %108 = sbr.rel (0) target = $region21
    $region20: #{forward.5} parent=1 // pred_region
      %110 = vsyncadd [#allocation3], 0
      %s112 = sshll.u32 [#allocation2], 4
      %s113 = int_to_ptr.vmem [resolvable:$true] %s112
      %s114 = sshll.u32 %s4, 4
      %s115 = int_to_ptr.hbm [resolvable:$true] %s114
      %117 = dma.vmem_to_hbm [thread:$0]  %s113, 32, %s115, [#allocation3]
    $region21: #{forward.5} parent=1 // pred_fallthru
      _
    // Predicated region
    $region22: #{forward.5} parent=1 // pred_check
      _
    $region23: #{forward.5} parent=1 // pred_check_branch
      %119 = sbr.rel (0) target = $region25
    $region24: #{forward.5} parent=1 // pred_region
      %121 = dma.done [#allocation3], 32
    $region25: #{forward.5} parent=1 // pred_fallthru
      _
    %122 = vsyncpa [#allocation3], 1

// kernel: forward.4
$region0: #{forward.4}
  #allocation0 [shape = 'u32[]', space=smem, size = 0x4, offset = 0x4, fixed_abs, tag = 'smem constant byte address 0x4 - core index']
  #allocation1 [shape = 'u32[72,128]{1,0:T(1,128)}', space=vmem, size = 0x9000, scoped, tag = 'internal scratch']
  #allocation2 [shape = 'f32[68,128]{1,0:T(8,128)}', space=vmem, size = 0x9000, scoped, tag = 'scratch operand']
  #allocation3 [shape = 'f32[66,256]{1,0:T(8,128)}', space=vmem, size = 0x12000, scoped, tag = 'scratch operand']
  %s0 = inlined_call_operand.vmem [shape: f32[2,71,1], index: 0, kind: input, shape index: {}]
  %s1 = inlined_call_operand.vmem [shape: f32[2,71,1], index: 1, kind: input, shape index: {}]
  %s2 = inlined_call_operand.vmem [shape: f32[8,128], index: 2, kind: input, shape index: {}]
  %s3 = inlined_call_operand.vmem [shape: f32[1,128], index: 3, kind: input, shape index: {}]
  %s4 = inlined_call_operand.vmem [shape: f32[1,128], index: 4, kind: input, shape index: {}]
  %s5 = inlined_call_operand.vmem [shape: bf16[5,128,256], index: 5, kind: input, shape index: {}]
  %s6 = inlined_call_operand.vmem [shape: f32[1,256], index: 6, kind: input, shape index: {}]
  %s7 = inlined_call_operand.vmem [shape: f32[1,256], index: 7, kind: input, shape index: {}]
  %s8 = inlined_call_operand.vmem [shape: bf16[3,256,128], index: 8, kind: input, shape index: {}]
  %s9 = inlined_call_operand.vmem [shape: f32[1,128], index: 9, kind: input, shape index: {}]
  %s10 = inlined_call_operand.vmem [shape: f32[1,128], index: 10, kind: input, shape index: {}]
  %s11 = inlined_call_operand.vmem [shape: f32[2,1,128], index: 11, kind: output, shape index: {}]
  %s12 = sld [smem:[#allocation0]]
  $region77: #{forward.4} parent=0
    _
  %s14 = ssub.s32 1, %s12
  %s15 = scalar_select 0, %s14, %s12
  loop: start=0, step=1, limit=4
  $region2: #{forward.4} parent=0 // loop_pre_header
    _
  $region3: #{forward.4} parent=0 // loop_header
    %s17 = sphi 0, %s21
    %p18 = scmp.ge.s32.totalorder %s17, 4
    %s27 = sphi 0, %s29
    %s30 = sphi 0, %s27
    %s31 = sphi 0, %s30
    %s47 = sphi 0, %s31
    %s53 = sphi 0, %s55
    %s56 = sphi 0, %s53
    %s57 = sphi 0, %s56
    %s73 = sphi 0, %s57
    %s77 = sphi 0, %s77
    %s79 = sphi 0, %s77
    %s80 = sphi 0, %s79
    %s94 = sphi 0, %s80
    %s98 = sphi 0, %s98
    %s100 = sphi 0, %s98
    %s101 = sphi 0, %s100
    %s115 = sphi 0, %s101
    %s119 = sphi 0, %s119
    %s121 = sphi 0, %s119
    %s122 = sphi 0, %s121
    %s136 = sphi 0, %s122
    %s140 = sphi 0, %s140
    %s142 = sphi 0, %s140
    %s143 = sphi 0, %s142
    %s157 = sphi 0, %s143
    %s161 = sphi 0, %s161
    %s163 = sphi 0, %s161
    %s164 = sphi 0, %s163
    %s178 = sphi 0, %s164
    %s182 = sphi 0, %s182
    %s184 = sphi 0, %s182
    %s185 = sphi 0, %s184
    %s199 = sphi 0, %s185
    %s203 = sphi 0, %s203
    %s205 = sphi 0, %s203
    %s206 = sphi 0, %s205
    %s220 = sphi 0, %s206
    %s224 = sphi 0, %s224
    %s226 = sphi 0, %s224
    %s227 = sphi 0, %s226
    %s241 = sphi 0, %s227
    %s245 = sphi 0, %s245
    %s247 = sphi 0, %s245
    %s248 = sphi 0, %s247
    %s262 = sphi 0, %s248
    %s268 = sphi 0, %s270
    %s271 = sphi 0, %s268
    %s272 = sphi 0, %s271
    %s288 = sphi 0, %s272
  $region4: #{forward.4} parent=0 // loop_header_branch
    %20 = sbr.rel (%p18) target = $region8
  $region5: #{forward.4} parent=0 // loop_body
    %s22 = ssub.s32 %s17, 1
    %s23 = ssub.s32 %s17, 2
    %s24 = sadd.s32 %s17, 1
    %s25 = ssub.s32 %s17, %s24
    %p26 = scmp.eq.s32.totalorder %s25, 0
    %s28 = sadd.s32 %s27, 1
    %s29 = scalar_select %p26, %s27, %s28
    %p32 = pneg %p26
    %p33 = scmp.eq.s32.totalorder %s17, 1
    %p34 = por %p32, %p33
    %p35 = scmp.ne.s32.totalorder %s27, %s30
    %p36 = scmp.eq.s32.totalorder %s17, 0
    %p37 = por %p35, %p36
    %p38 = scmp.ne.s32.totalorder %s27, %s30
    %p39 = scmp.eq.s32.totalorder %s22, 1
    %p40 = por %p38, %p39
    %p41 = scmp.ne.s32.totalorder %s30, %s31
    %p42 = scmp.eq.s32.totalorder %s22, 0
    %p43 = por %p41, %p42
    %p44 = scmp.ne.s32.totalorder %s30, %s31
    %p45 = scmp.eq.s32.totalorder %s23, 1
    %p46 = por %p44, %p45
    %p48 = scmp.ne.s32.totalorder %s31, %s47
    %p49 = scmp.eq.s32.totalorder %s23, 0
    %p50 = por %p48, %p49
    %s51 = ssub.s32 %s17, %s24
    %p52 = scmp.eq.s32.totalorder %s51, 0
    %s54 = sadd.s32 %s53, 1
    %s55 = scalar_select %p52, %s53, %s54
    %p58 = pneg %p52
    %p59 = scmp.eq.s32.totalorder %s17, 1
    %p60 = por %p58, %p59
    %p61 = scmp.ne.s32.totalorder %s53, %s56
    %p62 = scmp.eq.s32.totalorder %s17, 0
    %p63 = por %p61, %p62
    %p64 = scmp.ne.s32.totalorder %s53, %s56
    %p65 = scmp.eq.s32.totalorder %s22, 1
    %p66 = por %p64, %p65
    %p67 = scmp.ne.s32.totalorder %s56, %s57
    %p68 = scmp.eq.s32.totalorder %s22, 0
    %p69 = por %p67, %p68
    %p70 = scmp.ne.s32.totalorder %s56, %s57
    %p71 = scmp.eq.s32.totalorder %s23, 1
    %p72 = por %p70, %p71
    %p74 = scmp.ne.s32.totalorder %s57, %s73
    %p75 = scmp.eq.s32.totalorder %s23, 0
    %p76 = por %p74, %p75
    %s78 = sadd.s32 %s77, 1
    %p81 = scmp.eq.s32.totalorder %s17, 1
    %p82 = scmp.ne.s32.totalorder %s77, %s79
    %p83 = scmp.eq.s32.totalorder %s17, 0
    %p84 = por %p82, %p83
    %p85 = scmp.ne.s32.totalorder %s77, %s79
    %p86 = scmp.eq.s32.totalorder %s22, 1
    %p87 = por %p85, %p86
    %p88 = scmp.ne.s32.totalorder %s79, %s80
    %p89 = scmp.eq.s32.totalorder %s22, 0
    %p90 = por %p88, %p89
    %p91 = scmp.ne.s32.totalorder %s79, %s80
    %p92 = scmp.eq.s32.totalorder %s23, 1
    %p93 = por %p91, %p92
    %p95 = scmp.ne.s32.totalorder %s80, %s94
    %p96 = scmp.eq.s32.totalorder %s23, 0
    %p97 = por %p95, %p96
    %s99 = sadd.s32 %s98, 1
    %p102 = scmp.eq.s32.totalorder %s17, 1
    %p103 = scmp.ne.s32.totalorder %s98, %s100
    %p104 = scmp.eq.s32.totalorder %s17, 0
    %p105 = por %p103, %p104
    %p106 = scmp.ne.s32.totalorder %s98, %s100
    %p107 = scmp.eq.s32.totalorder %s22, 1
    %p108 = por %p106, %p107
    %p109 = scmp.ne.s32.totalorder %s100, %s101
    %p110 = scmp.eq.s32.totalorder %s22, 0
    %p111 = por %p109, %p110
    %p112 = scmp.ne.s32.totalorder %s100, %s101
    %p113 = scmp.eq.s32.totalorder %s23, 1
    %p114 = por %p112, %p113
    %p116 = scmp.ne.s32.totalorder %s101, %s115
    %p117 = scmp.eq.s32.totalorder %s23, 0
    %p118 = por %p116, %p117
    %s120 = sadd.s32 %s119, 1
    %p123 = scmp.eq.s32.totalorder %s17, 1
    %p124 = scmp.ne.s32.totalorder %s119, %s121
    %p125 = scmp.eq.s32.totalorder %s17, 0
    %p126 = por %p124, %p125
    %p127 = scmp.ne.s32.totalorder %s119, %s121
    %p128 = scmp.eq.s32.totalorder %s22, 1
    %p129 = por %p127, %p128
    %p130 = scmp.ne.s32.totalorder %s121, %s122
    %p131 = scmp.eq.s32.totalorder %s22, 0
    %p132 = por %p130, %p131
    %p133 = scmp.ne.s32.totalorder %s121, %s122
    %p134 = scmp.eq.s32.totalorder %s23, 1
    %p135 = por %p133, %p134
    %p137 = scmp.ne.s32.totalorder %s122, %s136
    %p138 = scmp.eq.s32.totalorder %s23, 0
    %p139 = por %p137, %p138
    %s141 = sadd.s32 %s140, 1
    %p144 = scmp.eq.s32.totalorder %s17, 1
    %p145 = scmp.ne.s32.totalorder %s140, %s142
    %p146 = scmp.eq.s32.totalorder %s17, 0
    %p147 = por %p145, %p146
    %p148 = scmp.ne.s32.totalorder %s140, %s142
    %p149 = scmp.eq.s32.totalorder %s22, 1
    %p150 = por %p148, %p149
    %p151 = scmp.ne.s32.totalorder %s142, %s143
    %p152 = scmp.eq.s32.totalorder %s22, 0
    %p153 = por %p151, %p152
    %p154 = scmp.ne.s32.totalorder %s142, %s143
    %p155 = scmp.eq.s32.totalorder %s23, 1
    %p156 = por %p154, %p155
    %p158 = scmp.ne.s32.totalorder %s143, %s157
    %p159 = scmp.eq.s32.totalorder %s23, 0
    %p160 = por %p158, %p159
    %s162 = sadd.s32 %s161, 1
    %p165 = scmp.eq.s32.totalorder %s17, 1
    %p166 = scmp.ne.s32.totalorder %s161, %s163
    %p167 = scmp.eq.s32.totalorder %s17, 0
    %p168 = por %p166, %p167
    %p169 = scmp.ne.s32.totalorder %s161, %s163
    %p170 = scmp.eq.s32.totalorder %s22, 1
    %p171 = por %p169, %p170
    %p172 = scmp.ne.s32.totalorder %s163, %s164
    %p173 = scmp.eq.s32.totalorder %s22, 0
    %p174 = por %p172, %p173
    %p175 = scmp.ne.s32.totalorder %s163, %s164
    %p176 = scmp.eq.s32.totalorder %s23, 1
    %p177 = por %p175, %p176
    %p179 = scmp.ne.s32.totalorder %s164, %s178
    %p180 = scmp.eq.s32.totalorder %s23, 0
    %p181 = por %p179, %p180
    %s183 = sadd.s32 %s182, 1
    %p186 = scmp.eq.s32.totalorder %s17, 1
    %p187 = scmp.ne.s32.totalorder %s182, %s184
    %p188 = scmp.eq.s32.totalorder %s17, 0
    %p189 = por %p187, %p188
    %p190 = scmp.ne.s32.totalorder %s182, %s184
    %p191 = scmp.eq.s32.totalorder %s22, 1
    %p192 = por %p190, %p191
    %p193 = scmp.ne.s32.totalorder %s184, %s185
    %p194 = scmp.eq.s32.totalorder %s22, 0
    %p195 = por %p193, %p194
    %p196 = scmp.ne.s32.totalorder %s184, %s185
    %p197 = scmp.eq.s32.totalorder %s23, 1
    %p198 = por %p196, %p197
    %p200 = scmp.ne.s32.totalorder %s185, %s199
    %p201 = scmp.eq.s32.totalorder %s23, 0
    %p202 = por %p200, %p201
    %s204 = sadd.s32 %s203, 1
    %p207 = scmp.eq.s32.totalorder %s17, 1
    %p208 = scmp.ne.s32.totalorder %s203, %s205
    %p209 = scmp.eq.s32.totalorder %s17, 0
    %p210 = por %p208, %p209
    %p211 = scmp.ne.s32.totalorder %s203, %s205
    %p212 = scmp.eq.s32.totalorder %s22, 1
    %p213 = por %p211, %p212
    %p214 = scmp.ne.s32.totalorder %s205, %s206
    %p215 = scmp.eq.s32.totalorder %s22, 0
    %p216 = por %p214, %p215
    %p217 = scmp.ne.s32.totalorder %s205, %s206
    %p218 = scmp.eq.s32.totalorder %s23, 1
    %p219 = por %p217, %p218
    %p221 = scmp.ne.s32.totalorder %s206, %s220
    %p222 = scmp.eq.s32.totalorder %s23, 0
    %p223 = por %p221, %p222
    %s225 = sadd.s32 %s224, 1
    %p228 = scmp.eq.s32.totalorder %s17, 1
    %p229 = scmp.ne.s32.totalorder %s224, %s226
    %p230 = scmp.eq.s32.totalorder %s17, 0
    %p231 = por %p229, %p230
    %p232 = scmp.ne.s32.totalorder %s224, %s226
    %p233 = scmp.eq.s32.totalorder %s22, 1
    %p234 = por %p232, %p233
    %p235 = scmp.ne.s32.totalorder %s226, %s227
    %p236 = scmp.eq.s32.totalorder %s22, 0
    %p237 = por %p235, %p236
    %p238 = scmp.ne.s32.totalorder %s226, %s227
    %p239 = scmp.eq.s32.totalorder %s23, 1
    %p240 = por %p238, %p239
    %p242 = scmp.ne.s32.totalorder %s227, %s241
    %p243 = scmp.eq.s32.totalorder %s23, 0
    %p244 = por %p242, %p243
    %s246 = sadd.s32 %s245, 1
    %p249 = scmp.eq.s32.totalorder %s17, 1
    %p250 = scmp.ne.s32.totalorder %s245, %s247
    %p251 = scmp.eq.s32.totalorder %s17, 0
    %p252 = por %p250, %p251
    %p253 = scmp.ne.s32.totalorder %s245, %s247
    %p254 = scmp.eq.s32.totalorder %s22, 1
    %p255 = por %p253, %p254
    %p256 = scmp.ne.s32.totalorder %s247, %s248
    %p257 = scmp.eq.s32.totalorder %s22, 0
    %p258 = por %p256, %p257
    %p259 = scmp.ne.s32.totalorder %s247, %s248
    %p260 = scmp.eq.s32.totalorder %s23, 1
    %p261 = por %p259, %p260
    %p263 = scmp.ne.s32.totalorder %s248, %s262
    %p264 = scmp.eq.s32.totalorder %s23, 0
    %p265 = por %p263, %p264
    %s266 = ssub.s32 %s17, %s24
    %p267 = scmp.eq.s32.totalorder %s266, 0
    %s269 = sadd.s32 %s268, 1
    %s270 = scalar_select %p267, %s268, %s269
    %p273 = pneg %p267
    %p274 = scmp.eq.s32.totalorder %s17, 1
    %p275 = por %p273, %p274
    %p276 = scmp.ne.s32.totalorder %s268, %s271
    %p277 = scmp.eq.s32.totalorder %s17, 0
    %p278 = por %p276, %p277
    %p279 = scmp.ne.s32.totalorder %s268, %s271
    %p280 = scmp.eq.s32.totalorder %s22, 1
    %p281 = por %p279, %p280
    %p282 = scmp.ne.s32.totalorder %s271, %s272
    %p283 = scmp.eq.s32.totalorder %s22, 0
    %p284 = por %p282, %p283
    %p285 = scmp.ne.s32.totalorder %s271, %s272
    %p286 = scmp.eq.s32.totalorder %s23, 1
    %p287 = por %p285, %p286
    %p289 = scmp.ne.s32.totalorder %s272, %s288
    %p290 = scmp.eq.s32.totalorder %s23, 0
    %p291 = por %p289, %p290
    %p292 = scmp.le.s32.totalorder 1, %s17
    %p293 = scmp.lt.s32.totalorder %s17, 3
    %p294 = pnand %p292, %p293
    %p295 = pneg %p294
    // Predicated region
    $region9: #{forward.4} parent=5 // pred_check
      _
    $region10: #{forward.4} parent=5 // pred_check_branch
      %297 = sbr.rel (%p294) target = $region12
    $region11: #{forward.4} parent=5 // pred_region
      %s298 = ssub.s32 %s17, 1
      // Predicated region
      $region13: #{forward.4} parent=11 // pred_check
        %p299 = pneg %p90
      $region14: #{forward.4} parent=11 // pred_check_branch
        %301 = sbr.rel (%p299) target = $region16
      $region15: #{forward.4} parent=11 // pred_region
        _
      $region16: #{forward.4} parent=11 // pred_fallthru
        _
      // Predicated region
      $region17: #{forward.4} parent=11 // pred_check
        %p302 = pneg %p111
      $region18: #{forward.4} parent=11 // pred_check_branch
        %304 = sbr.rel (%p302) target = $region20
      $region19: #{forward.4} parent=11 // pred_region
        _
      $region20: #{forward.4} parent=11 // pred_fallthru
        _
      // Predicated region
      $region21: #{forward.4} parent=11 // pred_check
        %p305 = pneg %p132
      $region22: #{forward.4} parent=11 // pred_check_branch
        %307 = sbr.rel (%p305) target = $region24
      $region23: #{forward.4} parent=11 // pred_region
        _
      $region24: #{forward.4} parent=11 // pred_fallthru
        _
      // Predicated region
      $region25: #{forward.4} parent=11 // pred_check
        %p308 = pneg %p153
      $region26: #{forward.4} parent=11 // pred_check_branch
        %310 = sbr.rel (%p308) target = $region28
      $region27: #{forward.4} parent=11 // pred_region
        _
      $region28: #{forward.4} parent=11 // pred_fallthru
        _
      // Predicated region
      $region29: #{forward.4} parent=11 // pred_check
        %p311 = pneg %p174
      $region30: #{forward.4} parent=11 // pred_check_branch
        %313 = sbr.rel (%p311) target = $region32
      $region31: #{forward.4} parent=11 // pred_region
        _
      $region32: #{forward.4} parent=11 // pred_fallthru
        _
      // Predicated region
      $region33: #{forward.4} parent=11 // pred_check
        %p314 = pneg %p195
      $region34: #{forward.4} parent=11 // pred_check_branch
        %316 = sbr.rel (%p314) target = $region36
      $region35: #{forward.4} parent=11 // pred_region
        _
      $region36: #{forward.4} parent=11 // pred_fallthru
        _
      // Predicated region
      $region37: #{forward.4} parent=11 // pred_check
        %p317 = pneg %p216
      $region38: #{forward.4} parent=11 // pred_check_branch
        %319 = sbr.rel (%p317) target = $region40
      $region39: #{forward.4} parent=11 // pred_region
        _
      $region40: #{forward.4} parent=11 // pred_fallthru
        _
      // Predicated region
      $region41: #{forward.4} parent=11 // pred_check
        %p320 = pneg %p237
      $region42: #{forward.4} parent=11 // pred_check_branch
        %322 = sbr.rel (%p320) target = $region44
      $region43: #{forward.4} parent=11 // pred_region
        _
      $region44: #{forward.4} parent=11 // pred_fallthru
        _
      // Predicated region
      $region45: #{forward.4} parent=11 // pred_check
        %p323 = pneg %p258
      $region46: #{forward.4} parent=11 // pred_check_branch
        %325 = sbr.rel (%p323) target = $region48
      $region47: #{forward.4} parent=11 // pred_region
        _
      $region48: #{forward.4} parent=11 // pred_fallthru
        _
    $region12: #{forward.4} parent=5 // pred_fallthru
      _
    %p326 = scmp.lt.s32.totalorder %s17, 2
    // Predicated region
    $region49: #{forward.4} parent=5 // pred_check
      %p327 = pneg %p326
    $region50: #{forward.4} parent=5 // pred_check_branch
      %329 = sbr.rel (%p327) target = $region52
    $region51: #{forward.4} parent=5 // pred_region
      // Predicated region
      $region53: #{forward.4} parent=51 // pred_check
        %p330 = pneg %p37
      $region54: #{forward.4} parent=51 // pred_check_branch
        %332 = sbr.rel (%p330) target = $region56
      $region55: #{forward.4} parent=51 // pred_region
        %p333 = scmp.lt.s32.totalorder %s17, 1
        %s334 = scalar_select %p333, %s17, 1
        %s335 = smul.addr %s334, 9
        %s336 = smul.addr %s335, 8
        %s337 = scalar_lea.vmem %s0, %s336
      $region56: #{forward.4} parent=51 // pred_fallthru
        _
      // Predicated region
      $region57: #{forward.4} parent=51 // pred_check
        %p338 = pneg %p63
      $region58: #{forward.4} parent=51 // pred_check_branch
        %340 = sbr.rel (%p338) target = $region60
      $region59: #{forward.4} parent=51 // pred_region
        %p341 = scmp.lt.s32.totalorder %s17, 1
        %s342 = scalar_select %p341, %s17, 1
        %s343 = smul.addr %s342, 9
        %s344 = smul.addr %s343, 8
        %s345 = scalar_lea.vmem %s1, %s344
      $region60: #{forward.4} parent=51 // pred_fallthru
        _
    $region52: #{forward.4} parent=5 // pred_fallthru
      _
    %p346 = scmp.le.s32.totalorder 1, %s17
    %p347 = scmp.lt.s32.totalorder %s17, 3
    %p348 = pnand %p346, %p347
    %p349 = pneg %p348
    // Predicated region
    $region61: #{forward.4} parent=5 // pred_check
      _
    $region62: #{forward.4} parent=5 // pred_check_branch
      %351 = sbr.rel (%p348) target = $region64
    $region63: #{forward.4} parent=5 // pred_region
      %s352 = ssub.s32 %s17, 1
      %p353 = scmp.lt.s32.totalorder %s22, 1
      %s354 = scalar_select %p353, %s22, 1
      %s355 = smul.addr %s354, 9
      %s356 = smul.addr %s355, 8
      %s357 = scalar_lea.vmem %s0, %s356
      %p358 = pneg %p43
      %p359 = pneg %p40
      %p360 = scmp.lt.s32.totalorder %s22, 1
      %s361 = scalar_select %p360, %s22, 1
      %s362 = smul.addr %s361, 9
      %s363 = smul.addr %s362, 8
      %s364 = scalar_lea.vmem %s1, %s363
      %p365 = pneg %p69
      %p366 = pneg %p66
      %p367 = pneg %p90
      %p368 = pneg %p87
      %p369 = pneg %p111
      %p370 = pneg %p108
      %p371 = pneg %p132
      %p372 = pneg %p129
      %p373 = pneg %p153
      %p374 = pneg %p150
      %p375 = pneg %p174
      %p376 = pneg %p171
      %p377 = pneg %p195
      %p378 = pneg %p192
      %p379 = pneg %p216
      %p380 = pneg %p213
      %p381 = pneg %p237
      %p382 = pneg %p234
      %p383 = pneg %p258
      %p384 = pneg %p255
      %p385 = pneg %p284
      %p386 = pneg %p281
      %p387 = scmp.lt.s32.totalorder %s22, 1
      %s388 = scalar_select %p387, %s22, 1
      %s389 = scalar_lea.vmem %s11, %s388
      %p390 = scmp.lt.s32.totalorder %s22, 1
      %s391 = scalar_select %p390, %s22, 1
      %s392 = smul.addr %s391, 9
      %s393 = smul.addr %s392, 8
      %s394 = scalar_lea.vmem %s0, %s393
      %p395 = scmp.lt.s32.totalorder %s22, 1
      %s396 = scalar_select %p395, %s22, 1
      %s397 = smul.addr %s396, 9
      %s398 = smul.addr %s397, 8
      %s399 = scalar_lea.vmem %s1, %s398
      %p400 = scmp.lt.s32.totalorder %s22, 1
      %s401 = scalar_select %p400, %s22, 1
      %s402 = scalar_lea.vmem %s11, %s401
      %v403 = vld [vmem:[%s399] sm:$0xff]
      %v404 = vld [vmem:[%s399 + $0x8] sm:$0xff]
      %v405 = vld [vmem:[%s399 + $0x10] sm:$0xff]
      %v406 = vld [vmem:[%s399 + $0x18] sm:$0xff]
      %v407 = vld [vmem:[%s399 + $0x20] sm:$0xff]
      %v408 = vld [vmem:[%s399 + $0x28] sm:$0xff]
      %v409 = vld [vmem:[%s399 + $0x30] sm:$0xff]
      %v410 = vld [vmem:[%s399 + $0x38] sm:$0xff]
      %v411 = vld [vmem:[%s399 + $0x40] sm:$0x7f]
      %vm412 = vcmp.ge.f32.partialorder %v403, 0.5
      %vm413 = vcmp.ge.f32.partialorder %v404, 0.5
      %vm414 = vcmp.ge.f32.partialorder %v405, 0.5
      %vm415 = vcmp.ge.f32.partialorder %v406, 0.5
      %vm416 = vcmp.ge.f32.partialorder %v407, 0.5
      %vm417 = vcmp.ge.f32.partialorder %v408, 0.5
      %vm418 = vcmp.ge.f32.partialorder %v409, 0.5
      %vm419 = vcmp.ge.f32.partialorder %v410, 0.5
      %vm420 = vcmp.ge.f32.partialorder %v411, 0.5
      %v421 = vsel %vm412, 1, 0
      %v422 = vsel %vm413, 1, 0
      %v423 = vsel %vm414, 1, 0
      %v424 = vsel %vm415, 1, 0
      %v425 = vsel %vm416, 1, 0
      %v426 = vsel %vm417, 1, 0
      %v427 = vsel %vm418, 1, 0
      %v428 = vsel %vm419, 1, 0
      %v429 = vsel %vm420, 1, 0
      %v430 = vcvt.s32.f32 %v421
      %v431 = vcvt.s32.f32 %v422
      %v432 = vcvt.s32.f32 %v423
      %v433 = vcvt.s32.f32 %v424
      %v434 = vcvt.s32.f32 %v425
      %v435 = vcvt.s32.f32 %v426
      %v436 = vcvt.s32.f32 %v427
      %v437 = vcvt.s32.f32 %v428
      %v438 = vcvt.s32.f32 %v429
      %v439 = vld [vmem:[%s394] sm:$0xff]
      %v440 = vld [vmem:[%s394 + $0x8] sm:$0xff]
      %v441 = vld [vmem:[%s394 + $0x10] sm:$0xff]
      %v442 = vld [vmem:[%s394 + $0x18] sm:$0xff]
      %v443 = vld [vmem:[%s394 + $0x20] sm:$0xff]
      %v444 = vld [vmem:[%s394 + $0x28] sm:$0xff]
      %v445 = vld [vmem:[%s394 + $0x30] sm:$0xff]
      %v446 = vld [vmem:[%s394 + $0x38] sm:$0xff]
      %v447 = vld [vmem:[%s394 + $0x40] sm:$0x7f]
      %v448 = vmul.f32 %v439, %v430
      %v449 = vmul.f32 %v440, %v431
      %v450 = vmul.f32 %v441, %v432
      %v451 = vmul.f32 %v442, %v433
      %v452 = vmul.f32 %v443, %v434
      %v453 = vmul.f32 %v444, %v435
      %v454 = vmul.f32 %v445, %v436
      %v455 = vmul.f32 %v446, %v437
      %v456 = vmul.f32 %v447, %v438
      %v457 = vld [vmem:[%s2] sm:$0x1]
      %459 = vset.pattern.permute.xlu0 0
      %460 = vperm.xlu0 %459, %v448
      %v461 = vpop.permute.xlu0 %460
      %464 = vset.pattern.permute.xlu0 0
      %465 = vperm.xlu0 %464, %v449
      %v466 = vpop.permute.xlu0 %465
      %469 = vset.pattern.permute.xlu0 0
      %470 = vperm.xlu0 %469, %v450
      %v471 = vpop.permute.xlu0 %470
      %474 = vset.pattern.permute.xlu0 0
      %475 = vperm.xlu0 %474, %v451
      %v476 = vpop.permute.xlu0 %475
      %479 = vset.pattern.permute.xlu0 0
      %480 = vperm.xlu0 %479, %v452
      %v481 = vpop.permute.xlu0 %480
      %484 = vset.pattern.permute.xlu0 0
      %485 = vperm.xlu0 %484, %v453
      %v486 = vpop.permute.xlu0 %485
      %489 = vset.pattern.permute.xlu0 0
      %490 = vperm.xlu0 %489, %v454
      %v491 = vpop.permute.xlu0 %490
      %494 = vset.pattern.permute.xlu0 0
      %495 = vperm.xlu0 %494, %v455
      %v496 = vpop.permute.xlu0 %495
      %v498 = vperm.slane %v457, 0
      %v499 = vmul.f32 %v461, %v498
      %v500 = vmul.f32 %v466, %v498
      %v501 = vmul.f32 %v471, %v498
      %v502 = vmul.f32 %v476, %v498
      %v503 = vmul.f32 %v481, %v498
      %v504 = vmul.f32 %v486, %v498
      %v505 = vmul.f32 %v491, %v498
      %v506 = vmul.f32 %v496, %v498
      %v507 = vadd.f32 %v499, 0.0
      %v508 = vadd.f32 %v500, 0.0
      %v509 = vadd.f32 %v501, 0.0
      %v510 = vadd.f32 %v502, 0.0
      %v511 = vadd.f32 %v503, 0.0
      %v512 = vadd.f32 %v504, 0.0
      %v513 = vadd.f32 %v505, 0.0
      %v514 = vadd.f32 %v506, 0.0
      %v515 = vld [vmem:[%s2 + $0x1] sm:$0x1]
      %517 = vset.pattern.permute.xlu0 0
      %518 = vperm.xlu0 %517, %v456
      %v519 = vpop.permute.xlu0 %518
      %v521 = vperm.slane %v515, 0
      %v522 = vmul.f32 %v461, %v521
      %v523 = vmul.f32 %v466, %v521
      %v524 = vmul.f32 %v471, %v521
      %v525 = vmul.f32 %v476, %v521
      %v526 = vmul.f32 %v481, %v521
      %v527 = vmul.f32 %v486, %v521
      %v528 = vmul.f32 %v491, %v521
      %v529 = vmul.f32 %v496, %v521
      %v530 = vmul.f32 %v519, %v521
      %vm540 = vcmask 1046528
      %v541 = vrot.slane %v522, 1
      %v542 = vrot.slane %v523, 1
      %v543 = vsel %vm540, %v541, %v542
      %v544 = vrot.slane %v524, 1
      %v545 = vsel %vm540, %v542, %v544
      %v546 = vrot.slane %v525, 1
      %v547 = vsel %vm540, %v544, %v546
      %v548 = vrot.slane %v526, 1
      %v549 = vsel %vm540, %v546, %v548
      %v550 = vrot.slane %v527, 1
      %v551 = vsel %vm540, %v548, %v550
      %v552 = vrot.slane %v528, 1
      %v553 = vsel %vm540, %v550, %v552
      %v554 = vrot.slane %v529, 1
      %v555 = vsel %vm540, %v552, %v554
      %v556 = vrot.slane %v530, 1
      %v557 = vsel %vm540, %v554, %v556
      %v566 = vadd.f32 %v507, %v543
      %v567 = vadd.f32 %v508, %v545
      %v568 = vadd.f32 %v509, %v547
      %v569 = vadd.f32 %v510, %v549
      %v570 = vadd.f32 %v511, %v551
      %v571 = vadd.f32 %v512, %v553
      %v572 = vadd.f32 %v513, %v555
      %v573 = vadd.f32 %v514, %v557
      %v574 = vld [vmem:[%s2 + $0x2] sm:$0x1]
      %v575 = vperm.slane %v574, 0
      %v576 = vmul.f32 %v461, %v575
      %v577 = vmul.f32 %v466, %v575
      %v578 = vmul.f32 %v471, %v575
      %v579 = vmul.f32 %v476, %v575
      %v580 = vmul.f32 %v481, %v575
      %v581 = vmul.f32 %v486, %v575
      %v582 = vmul.f32 %v491, %v575
      %v583 = vmul.f32 %v496, %v575
      %v584 = vmul.f32 %v519, %v575
      %vm594 = vcmask 1045504
      %v595 = vrot.slane %v576, 2
      %v596 = vrot.slane %v577, 2
      %v597 = vsel %vm594, %v595, %v596
      %v598 = vrot.slane %v578, 2
      %v599 = vsel %vm594, %v596, %v598
      %v600 = vrot.slane %v579, 2
      %v601 = vsel %vm594, %v598, %v600
      %v602 = vrot.slane %v580, 2
      %v603 = vsel %vm594, %v600, %v602
      %v604 = vrot.slane %v581, 2
      %v605 = vsel %vm594, %v602, %v604
      %v606 = vrot.slane %v582, 2
      %v607 = vsel %vm594, %v604, %v606
      %v608 = vrot.slane %v583, 2
      %v609 = vsel %vm594, %v606, %v608
      %v610 = vrot.slane %v584, 2
      %v611 = vsel %vm594, %v608, %v610
      %v620 = vadd.f32 %v566, %v597
      %v621 = vadd.f32 %v567, %v599
      %v622 = vadd.f32 %v568, %v601
      %v623 = vadd.f32 %v569, %v603
      %v624 = vadd.f32 %v570, %v605
      %v625 = vadd.f32 %v571, %v607
      %v626 = vadd.f32 %v572, %v609
      %v627 = vadd.f32 %v573, %v611
      %v628 = vld [vmem:[%s2 + $0x3] sm:$0x1]
      %v629 = vperm.slane %v628, 0
      %v630 = vmul.f32 %v461, %v629
      %v631 = vmul.f32 %v466, %v629
      %v632 = vmul.f32 %v471, %v629
      %v633 = vmul.f32 %v476, %v629
      %v634 = vmul.f32 %v481, %v629
      %v635 = vmul.f32 %v486, %v629
      %v636 = vmul.f32 %v491, %v629
      %v637 = vmul.f32 %v496, %v629
      %v638 = vmul.f32 %v519, %v629
      %vm648 = vcmask 1044480
      %v649 = vrot.slane %v630, 3
      %v650 = vrot.slane %v631, 3
      %v651 = vsel %vm648, %v649, %v650
      %v652 = vrot.slane %v632, 3
      %v653 = vsel %vm648, %v650, %v652
      %v654 = vrot.slane %v633, 3
      %v655 = vsel %vm648, %v652, %v654
      %v656 = vrot.slane %v634, 3
      %v657 = vsel %vm648, %v654, %v656
      %v658 = vrot.slane %v635, 3
      %v659 = vsel %vm648, %v656, %v658
      %v660 = vrot.slane %v636, 3
      %v661 = vsel %vm648, %v658, %v660
      %v662 = vrot.slane %v637, 3
      %v663 = vsel %vm648, %v660, %v662
      %v664 = vrot.slane %v638, 3
      %v665 = vsel %vm648, %v662, %v664
      %v674 = vadd.f32 %v620, %v651
      %v675 = vadd.f32 %v621, %v653
      %v676 = vadd.f32 %v622, %v655
      %v677 = vadd.f32 %v623, %v657
      %v678 = vadd.f32 %v624, %v659
      %v679 = vadd.f32 %v625, %v661
      %v680 = vadd.f32 %v626, %v663
      %v681 = vadd.f32 %v627, %v665
      %v682 = vld [vmem:[%s2 + $0x4] sm:$0x1]
      %v683 = vperm.slane %v682, 0
      %v684 = vmul.f32 %v461, %v683
      %v685 = vmul.f32 %v466, %v683
      %v686 = vmul.f32 %v471, %v683
      %v687 = vmul.f32 %v476, %v683
      %v688 = vmul.f32 %v481, %v683
      %v689 = vmul.f32 %v486, %v683
      %v690 = vmul.f32 %v491, %v683
      %v691 = vmul.f32 %v496, %v683
      %v692 = vmul.f32 %v519, %v683
      %vm702 = vcmask 1043456
      %v703 = vrot.slane %v684, 4
      %v704 = vrot.slane %v685, 4
      %v705 = vsel %vm702, %v703, %v704
      %v706 = vrot.slane %v686, 4
      %v707 = vsel %vm702, %v704, %v706
      %v708 = vrot.slane %v687, 4
      %v709 = vsel %vm702, %v706, %v708
      %v710 = vrot.slane %v688, 4
      %v711 = vsel %vm702, %v708, %v710
      %v712 = vrot.slane %v689, 4
      %v713 = vsel %vm702, %v710, %v712
      %v714 = vrot.slane %v690, 4
      %v715 = vsel %vm702, %v712, %v714
      %v716 = vrot.slane %v691, 4
      %v717 = vsel %vm702, %v714, %v716
      %v718 = vrot.slane %v692, 4
      %v719 = vsel %vm702, %v716, %v718
      %v728 = vadd.f32 %v674, %v705
      %v729 = vadd.f32 %v675, %v707
      %v730 = vadd.f32 %v676, %v709
      %v731 = vadd.f32 %v677, %v711
      %v732 = vadd.f32 %v678, %v713
      %v733 = vadd.f32 %v679, %v715
      %v734 = vadd.f32 %v680, %v717
      %v735 = vadd.f32 %v681, %v719
      %v736 = vld [vmem:[%s2 + $0x5] sm:$0x1]
      %v737 = vperm.slane %v736, 0
      %v738 = vmul.f32 %v461, %v737
      %v739 = vmul.f32 %v466, %v737
      %v740 = vmul.f32 %v471, %v737
      %v741 = vmul.f32 %v476, %v737
      %v742 = vmul.f32 %v481, %v737
      %v743 = vmul.f32 %v486, %v737
      %v744 = vmul.f32 %v491, %v737
      %v745 = vmul.f32 %v496, %v737
      %v746 = vmul.f32 %v519, %v737
      %vm756 = vcmask 1042432
      %v757 = vrot.slane %v738, 5
      %v758 = vrot.slane %v739, 5
      %v759 = vsel %vm756, %v757, %v758
      %v760 = vrot.slane %v740, 5
      %v761 = vsel %vm756, %v758, %v760
      %v762 = vrot.slane %v741, 5
      %v763 = vsel %vm756, %v760, %v762
      %v764 = vrot.slane %v742, 5
      %v765 = vsel %vm756, %v762, %v764
      %v766 = vrot.slane %v743, 5
      %v767 = vsel %vm756, %v764, %v766
      %v768 = vrot.slane %v744, 5
      %v769 = vsel %vm756, %v766, %v768
      %v770 = vrot.slane %v745, 5
      %v771 = vsel %vm756, %v768, %v770
      %v772 = vrot.slane %v746, 5
      %v773 = vsel %vm756, %v770, %v772
      %v782 = vadd.f32 %v728, %v759
      %v783 = vadd.f32 %v729, %v761
      %v784 = vadd.f32 %v730, %v763
      %v785 = vadd.f32 %v731, %v765
      %v786 = vadd.f32 %v732, %v767
      %v787 = vadd.f32 %v733, %v769
      %v788 = vadd.f32 %v734, %v771
      %v789 = vadd.f32 %v735, %v773
      %v790 = vld [vmem:[%s2 + $0x6] sm:$0x1]
      %v791 = vperm.slane %v790, 0
      %v792 = vmul.f32 %v461, %v791
      %v793 = vmul.f32 %v466, %v791
      %v794 = vmul.f32 %v471, %v791
      %v795 = vmul.f32 %v476, %v791
      %v796 = vmul.f32 %v481, %v791
      %v797 = vmul.f32 %v486, %v791
      %v798 = vmul.f32 %v491, %v791
      %v799 = vmul.f32 %v496, %v791
      %v800 = vmul.f32 %v519, %v791
      %vm810 = vcmask 1041408
      %v811 = vrot.slane %v792, 6
      %v812 = vrot.slane %v793, 6
      %v813 = vsel %vm810, %v811, %v812
      %v814 = vrot.slane %v794, 6
      %v815 = vsel %vm810, %v812, %v814
      %v816 = vrot.slane %v795, 6
      %v817 = vsel %vm810, %v814, %v816
      %v818 = vrot.slane %v796, 6
      %v819 = vsel %vm810, %v816, %v818
      %v820 = vrot.slane %v797, 6
      %v821 = vsel %vm810, %v818, %v820
      %v822 = vrot.slane %v798, 6
      %v823 = vsel %vm810, %v820, %v822
      %v824 = vrot.slane %v799, 6
      %v825 = vsel %vm810, %v822, %v824
      %v826 = vrot.slane %v800, 6
      %v827 = vsel %vm810, %v824, %v826
      %v836 = vadd.f32 %v782, %v813
      %v837 = vadd.f32 %v783, %v815
      %v838 = vadd.f32 %v784, %v817
      %v839 = vadd.f32 %v785, %v819
      %v840 = vadd.f32 %v786, %v821
      %v841 = vadd.f32 %v787, %v823
      %v842 = vadd.f32 %v788, %v825
      %v843 = vadd.f32 %v789, %v827
      %v844 = vld [vmem:[%s2 + $0x7] sm:$0x1]
      %v845 = vperm.slane %v844, 0
      %v846 = vmul.f32 %v461, %v845
      %v847 = vmul.f32 %v466, %v845
      %v848 = vmul.f32 %v471, %v845
      %v849 = vmul.f32 %v476, %v845
      %v850 = vmul.f32 %v481, %v845
      %v851 = vmul.f32 %v486, %v845
      %v852 = vmul.f32 %v491, %v845
      %v853 = vmul.f32 %v496, %v845
      %v854 = vmul.f32 %v519, %v845
      %vm864 = vcmask 1040384
      %v865 = vrot.slane %v846, 7
      %v866 = vrot.slane %v847, 7
      %v867 = vsel %vm864, %v865, %v866
      %v868 = vrot.slane %v848, 7
      %v869 = vsel %vm864, %v866, %v868
      %v870 = vrot.slane %v849, 7
      %v871 = vsel %vm864, %v868, %v870
      %v872 = vrot.slane %v850, 7
      %v873 = vsel %vm864, %v870, %v872
      %v874 = vrot.slane %v851, 7
      %v875 = vsel %vm864, %v872, %v874
      %v876 = vrot.slane %v852, 7
      %v877 = vsel %vm864, %v874, %v876
      %v878 = vrot.slane %v853, 7
      %v879 = vsel %vm864, %v876, %v878
      %v880 = vrot.slane %v854, 7
      %v881 = vsel %vm864, %v878, %v880
      %v890 = vadd.f32 %v836, %v867
      %v891 = vadd.f32 %v837, %v869
      %v892 = vadd.f32 %v838, %v871
      %v893 = vadd.f32 %v839, %v873
      %v894 = vadd.f32 %v840, %v875
      %v895 = vadd.f32 %v841, %v877
      %v896 = vadd.f32 %v842, %v879
      %v897 = vadd.f32 %v843, %v881
      %v898 = vld [vmem:[%s3] sm:$0x1]
      %v900 = vperm.slane %v898, 0
      %v902 = vmul.f32 %v890, %v900
      %v903 = vmul.f32 %v891, %v900
      %v904 = vmul.f32 %v892, %v900
      %v905 = vmul.f32 %v893, %v900
      %v906 = vmul.f32 %v894, %v900
      %v907 = vmul.f32 %v895, %v900
      %v908 = vmul.f32 %v896, %v900
      %v909 = vmul.f32 %v897, %v900
      %v910 = vld [vmem:[%s4] sm:$0x1]
      %v912 = vperm.slane %v910, 0
      %v914 = vadd.f32 %v902, %v912
      %v915 = vadd.f32 %v903, %v912
      %v916 = vadd.f32 %v904, %v912
      %v917 = vadd.f32 %v905, %v912
      %v918 = vadd.f32 %v906, %v912
      %v919 = vadd.f32 %v907, %v912
      %v920 = vadd.f32 %v908, %v912
      %v921 = vadd.f32 %v909, %v912
      %v922 = vmax.f32 %v914, 0.0
      %v923 = vmax.f32 %v915, 0.0
      %v924 = vmax.f32 %v916, 0.0
      %v925 = vmax.f32 %v917, 0.0
      %v926 = vmax.f32 %v918, 0.0
      %v927 = vmax.f32 %v919, 0.0
      %v928 = vmax.f32 %v920, 0.0
      %v929 = vmax.f32 %v921, 0.0
      %930 = vst [vmem:[#allocation2] sm:$0xff] 0.0
      %931 = vst [vmem:[#allocation2 + $0x8] sm:$0xff] 0.0
      %932 = vst [vmem:[#allocation2 + $0x10] sm:$0xff] 0.0
      %933 = vst [vmem:[#allocation2 + $0x18] sm:$0xff] 0.0
      %934 = vst [vmem:[#allocation2 + $0x20] sm:$0xff] 0.0
      %935 = vst [vmem:[#allocation2 + $0x28] sm:$0xff] 0.0
      %936 = vst [vmem:[#allocation2 + $0x30] sm:$0xff] 0.0
      %937 = vst [vmem:[#allocation2 + $0x38] sm:$0xff] 0.0
      %938 = vst [vmem:[#allocation2 + $0x40] sm:$0xf] 0.0
      %939 = vst [vmem:[#allocation2 + $0x2] sm:$0xff] %v922
      %940 = vst [vmem:[#allocation2 + $0xa] sm:$0xff] %v923
      %941 = vst [vmem:[#allocation2 + $0x12] sm:$0xff] %v924
      %942 = vst [vmem:[#allocation2 + $0x1a] sm:$0xff] %v925
      %943 = vst [vmem:[#allocation2 + $0x22] sm:$0xff] %v926
      %944 = vst [vmem:[#allocation2 + $0x2a] sm:$0xff] %v927
      %945 = vst [vmem:[#allocation2 + $0x32] sm:$0xff] %v928
      %946 = vst [vmem:[#allocation2 + $0x3a] sm:$0xff] %v929
      %v947 = vld [vmem:[#allocation2] sm:$0xff]
      %v948 = vld [vmem:[#allocation2 + $0x8] sm:$0xff]
      %v949 = vld [vmem:[#allocation2 + $0x10] sm:$0xff]
      %v950 = vld [vmem:[#allocation2 + $0x18] sm:$0xff]
      %v951 = vld [vmem:[#allocation2 + $0x20] sm:$0xff]
      %v952 = vld [vmem:[#allocation2 + $0x28] sm:$0xff]
      %v953 = vld [vmem:[#allocation2 + $0x30] sm:$0xff]
      %v954 = vld [vmem:[#allocation2 + $0x38] sm:$0xff]
      %v955 = vpack.c.bf16 %v948, %v947
      %v956 = vpack.c.bf16 %v950, %v949
      %v957 = vpack.c.bf16 %v952, %v951
      %v958 = vpack.c.bf16 %v954, %v953
      %v959 = vld [vmem:[%s5] sm:$0xff]
      %v960 = vld [vmem:[%s5 + $0x8] sm:$0xff]
      %v961 = vld [vmem:[%s5 + $0x10] sm:$0xff]
      %v962 = vld [vmem:[%s5 + $0x18] sm:$0xff]
      %v963 = vld [vmem:[%s5 + $0x20] sm:$0xff]
      %v964 = vld [vmem:[%s5 + $0x28] sm:$0xff]
      %v965 = vld [vmem:[%s5 + $0x30] sm:$0xff]
      %v966 = vld [vmem:[%s5 + $0x38] sm:$0xff]
      %v967 = vld [vmem:[%s5 + $0x40] sm:$0xff]
      %v968 = vld [vmem:[%s5 + $0x48] sm:$0xff]
      %v969 = vld [vmem:[%s5 + $0x50] sm:$0xff]
      %v970 = vld [vmem:[%s5 + $0x58] sm:$0xff]
      %v971 = vld [vmem:[%s5 + $0x60] sm:$0xff]
      %v972 = vld [vmem:[%s5 + $0x68] sm:$0xff]
      %v973 = vld [vmem:[%s5 + $0x70] sm:$0xff]
      %v974 = vld [vmem:[%s5 + $0x78] sm:$0xff]
      %v975 = vld [vmem:[#allocation2 + $0x1] sm:$0xff]
      %v976 = vld [vmem:[#allocation2 + $0x9] sm:$0xff]
      %v977 = vld [vmem:[#allocation2 + $0x11] sm:$0xff]
      %v978 = vld [vmem:[#allocation2 + $0x19] sm:$0xff]
      %v979 = vld [vmem:[#allocation2 + $0x21] sm:$0xff]
      %v980 = vld [vmem:[#allocation2 + $0x29] sm:$0xff]
      %v981 = vld [vmem:[#allocation2 + $0x31] sm:$0xff]
      %v982 = vld [vmem:[#allocation2 + $0x39] sm:$0xff]
      %v983 = vpack.c.bf16 %v976, %v975
      %v984 = vpack.c.bf16 %v978, %v977
      %v985 = vpack.c.bf16 %v980, %v979
      %v986 = vpack.c.bf16 %v982, %v981
      %s987 = scalar_lea.vmem %s5, 128
      %v988 = vld [vmem:[%s987] sm:$0xff]
      %v989 = vld [vmem:[%s987 + $0x8] sm:$0xff]
      %v990 = vld [vmem:[%s987 + $0x10] sm:$0xff]
      %v991 = vld [vmem:[%s987 + $0x18] sm:$0xff]
      %v992 = vld [vmem:[%s987 + $0x20] sm:$0xff]
      %v993 = vld [vmem:[%s987 + $0x28] sm:$0xff]
      %v994 = vld [vmem:[%s987 + $0x30] sm:$0xff]
      %v995 = vld [vmem:[%s987 + $0x38] sm:$0xff]
      %v996 = vld [vmem:[%s987 + $0x40] sm:$0xff]
      %v997 = vld [vmem:[%s987 + $0x48] sm:$0xff]
      %v998 = vld [vmem:[%s987 + $0x50] sm:$0xff]
      %v999 = vld [vmem:[%s987 + $0x58] sm:$0xff]
      %v1000 = vld [vmem:[%s987 + $0x60] sm:$0xff]
      %v1001 = vld [vmem:[%s987 + $0x68] sm:$0xff]
      %v1002 = vld [vmem:[%s987 + $0x70] sm:$0xff]
      %v1003 = vld [vmem:[%s987 + $0x78] sm:$0xff]
      %v1020 = vunpack.c.l.b16 %v988
      %v1021 = vunpack.c.h.b16 %v988
      %v1022 = vunpack.c.l.b16 %v989
      %v1023 = vunpack.c.h.b16 %v989
      %v1024 = vunpack.c.l.b16 %v990
      %v1025 = vunpack.c.h.b16 %v990
      %v1026 = vunpack.c.l.b16 %v991
      %v1027 = vunpack.c.h.b16 %v991
      %v1028 = vunpack.c.l.b16 %v992
      %v1029 = vunpack.c.h.b16 %v992
      %v1030 = vunpack.c.l.b16 %v993
      %v1031 = vunpack.c.h.b16 %v993
      %v1032 = vunpack.c.l.b16 %v994
      %v1033 = vunpack.c.h.b16 %v994
      %v1034 = vunpack.c.l.b16 %v995
      %v1035 = vunpack.c.h.b16 %v995
      %v1036 = vunpack.c.l.b16 %v996
      %v1037 = vunpack.c.h.b16 %v996
      %v1038 = vunpack.c.l.b16 %v997
      %v1039 = vunpack.c.h.b16 %v997
      %v1040 = vunpack.c.l.b16 %v998
      %v1041 = vunpack.c.h.b16 %v998
      %v1042 = vunpack.c.l.b16 %v999
      %v1043 = vunpack.c.h.b16 %v999
      %v1044 = vunpack.c.l.b16 %v1000
      %v1045 = vunpack.c.h.b16 %v1000
      %v1046 = vunpack.c.l.b16 %v1001
      %v1047 = vunpack.c.h.b16 %v1001
      %v1048 = vunpack.c.l.b16 %v1002
      %v1049 = vunpack.c.h.b16 %v1002
      %v1050 = vunpack.c.l.b16 %v1003
      %v1051 = vunpack.c.h.b16 %v1003
      %v1052 = vpack.c.b16 %v1022, %v1020
      %v1053 = vpack.c.b16 %v1023, %v1021
      %v1054 = vpack.c.b16 %v1026, %v1024
      %v1055 = vpack.c.b16 %v1027, %v1025
      %v1056 = vpack.c.b16 %v1030, %v1028
      %v1057 = vpack.c.b16 %v1031, %v1029
      %v1058 = vpack.c.b16 %v1034, %v1032
      %v1059 = vpack.c.b16 %v1035, %v1033
      %v1060 = vpack.c.b16 %v1038, %v1036
      %v1061 = vpack.c.b16 %v1039, %v1037
      %v1062 = vpack.c.b16 %v1042, %v1040
      %v1063 = vpack.c.b16 %v1043, %v1041
      %v1064 = vpack.c.b16 %v1046, %v1044
      %v1065 = vpack.c.b16 %v1047, %v1045
      %v1066 = vpack.c.b16 %v1050, %v1048
      %v1067 = vpack.c.b16 %v1051, %v1049
      %1084 = vmatpush.bf16.msra.mxu0 %v1066
      %1085 = vmatpush.bf16.msra.mxu0 %v1064
      %1086 = vmatpush.bf16.msra.mxu0 %v1062
      %1087 = vmatpush.bf16.msra.mxu0 %v1060
      %1088 = vmatpush.bf16.msra.mxu0 %v1058
      %1089 = vmatpush.bf16.msra.mxu0 %v1056
      %1090 = vmatpush.bf16.msra.mxu0 %v1054
      %1091 = vmatpush.bf16.msra.mxu0 %v1052
      %1092 = vmatmul.bf16.gmra.mxu0 %v983
      %v1093 = vpop.f32.mrf.mxu0
      %v1094 = vadd.f32 0.0, %v1093
      %v1095 = vpop.f32.mrf.mxu0
      %v1096 = vadd.f32 0.0, %v1095
      %1097 = vmatmul.bf16.gmra.mxu0 %v984
      %v1098 = vpop.f32.mrf.mxu0
      %v1099 = vadd.f32 0.0, %v1098
      %v1100 = vpop.f32.mrf.mxu0
      %v1101 = vadd.f32 0.0, %v1100
      %1102 = vmatmul.bf16.gmra.mxu0 %v985
      %v1103 = vpop.f32.mrf.mxu0
      %v1104 = vadd.f32 0.0, %v1103
      %v1105 = vpop.f32.mrf.mxu0
      %v1106 = vadd.f32 0.0, %v1105
      %1107 = vmatmul.bf16.gmra.mxu0 %v986
      %v1108 = vpop.f32.mrf.mxu0
      %v1109 = vadd.f32 0.0, %v1108
      %v1110 = vpop.f32.mrf.mxu0
      %v1111 = vadd.f32 0.0, %v1110
      %1112 = vdwg.mxu0
      %1113 = vmatpush.bf16.msra.mxu0 %v1067
      %1114 = vmatpush.bf16.msra.mxu0 %v1065
      %1115 = vmatpush.bf16.msra.mxu0 %v1063
      %1116 = vmatpush.bf16.msra.mxu0 %v1061
      %1117 = vmatpush.bf16.msra.mxu0 %v1059
      %1118 = vmatpush.bf16.msra.mxu0 %v1057
      %1119 = vmatpush.bf16.msra.mxu0 %v1055
      %1120 = vmatpush.bf16.msra.mxu0 %v1053
      %1121 = vmatmul.bf16.gmra.mxu0 %v983
      %v1122 = vpop.f32.mrf.mxu0
      %v1123 = vadd.f32 0.0, %v1122
      %v1124 = vpop.f32.mrf.mxu0
      %v1125 = vadd.f32 0.0, %v1124
      %1126 = vmatmul.bf16.gmra.mxu0 %v984
      %v1127 = vpop.f32.mrf.mxu0
      %v1128 = vadd.f32 0.0, %v1127
      %v1129 = vpop.f32.mrf.mxu0
      %v1130 = vadd.f32 0.0, %v1129
      %1131 = vmatmul.bf16.gmra.mxu0 %v985
      %v1132 = vpop.f32.mrf.mxu0
      %v1133 = vadd.f32 0.0, %v1132
      %v1134 = vpop.f32.mrf.mxu0
      %v1135 = vadd.f32 0.0, %v1134
      %1136 = vmatmul.bf16.gmra.mxu0 %v986
      %v1137 = vpop.f32.mrf.mxu0
      %v1138 = vadd.f32 0.0, %v1137
      %v1139 = vpop.f32.mrf.mxu0
      %v1140 = vadd.f32 0.0, %v1139
      %1141 = vdwg.mxu0
      %v1158 = vunpack.c.l.b16 %v959
      %v1159 = vunpack.c.h.b16 %v959
      %v1160 = vunpack.c.l.b16 %v960
      %v1161 = vunpack.c.h.b16 %v960
      %v1162 = vunpack.c.l.b16 %v961
      %v1163 = vunpack.c.h.b16 %v961
      %v1164 = vunpack.c.l.b16 %v962
      %v1165 = vunpack.c.h.b16 %v962
      %v1166 = vunpack.c.l.b16 %v963
      %v1167 = vunpack.c.h.b16 %v963
      %v1168 = vunpack.c.l.b16 %v964
      %v1169 = vunpack.c.h.b16 %v964
      %v1170 = vunpack.c.l.b16 %v965
      %v1171 = vunpack.c.h.b16 %v965
      %v1172 = vunpack.c.l.b16 %v966
      %v1173 = vunpack.c.h.b16 %v966
      %v1174 = vunpack.c.l.b16 %v967
      %v1175 = vunpack.c.h.b16 %v967
      %v1176 = vunpack.c.l.b16 %v968
      %v1177 = vunpack.c.h.b16 %v968
      %v1178 = vunpack.c.l.b16 %v969
      %v1179 = vunpack.c.h.b16 %v969
      %v1180 = vunpack.c.l.b16 %v970
      %v1181 = vunpack.c.h.b16 %v970
      %v1182 = vunpack.c.l.b16 %v971
      %v1183 = vunpack.c.h.b16 %v971
      %v1184 = vunpack.c.l.b16 %v972
      %v1185 = vunpack.c.h.b16 %v972
      %v1186 = vunpack.c.l.b16 %v973
      %v1187 = vunpack.c.h.b16 %v973
      %v1188 = vunpack.c.l.b16 %v974
      %v1189 = vunpack.c.h.b16 %v974
      %v1190 = vpack.c.b16 %v1160, %v1158
      %v1191 = vpack.c.b16 %v1161, %v1159
      %v1192 = vpack.c.b16 %v1164, %v1162
      %v1193 = vpack.c.b16 %v1165, %v1163
      %v1194 = vpack.c.b16 %v1168, %v1166
      %v1195 = vpack.c.b16 %v1169, %v1167
      %v1196 = vpack.c.b16 %v1172, %v1170
      %v1197 = vpack.c.b16 %v1173, %v1171
      %v1198 = vpack.c.b16 %v1176, %v1174
      %v1199 = vpack.c.b16 %v1177, %v1175
      %v1200 = vpack.c.b16 %v1180, %v1178
      %v1201 = vpack.c.b16 %v1181, %v1179
      %v1202 = vpack.c.b16 %v1184, %v1182
      %v1203 = vpack.c.b16 %v1185, %v1183
      %v1204 = vpack.c.b16 %v1188, %v1186
      %v1205 = vpack.c.b16 %v1189, %v1187
      %1222 = vmatpush.bf16.msra.mxu0 %v1204
      %1223 = vmatpush.bf16.msra.mxu0 %v1202
      %1224 = vmatpush.bf16.msra.mxu0 %v1200
      %1225 = vmatpush.bf16.msra.mxu0 %v1198
      %1226 = vmatpush.bf16.msra.mxu0 %v1196
      %1227 = vmatpush.bf16.msra.mxu0 %v1194
      %1228 = vmatpush.bf16.msra.mxu0 %v1192
      %1229 = vmatpush.bf16.msra.mxu0 %v1190
      %1230 = vmatmul.bf16.gmra.mxu0 %v955
      %v1231 = vpop.f32.mrf.mxu0
      %v1232 = vadd.f32 %v1094, %v1231
      %v1233 = vpop.f32.mrf.mxu0
      %v1234 = vadd.f32 %v1096, %v1233
      %1235 = vmatmul.bf16.gmra.mxu0 %v956
      %v1236 = vpop.f32.mrf.mxu0
      %v1237 = vadd.f32 %v1099, %v1236
      %v1238 = vpop.f32.mrf.mxu0
      %v1239 = vadd.f32 %v1101, %v1238
      %1240 = vmatmul.bf16.gmra.mxu0 %v957
      %v1241 = vpop.f32.mrf.mxu0
      %v1242 = vadd.f32 %v1104, %v1241
      %v1243 = vpop.f32.mrf.mxu0
      %v1244 = vadd.f32 %v1106, %v1243
      %1245 = vmatmul.bf16.gmra.mxu0 %v958
      %v1246 = vpop.f32.mrf.mxu0
      %v1247 = vadd.f32 %v1109, %v1246
      %v1248 = vpop.f32.mrf.mxu0
      %v1249 = vadd.f32 %v1111, %v1248
      %1250 = vdwg.mxu0
      %1251 = vmatpush.bf16.msra.mxu0 %v1205
      %1252 = vmatpush.bf16.msra.mxu0 %v1203
      %1253 = vmatpush.bf16.msra.mxu0 %v1201
      %1254 = vmatpush.bf16.msra.mxu0 %v1199
      %1255 = vmatpush.bf16.msra.mxu0 %v1197
      %1256 = vmatpush.bf16.msra.mxu0 %v1195
      %1257 = vmatpush.bf16.msra.mxu0 %v1193
      %1258 = vmatpush.bf16.msra.mxu0 %v1191
      %1259 = vmatmul.bf16.gmra.mxu0 %v955
      %v1260 = vpop.f32.mrf.mxu0
      %v1261 = vadd.f32 %v1123, %v1260
      %v1262 = vpop.f32.mrf.mxu0
      %v1263 = vadd.f32 %v1125, %v1262
      %1264 = vmatmul.bf16.gmra.mxu0 %v956
      %v1265 = vpop.f32.mrf.mxu0
      %v1266 = vadd.f32 %v1128, %v1265
      %v1267 = vpop.f32.mrf.mxu0
      %v1268 = vadd.f32 %v1130, %v1267
      %1269 = vmatmul.bf16.gmra.mxu0 %v957
      %v1270 = vpop.f32.mrf.mxu0
      %v1271 = vadd.f32 %v1133, %v1270
      %v1272 = vpop.f32.mrf.mxu0
      %v1273 = vadd.f32 %v1135, %v1272
      %1274 = vmatmul.bf16.gmra.mxu0 %v958
      %v1275 = vpop.f32.mrf.mxu0
      %v1276 = vadd.f32 %v1138, %v1275
      %v1277 = vpop.f32.mrf.mxu0
      %v1278 = vadd.f32 %v1140, %v1277
      %1279 = vdwg.mxu0
      %v1280 = vld [vmem:[#allocation2 + $0x2] sm:$0xff]
      %v1281 = vld [vmem:[#allocation2 + $0xa] sm:$0xff]
      %v1282 = vld [vmem:[#allocation2 + $0x12] sm:$0xff]
      %v1283 = vld [vmem:[#allocation2 + $0x1a] sm:$0xff]
      %v1284 = vld [vmem:[#allocation2 + $0x22] sm:$0xff]
      %v1285 = vld [vmem:[#allocation2 + $0x2a] sm:$0xff]
      %v1286 = vld [vmem:[#allocation2 + $0x32] sm:$0xff]
      %v1287 = vld [vmem:[#allocation2 + $0x3a] sm:$0xff]
      %v1288 = vpack.c.bf16 %v1281, %v1280
      %v1289 = vpack.c.bf16 %v1283, %v1282
      %v1290 = vpack.c.bf16 %v1285, %v1284
      %v1291 = vpack.c.bf16 %v1287, %v1286
      %s1292 = scalar_lea.vmem %s5, 256
      %v1293 = vld [vmem:[%s1292] sm:$0xff]
      %v1294 = vld [vmem:[%s1292 + $0x8] sm:$0xff]
      %v1295 = vld [vmem:[%s1292 + $0x10] sm:$0xff]
      %v1296 = vld [vmem:[%s1292 + $0x18] sm:$0xff]
      %v1297 = vld [vmem:[%s1292 + $0x20] sm:$0xff]
      %v1298 = vld [vmem:[%s1292 + $0x28] sm:$0xff]
      %v1299 = vld [vmem:[%s1292 + $0x30] sm:$0xff]
      %v1300 = vld [vmem:[%s1292 + $0x38] sm:$0xff]
      %v1301 = vld [vmem:[%s1292 + $0x40] sm:$0xff]
      %v1302 = vld [vmem:[%s1292 + $0x48] sm:$0xff]
      %v1303 = vld [vmem:[%s1292 + $0x50] sm:$0xff]
      %v1304 = vld [vmem:[%s1292 + $0x58] sm:$0xff]
      %v1305 = vld [vmem:[%s1292 + $0x60] sm:$0xff]
      %v1306 = vld [vmem:[%s1292 + $0x68] sm:$0xff]
      %v1307 = vld [vmem:[%s1292 + $0x70] sm:$0xff]
      %v1308 = vld [vmem:[%s1292 + $0x78] sm:$0xff]
      %v1325 = vunpack.c.l.b16 %v1293
      %v1326 = vunpack.c.h.b16 %v1293
      %v1327 = vunpack.c.l.b16 %v1294
      %v1328 = vunpack.c.h.b16 %v1294
      %v1329 = vunpack.c.l.b16 %v1295
      %v1330 = vunpack.c.h.b16 %v1295
      %v1331 = vunpack.c.l.b16 %v1296
      %v1332 = vunpack.c.h.b16 %v1296
      %v1333 = vunpack.c.l.b16 %v1297
      %v1334 = vunpack.c.h.b16 %v1297
      %v1335 = vunpack.c.l.b16 %v1298
      %v1336 = vunpack.c.h.b16 %v1298
      %v1337 = vunpack.c.l.b16 %v1299
      %v1338 = vunpack.c.h.b16 %v1299
      %v1339 = vunpack.c.l.b16 %v1300
      %v1340 = vunpack.c.h.b16 %v1300
      %v1341 = vunpack.c.l.b16 %v1301
      %v1342 = vunpack.c.h.b16 %v1301
      %v1343 = vunpack.c.l.b16 %v1302
      %v1344 = vunpack.c.h.b16 %v1302
      %v1345 = vunpack.c.l.b16 %v1303
      %v1346 = vunpack.c.h.b16 %v1303
      %v1347 = vunpack.c.l.b16 %v1304
      %v1348 = vunpack.c.h.b16 %v1304
      %v1349 = vunpack.c.l.b16 %v1305
      %v1350 = vunpack.c.h.b16 %v1305
      %v1351 = vunpack.c.l.b16 %v1306
      %v1352 = vunpack.c.h.b16 %v1306
      %v1353 = vunpack.c.l.b16 %v1307
      %v1354 = vunpack.c.h.b16 %v1307
      %v1355 = vunpack.c.l.b16 %v1308
      %v1356 = vunpack.c.h.b16 %v1308
      %v1357 = vpack.c.b16 %v1327, %v1325
      %v1358 = vpack.c.b16 %v1328, %v1326
      %v1359 = vpack.c.b16 %v1331, %v1329
      %v1360 = vpack.c.b16 %v1332, %v1330
      %v1361 = vpack.c.b16 %v1335, %v1333
      %v1362 = vpack.c.b16 %v1336, %v1334
      %v1363 = vpack.c.b16 %v1339, %v1337
      %v1364 = vpack.c.b16 %v1340, %v1338
      %v1365 = vpack.c.b16 %v1343, %v1341
      %v1366 = vpack.c.b16 %v1344, %v1342
      %v1367 = vpack.c.b16 %v1347, %v1345
      %v1368 = vpack.c.b16 %v1348, %v1346
      %v1369 = vpack.c.b16 %v1351, %v1349
      %v1370 = vpack.c.b16 %v1352, %v1350
      %v1371 = vpack.c.b16 %v1355, %v1353
      %v1372 = vpack.c.b16 %v1356, %v1354
      %1389 = vmatpush.bf16.msra.mxu0 %v1371
      %1390 = vmatpush.bf16.msra.mxu0 %v1369
      %1391 = vmatpush.bf16.msra.mxu0 %v1367
      %1392 = vmatpush.bf16.msra.mxu0 %v1365
      %1393 = vmatpush.bf16.msra.mxu0 %v1363
      %1394 = vmatpush.bf16.msra.mxu0 %v1361
      %1395 = vmatpush.bf16.msra.mxu0 %v1359
      %1396 = vmatpush.bf16.msra.mxu0 %v1357
      %1397 = vmatmul.bf16.gmra.mxu0 %v1288
      %v1398 = vpop.f32.mrf.mxu0
      %v1399 = vadd.f32 0.0, %v1398
      %v1400 = vpop.f32.mrf.mxu0
      %v1401 = vadd.f32 0.0, %v1400
      %1402 = vmatmul.bf16.gmra.mxu0 %v1289
      %v1403 = vpop.f32.mrf.mxu0
      %v1404 = vadd.f32 0.0, %v1403
      %v1405 = vpop.f32.mrf.mxu0
      %v1406 = vadd.f32 0.0, %v1405
      %1407 = vmatmul.bf16.gmra.mxu0 %v1290
      %v1408 = vpop.f32.mrf.mxu0
      %v1409 = vadd.f32 0.0, %v1408
      %v1410 = vpop.f32.mrf.mxu0
      %v1411 = vadd.f32 0.0, %v1410
      %1412 = vmatmul.bf16.gmra.mxu0 %v1291
      %v1413 = vpop.f32.mrf.mxu0
      %v1414 = vadd.f32 0.0, %v1413
      %v1415 = vpop.f32.mrf.mxu0
      %v1416 = vadd.f32 0.0, %v1415
      %1417 = vdwg.mxu0
      %1418 = vmatpush.bf16.msra.mxu0 %v1372
      %1419 = vmatpush.bf16.msra.mxu0 %v1370
      %1420 = vmatpush.bf16.msra.mxu0 %v1368
      %1421 = vmatpush.bf16.msra.mxu0 %v1366
      %1422 = vmatpush.bf16.msra.mxu0 %v1364
      %1423 = vmatpush.bf16.msra.mxu0 %v1362
      %1424 = vmatpush.bf16.msra.mxu0 %v1360
      %1425 = vmatpush.bf16.msra.mxu0 %v1358
      %1426 = vmatmul.bf16.gmra.mxu0 %v1288
      %v1427 = vpop.f32.mrf.mxu0
      %v1428 = vadd.f32 0.0, %v1427
      %v1429 = vpop.f32.mrf.mxu0
      %v1430 = vadd.f32 0.0, %v1429
      %1431 = vmatmul.bf16.gmra.mxu0 %v1289
      %v1432 = vpop.f32.mrf.mxu0
      %v1433 = vadd.f32 0.0, %v1432
      %v1434 = vpop.f32.mrf.mxu0
      %v1435 = vadd.f32 0.0, %v1434
      %1436 = vmatmul.bf16.gmra.mxu0 %v1290
      %v1437 = vpop.f32.mrf.mxu0
      %v1438 = vadd.f32 0.0, %v1437
      %v1439 = vpop.f32.mrf.mxu0
      %v1440 = vadd.f32 0.0, %v1439
      %1441 = vmatmul.bf16.gmra.mxu0 %v1291
      %v1442 = vpop.f32.mrf.mxu0
      %v1443 = vadd.f32 0.0, %v1442
      %v1444 = vpop.f32.mrf.mxu0
      %v1445 = vadd.f32 0.0, %v1444
      %1446 = vdwg.mxu0
      %v1447 = vadd.f32 %v1232, %v1399
      %v1448 = vadd.f32 %v1261, %v1428
      %v1449 = vadd.f32 %v1234, %v1401
      %v1450 = vadd.f32 %v1263, %v1430
      %v1451 = vadd.f32 %v1237, %v1404
      %v1452 = vadd.f32 %v1266, %v1433
      %v1453 = vadd.f32 %v1239, %v1406
      %v1454 = vadd.f32 %v1268, %v1435
      %v1455 = vadd.f32 %v1242, %v1409
      %v1456 = vadd.f32 %v1271, %v1438
      %v1457 = vadd.f32 %v1244, %v1411
      %v1458 = vadd.f32 %v1273, %v1440
      %v1459 = vadd.f32 %v1247, %v1414
      %v1460 = vadd.f32 %v1276, %v1443
      %v1461 = vadd.f32 %v1249, %v1416
      %v1462 = vadd.f32 %v1278, %v1445
      %v1463 = vld [vmem:[#allocation2 + $0x3] sm:$0xff]
      %v1464 = vld [vmem:[#allocation2 + $0xb] sm:$0xff]
      %v1465 = vld [vmem:[#allocation2 + $0x13] sm:$0xff]
      %v1466 = vld [vmem:[#allocation2 + $0x1b] sm:$0xff]
      %v1467 = vld [vmem:[#allocation2 + $0x23] sm:$0xff]
      %v1468 = vld [vmem:[#allocation2 + $0x2b] sm:$0xff]
      %v1469 = vld [vmem:[#allocation2 + $0x33] sm:$0xff]
      %v1470 = vld [vmem:[#allocation2 + $0x3b] sm:$0xff]
      %v1471 = vpack.c.bf16 %v1464, %v1463
      %v1472 = vpack.c.bf16 %v1466, %v1465
      %v1473 = vpack.c.bf16 %v1468, %v1467
      %v1474 = vpack.c.bf16 %v1470, %v1469
      %s1475 = scalar_lea.vmem %s5, 384
      %v1476 = vld [vmem:[%s1475] sm:$0xff]
      %v1477 = vld [vmem:[%s1475 + $0x8] sm:$0xff]
      %v1478 = vld [vmem:[%s1475 + $0x10] sm:$0xff]
      %v1479 = vld [vmem:[%s1475 + $0x18] sm:$0xff]
      %v1480 = vld [vmem:[%s1475 + $0x20] sm:$0xff]
      %v1481 = vld [vmem:[%s1475 + $0x28] sm:$0xff]
      %v1482 = vld [vmem:[%s1475 + $0x30] sm:$0xff]
      %v1483 = vld [vmem:[%s1475 + $0x38] sm:$0xff]
      %v1484 = vld [vmem:[%s1475 + $0x40] sm:$0xff]
      %v1485 = vld [vmem:[%s1475 + $0x48] sm:$0xff]
      %v1486 = vld [vmem:[%s1475 + $0x50] sm:$0xff]
      %v1487 = vld [vmem:[%s1475 + $0x58] sm:$0xff]
      %v1488 = vld [vmem:[%s1475 + $0x60] sm:$0xff]
      %v1489 = vld [vmem:[%s1475 + $0x68] sm:$0xff]
      %v1490 = vld [vmem:[%s1475 + $0x70] sm:$0xff]
      %v1491 = vld [vmem:[%s1475 + $0x78] sm:$0xff]
      %v1508 = vunpack.c.l.b16 %v1476
      %v1509 = vunpack.c.h.b16 %v1476
      %v1510 = vunpack.c.l.b16 %v1477
      %v1511 = vunpack.c.h.b16 %v1477
      %v1512 = vunpack.c.l.b16 %v1478
      %v1513 = vunpack.c.h.b16 %v1478
      %v1514 = vunpack.c.l.b16 %v1479
      %v1515 = vunpack.c.h.b16 %v1479
      %v1516 = vunpack.c.l.b16 %v1480
      %v1517 = vunpack.c.h.b16 %v1480
      %v1518 = vunpack.c.l.b16 %v1481
      %v1519 = vunpack.c.h.b16 %v1481
      %v1520 = vunpack.c.l.b16 %v1482
      %v1521 = vunpack.c.h.b16 %v1482
      %v1522 = vunpack.c.l.b16 %v1483
      %v1523 = vunpack.c.h.b16 %v1483
      %v1524 = vunpack.c.l.b16 %v1484
      %v1525 = vunpack.c.h.b16 %v1484
      %v1526 = vunpack.c.l.b16 %v1485
      %v1527 = vunpack.c.h.b16 %v1485
      %v1528 = vunpack.c.l.b16 %v1486
      %v1529 = vunpack.c.h.b16 %v1486
      %v1530 = vunpack.c.l.b16 %v1487
      %v1531 = vunpack.c.h.b16 %v1487
      %v1532 = vunpack.c.l.b16 %v1488
      %v1533 = vunpack.c.h.b16 %v1488
      %v1534 = vunpack.c.l.b16 %v1489
      %v1535 = vunpack.c.h.b16 %v1489
      %v1536 = vunpack.c.l.b16 %v1490
      %v1537 = vunpack.c.h.b16 %v1490
      %v1538 = vunpack.c.l.b16 %v1491
      %v1539 = vunpack.c.h.b16 %v1491
      %v1540 = vpack.c.b16 %v1510, %v1508
      %v1541 = vpack.c.b16 %v1511, %v1509
      %v1542 = vpack.c.b16 %v1514, %v1512
      %v1543 = vpack.c.b16 %v1515, %v1513
      %v1544 = vpack.c.b16 %v1518, %v1516
      %v1545 = vpack.c.b16 %v1519, %v1517
      %v1546 = vpack.c.b16 %v1522, %v1520
      %v1547 = vpack.c.b16 %v1523, %v1521
      %v1548 = vpack.c.b16 %v1526, %v1524
      %v1549 = vpack.c.b16 %v1527, %v1525
      %v1550 = vpack.c.b16 %v1530, %v1528
      %v1551 = vpack.c.b16 %v1531, %v1529
      %v1552 = vpack.c.b16 %v1534, %v1532
      %v1553 = vpack.c.b16 %v1535, %v1533
      %v1554 = vpack.c.b16 %v1538, %v1536
      %v1555 = vpack.c.b16 %v1539, %v1537
      %1572 = vmatpush.bf16.msra.mxu0 %v1554
      %1573 = vmatpush.bf16.msra.mxu0 %v1552
      %1574 = vmatpush.bf16.msra.mxu0 %v1550
      %1575 = vmatpush.bf16.msra.mxu0 %v1548
      %1576 = vmatpush.bf16.msra.mxu0 %v1546
      %1577 = vmatpush.bf16.msra.mxu0 %v1544
      %1578 = vmatpush.bf16.msra.mxu0 %v1542
      %1579 = vmatpush.bf16.msra.mxu0 %v1540
      %1580 = vmatmul.bf16.gmra.mxu0 %v1471
      %v1581 = vpop.f32.mrf.mxu0
      %v1582 = vadd.f32 0.0, %v1581
      %v1583 = vpop.f32.mrf.mxu0
      %v1584 = vadd.f32 0.0, %v1583
      %1585 = vmatmul.bf16.gmra.mxu0 %v1472
      %v1586 = vpop.f32.mrf.mxu0
      %v1587 = vadd.f32 0.0, %v1586
      %v1588 = vpop.f32.mrf.mxu0
      %v1589 = vadd.f32 0.0, %v1588
      %1590 = vmatmul.bf16.gmra.mxu0 %v1473
      %v1591 = vpop.f32.mrf.mxu0
      %v1592 = vadd.f32 0.0, %v1591
      %v1593 = vpop.f32.mrf.mxu0
      %v1594 = vadd.f32 0.0, %v1593
      %1595 = vmatmul.bf16.gmra.mxu0 %v1474
      %v1596 = vpop.f32.mrf.mxu0
      %v1597 = vadd.f32 0.0, %v1596
      %v1598 = vpop.f32.mrf.mxu0
      %v1599 = vadd.f32 0.0, %v1598
      %1600 = vdwg.mxu0
      %1601 = vmatpush.bf16.msra.mxu0 %v1555
      %1602 = vmatpush.bf16.msra.mxu0 %v1553
      %1603 = vmatpush.bf16.msra.mxu0 %v1551
      %1604 = vmatpush.bf16.msra.mxu0 %v1549
      %1605 = vmatpush.bf16.msra.mxu0 %v1547
      %1606 = vmatpush.bf16.msra.mxu0 %v1545
      %1607 = vmatpush.bf16.msra.mxu0 %v1543
      %1608 = vmatpush.bf16.msra.mxu0 %v1541
      %1609 = vmatmul.bf16.gmra.mxu0 %v1471
      %v1610 = vpop.f32.mrf.mxu0
      %v1611 = vadd.f32 0.0, %v1610
      %v1612 = vpop.f32.mrf.mxu0
      %v1613 = vadd.f32 0.0, %v1612
      %1614 = vmatmul.bf16.gmra.mxu0 %v1472
      %v1615 = vpop.f32.mrf.mxu0
      %v1616 = vadd.f32 0.0, %v1615
      %v1617 = vpop.f32.mrf.mxu0
      %v1618 = vadd.f32 0.0, %v1617
      %1619 = vmatmul.bf16.gmra.mxu0 %v1473
      %v1620 = vpop.f32.mrf.mxu0
      %v1621 = vadd.f32 0.0, %v1620
      %v1622 = vpop.f32.mrf.mxu0
      %v1623 = vadd.f32 0.0, %v1622
      %1624 = vmatmul.bf16.gmra.mxu0 %v1474
      %v1625 = vpop.f32.mrf.mxu0
      %v1626 = vadd.f32 0.0, %v1625
      %v1627 = vpop.f32.mrf.mxu0
      %v1628 = vadd.f32 0.0, %v1627
      %1629 = vdwg.mxu0
      %v1630 = vadd.f32 %v1447, %v1582
      %v1631 = vadd.f32 %v1448, %v1611
      %v1632 = vadd.f32 %v1449, %v1584
      %v1633 = vadd.f32 %v1450, %v1613
      %v1634 = vadd.f32 %v1451, %v1587
      %v1635 = vadd.f32 %v1452, %v1616
      %v1636 = vadd.f32 %v1453, %v1589
      %v1637 = vadd.f32 %v1454, %v1618
      %v1638 = vadd.f32 %v1455, %v1592
      %v1639 = vadd.f32 %v1456, %v1621
      %v1640 = vadd.f32 %v1457, %v1594
      %v1641 = vadd.f32 %v1458, %v1623
      %v1642 = vadd.f32 %v1459, %v1597
      %v1643 = vadd.f32 %v1460, %v1626
      %v1644 = vadd.f32 %v1461, %v1599
      %v1645 = vadd.f32 %v1462, %v1628
      %v1646 = vld [vmem:[#allocation2 + $0x4] sm:$0xff]
      %v1647 = vld [vmem:[#allocation2 + $0xc] sm:$0xff]
      %v1648 = vld [vmem:[#allocation2 + $0x14] sm:$0xff]
      %v1649 = vld [vmem:[#allocation2 + $0x1c] sm:$0xff]
      %v1650 = vld [vmem:[#allocation2 + $0x24] sm:$0xff]
      %v1651 = vld [vmem:[#allocation2 + $0x2c] sm:$0xff]
      %v1652 = vld [vmem:[#allocation2 + $0x34] sm:$0xff]
      %v1653 = vld [vmem:[#allocation2 + $0x3c] sm:$0xff]
      %v1654 = vpack.c.bf16 %v1647, %v1646
      %v1655 = vpack.c.bf16 %v1649, %v1648
      %v1656 = vpack.c.bf16 %v1651, %v1650
      %v1657 = vpack.c.bf16 %v1653, %v1652
      %s1658 = scalar_lea.vmem %s5, 512
      %v1659 = vld [vmem:[%s1658] sm:$0xff]
      %v1660 = vld [vmem:[%s1658 + $0x8] sm:$0xff]
      %v1661 = vld [vmem:[%s1658 + $0x10] sm:$0xff]
      %v1662 = vld [vmem:[%s1658 + $0x18] sm:$0xff]
      %v1663 = vld [vmem:[%s1658 + $0x20] sm:$0xff]
      %v1664 = vld [vmem:[%s1658 + $0x28] sm:$0xff]
      %v1665 = vld [vmem:[%s1658 + $0x30] sm:$0xff]
      %v1666 = vld [vmem:[%s1658 + $0x38] sm:$0xff]
      %v1667 = vld [vmem:[%s1658 + $0x40] sm:$0xff]
      %v1668 = vld [vmem:[%s1658 + $0x48] sm:$0xff]
      %v1669 = vld [vmem:[%s1658 + $0x50] sm:$0xff]
      %v1670 = vld [vmem:[%s1658 + $0x58] sm:$0xff]
      %v1671 = vld [vmem:[%s1658 + $0x60] sm:$0xff]
      %v1672 = vld [vmem:[%s1658 + $0x68] sm:$0xff]
      %v1673 = vld [vmem:[%s1658 + $0x70] sm:$0xff]
      %v1674 = vld [vmem:[%s1658 + $0x78] sm:$0xff]
      %v1691 = vunpack.c.l.b16 %v1659
      %v1692 = vunpack.c.h.b16 %v1659
      %v1693 = vunpack.c.l.b16 %v1660
      %v1694 = vunpack.c.h.b16 %v1660
      %v1695 = vunpack.c.l.b16 %v1661
      %v1696 = vunpack.c.h.b16 %v1661
      %v1697 = vunpack.c.l.b16 %v1662
      %v1698 = vunpack.c.h.b16 %v1662
      %v1699 = vunpack.c.l.b16 %v1663
      %v1700 = vunpack.c.h.b16 %v1663
      %v1701 = vunpack.c.l.b16 %v1664
      %v1702 = vunpack.c.h.b16 %v1664
      %v1703 = vunpack.c.l.b16 %v1665
      %v1704 = vunpack.c.h.b16 %v1665
      %v1705 = vunpack.c.l.b16 %v1666
      %v1706 = vunpack.c.h.b16 %v1666
      %v1707 = vunpack.c.l.b16 %v1667
      %v1708 = vunpack.c.h.b16 %v1667
      %v1709 = vunpack.c.l.b16 %v1668
      %v1710 = vunpack.c.h.b16 %v1668
      %v1711 = vunpack.c.l.b16 %v1669
      %v1712 = vunpack.c.h.b16 %v1669
      %v1713 = vunpack.c.l.b16 %v1670
      %v1714 = vunpack.c.h.b16 %v1670
      %v1715 = vunpack.c.l.b16 %v1671
      %v1716 = vunpack.c.h.b16 %v1671
      %v1717 = vunpack.c.l.b16 %v1672
      %v1718 = vunpack.c.h.b16 %v1672
      %v1719 = vunpack.c.l.b16 %v1673
      %v1720 = vunpack.c.h.b16 %v1673
      %v1721 = vunpack.c.l.b16 %v1674
      %v1722 = vunpack.c.h.b16 %v1674
      %v1723 = vpack.c.b16 %v1693, %v1691
      %v1724 = vpack.c.b16 %v1694, %v1692
      %v1725 = vpack.c.b16 %v1697, %v1695
      %v1726 = vpack.c.b16 %v1698, %v1696
      %v1727 = vpack.c.b16 %v1701, %v1699
      %v1728 = vpack.c.b16 %v1702, %v1700
      %v1729 = vpack.c.b16 %v1705, %v1703
      %v1730 = vpack.c.b16 %v1706, %v1704
      %v1731 = vpack.c.b16 %v1709, %v1707
      %v1732 = vpack.c.b16 %v1710, %v1708
      %v1733 = vpack.c.b16 %v1713, %v1711
      %v1734 = vpack.c.b16 %v1714, %v1712
      %v1735 = vpack.c.b16 %v1717, %v1715
      %v1736 = vpack.c.b16 %v1718, %v1716
      %v1737 = vpack.c.b16 %v1721, %v1719
      %v1738 = vpack.c.b16 %v1722, %v1720
      %1755 = vmatpush.bf16.msra.mxu0 %v1737
      %1756 = vmatpush.bf16.msra.mxu0 %v1735
      %1757 = vmatpush.bf16.msra.mxu0 %v1733
      %1758 = vmatpush.bf16.msra.mxu0 %v1731
      %1759 = vmatpush.bf16.msra.mxu0 %v1729
      %1760 = vmatpush.bf16.msra.mxu0 %v1727
      %1761 = vmatpush.bf16.msra.mxu0 %v1725
      %1762 = vmatpush.bf16.msra.mxu0 %v1723
      %1763 = vmatmul.bf16.gmra.mxu0 %v1654
      %v1764 = vpop.f32.mrf.mxu0
      %v1765 = vadd.f32 0.0, %v1764
      %v1766 = vpop.f32.mrf.mxu0
      %v1767 = vadd.f32 0.0, %v1766
      %1768 = vmatmul.bf16.gmra.mxu0 %v1655
      %v1769 = vpop.f32.mrf.mxu0
      %v1770 = vadd.f32 0.0, %v1769
      %v1771 = vpop.f32.mrf.mxu0
      %v1772 = vadd.f32 0.0, %v1771
      %1773 = vmatmul.bf16.gmra.mxu0 %v1656
      %v1774 = vpop.f32.mrf.mxu0
      %v1775 = vadd.f32 0.0, %v1774
      %v1776 = vpop.f32.mrf.mxu0
      %v1777 = vadd.f32 0.0, %v1776
      %1778 = vmatmul.bf16.gmra.mxu0 %v1657
      %v1779 = vpop.f32.mrf.mxu0
      %v1780 = vadd.f32 0.0, %v1779
      %v1781 = vpop.f32.mrf.mxu0
      %v1782 = vadd.f32 0.0, %v1781
      %1783 = vdwg.mxu0
      %1784 = vmatpush.bf16.msra.mxu0 %v1738
      %1785 = vmatpush.bf16.msra.mxu0 %v1736
      %1786 = vmatpush.bf16.msra.mxu0 %v1734
      %1787 = vmatpush.bf16.msra.mxu0 %v1732
      %1788 = vmatpush.bf16.msra.mxu0 %v1730
      %1789 = vmatpush.bf16.msra.mxu0 %v1728
      %1790 = vmatpush.bf16.msra.mxu0 %v1726
      %1791 = vmatpush.bf16.msra.mxu0 %v1724
      %1792 = vmatmul.bf16.gmra.mxu0 %v1654
      %v1793 = vpop.f32.mrf.mxu0
      %v1794 = vadd.f32 0.0, %v1793
      %v1795 = vpop.f32.mrf.mxu0
      %v1796 = vadd.f32 0.0, %v1795
      %1797 = vmatmul.bf16.gmra.mxu0 %v1655
      %v1798 = vpop.f32.mrf.mxu0
      %v1799 = vadd.f32 0.0, %v1798
      %v1800 = vpop.f32.mrf.mxu0
      %v1801 = vadd.f32 0.0, %v1800
      %1802 = vmatmul.bf16.gmra.mxu0 %v1656
      %v1803 = vpop.f32.mrf.mxu0
      %v1804 = vadd.f32 0.0, %v1803
      %v1805 = vpop.f32.mrf.mxu0
      %v1806 = vadd.f32 0.0, %v1805
      %1807 = vmatmul.bf16.gmra.mxu0 %v1657
      %v1808 = vpop.f32.mrf.mxu0
      %v1809 = vadd.f32 0.0, %v1808
      %v1810 = vpop.f32.mrf.mxu0
      %v1811 = vadd.f32 0.0, %v1810
      %1812 = vdwg.mxu0
      %v1813 = vadd.f32 %v1630, %v1765
      %v1814 = vadd.f32 %v1631, %v1794
      %v1815 = vadd.f32 %v1632, %v1767
      %v1816 = vadd.f32 %v1633, %v1796
      %v1817 = vadd.f32 %v1634, %v1770
      %v1818 = vadd.f32 %v1635, %v1799
      %v1819 = vadd.f32 %v1636, %v1772
      %v1820 = vadd.f32 %v1637, %v1801
      %v1821 = vadd.f32 %v1638, %v1775
      %v1822 = vadd.f32 %v1639, %v1804
      %v1823 = vadd.f32 %v1640, %v1777
      %v1824 = vadd.f32 %v1641, %v1806
      %v1825 = vadd.f32 %v1642, %v1780
      %v1826 = vadd.f32 %v1643, %v1809
      %v1827 = vadd.f32 %v1644, %v1782
      %v1828 = vadd.f32 %v1645, %v1811
      %v1829 = vld [vmem:[%s6] sm:$0x3]
      %v1831 = vperm.slane %v1829, 0
      %v1832 = vperm.slane %v1829, 1
      %v1835 = vmul.f32 %v1813, %v1831
      %v1836 = vmul.f32 %v1814, %v1832
      %v1837 = vmul.f32 %v1815, %v1831
      %v1838 = vmul.f32 %v1816, %v1832
      %v1839 = vmul.f32 %v1817, %v1831
      %v1840 = vmul.f32 %v1818, %v1832
      %v1841 = vmul.f32 %v1819, %v1831
      %v1842 = vmul.f32 %v1820, %v1832
      %v1843 = vmul.f32 %v1821, %v1831
      %v1844 = vmul.f32 %v1822, %v1832
      %v1845 = vmul.f32 %v1823, %v1831
      %v1846 = vmul.f32 %v1824, %v1832
      %v1847 = vmul.f32 %v1825, %v1831
      %v1848 = vmul.f32 %v1826, %v1832
      %v1849 = vmul.f32 %v1827, %v1831
      %v1850 = vmul.f32 %v1828, %v1832
      %v1851 = vld [vmem:[%s7] sm:$0x3]
      %v1853 = vperm.slane %v1851, 0
      %v1854 = vperm.slane %v1851, 1
      %v1857 = vadd.f32 %v1835, %v1853
      %v1858 = vadd.f32 %v1836, %v1854
      %v1859 = vadd.f32 %v1837, %v1853
      %v1860 = vadd.f32 %v1838, %v1854
      %v1861 = vadd.f32 %v1839, %v1853
      %v1862 = vadd.f32 %v1840, %v1854
      %v1863 = vadd.f32 %v1841, %v1853
      %v1864 = vadd.f32 %v1842, %v1854
      %v1865 = vadd.f32 %v1843, %v1853
      %v1866 = vadd.f32 %v1844, %v1854
      %v1867 = vadd.f32 %v1845, %v1853
      %v1868 = vadd.f32 %v1846, %v1854
      %v1869 = vadd.f32 %v1847, %v1853
      %v1870 = vadd.f32 %v1848, %v1854
      %v1871 = vadd.f32 %v1849, %v1853
      %v1872 = vadd.f32 %v1850, %v1854
      %v1873 = vmax.f32 %v1857, 0.0
      %v1874 = vmax.f32 %v1858, 0.0
      %v1875 = vmax.f32 %v1859, 0.0
      %v1876 = vmax.f32 %v1860, 0.0
      %v1877 = vmax.f32 %v1861, 0.0
      %v1878 = vmax.f32 %v1862, 0.0
      %v1879 = vmax.f32 %v1863, 0.0
      %v1880 = vmax.f32 %v1864, 0.0
      %v1881 = vmax.f32 %v1865, 0.0
      %v1882 = vmax.f32 %v1866, 0.0
      %v1883 = vmax.f32 %v1867, 0.0
      %v1884 = vmax.f32 %v1868, 0.0
      %v1885 = vmax.f32 %v1869, 0.0
      %v1886 = vmax.f32 %v1870, 0.0
      %v1887 = vmax.f32 %v1871, 0.0
      %v1888 = vmax.f32 %v1872, 0.0
      %1889 = vst [vmem:[#allocation3] sm:$0xff] 0.0
      %1890 = vst [vmem:[#allocation3 + $0x8] sm:$0xff] 0.0
      %1891 = vst [vmem:[#allocation3 + $0x10] sm:$0xff] 0.0
      %1892 = vst [vmem:[#allocation3 + $0x18] sm:$0xff] 0.0
      %1893 = vst [vmem:[#allocation3 + $0x20] sm:$0xff] 0.0
      %1894 = vst [vmem:[#allocation3 + $0x28] sm:$0xff] 0.0
      %1895 = vst [vmem:[#allocation3 + $0x30] sm:$0xff] 0.0
      %1896 = vst [vmem:[#allocation3 + $0x38] sm:$0xff] 0.0
      %1897 = vst [vmem:[#allocation3 + $0x40] sm:$0xff] 0.0
      %1898 = vst [vmem:[#allocation3 + $0x48] sm:$0xff] 0.0
      %1899 = vst [vmem:[#allocation3 + $0x50] sm:$0xff] 0.0
      %1900 = vst [vmem:[#allocation3 + $0x58] sm:$0xff] 0.0
      %1901 = vst [vmem:[#allocation3 + $0x60] sm:$0xff] 0.0
      %1902 = vst [vmem:[#allocation3 + $0x68] sm:$0xff] 0.0
      %1903 = vst [vmem:[#allocation3 + $0x70] sm:$0xff] 0.0
      %1904 = vst [vmem:[#allocation3 + $0x78] sm:$0xff] 0.0
      %1905 = vst [vmem:[#allocation3 + $0x80] sm:$0x3] 0.0
      %1906 = vst [vmem:[#allocation3 + $0x88] sm:$0x3] 0.0
      %v1923 = vrot.slane %v1873, 7
      %v1924 = vrot.slane %v1874, 7
      %v1925 = vrot.slane %v1875, 7
      %v1926 = vsel %vm864, %v1923, %v1925
      %v1927 = vrot.slane %v1876, 7
      %v1928 = vsel %vm864, %v1924, %v1927
      %v1929 = vrot.slane %v1877, 7
      %v1930 = vsel %vm864, %v1925, %v1929
      %v1931 = vrot.slane %v1878, 7
      %v1932 = vsel %vm864, %v1927, %v1931
      %v1933 = vrot.slane %v1879, 7
      %v1934 = vsel %vm864, %v1929, %v1933
      %v1935 = vrot.slane %v1880, 7
      %v1936 = vsel %vm864, %v1931, %v1935
      %v1937 = vrot.slane %v1881, 7
      %v1938 = vsel %vm864, %v1933, %v1937
      %v1939 = vrot.slane %v1882, 7
      %v1940 = vsel %vm864, %v1935, %v1939
      %v1941 = vrot.slane %v1883, 7
      %v1942 = vsel %vm864, %v1937, %v1941
      %v1943 = vrot.slane %v1884, 7
      %v1944 = vsel %vm864, %v1939, %v1943
      %v1945 = vrot.slane %v1885, 7
      %v1946 = vsel %vm864, %v1941, %v1945
      %v1947 = vrot.slane %v1886, 7
      %v1948 = vsel %vm864, %v1943, %v1947
      %v1949 = vrot.slane %v1887, 7
      %v1950 = vsel %vm864, %v1945, %v1949
      %v1951 = vrot.slane %v1888, 7
      %v1952 = vsel %vm864, %v1947, %v1951
      %1971 = vst [vmem:[#allocation3] sm:$0xfe] %v1923
      %1972 = vst [vmem:[#allocation3 + $0x8] sm:$0xfe] %v1924
      %1973 = vst [vmem:[#allocation3 + $0x10] sm:$0xff] %v1926
      %1974 = vst [vmem:[#allocation3 + $0x18] sm:$0xff] %v1928
      %1975 = vst [vmem:[#allocation3 + $0x20] sm:$0xff] %v1930
      %1976 = vst [vmem:[#allocation3 + $0x28] sm:$0xff] %v1932
      %1977 = vst [vmem:[#allocation3 + $0x30] sm:$0xff] %v1934
      %1978 = vst [vmem:[#allocation3 + $0x38] sm:$0xff] %v1936
      %1979 = vst [vmem:[#allocation3 + $0x40] sm:$0xff] %v1938
      %1980 = vst [vmem:[#allocation3 + $0x48] sm:$0xff] %v1940
      %1981 = vst [vmem:[#allocation3 + $0x50] sm:$0xff] %v1942
      %1982 = vst [vmem:[#allocation3 + $0x58] sm:$0xff] %v1944
      %1983 = vst [vmem:[#allocation3 + $0x60] sm:$0xff] %v1946
      %1984 = vst [vmem:[#allocation3 + $0x68] sm:$0xff] %v1948
      %1985 = vst [vmem:[#allocation3 + $0x70] sm:$0xff] %v1950
      %1986 = vst [vmem:[#allocation3 + $0x78] sm:$0xff] %v1952
      %1987 = vst [vmem:[#allocation3 + $0x80] sm:$0x1] %v1949
      %1988 = vst [vmem:[#allocation3 + $0x88] sm:$0x1] %v1951
      %v1989 = vld [vmem:[#allocation3] sm:$0xff]
      %v1990 = vld [vmem:[#allocation3 + $0x8] sm:$0xff]
      %v1991 = vld [vmem:[#allocation3 + $0x10] sm:$0xff]
      %v1992 = vld [vmem:[#allocation3 + $0x18] sm:$0xff]
      %v1993 = vld [vmem:[#allocation3 + $0x20] sm:$0xff]
      %v1994 = vld [vmem:[#allocation3 + $0x28] sm:$0xff]
      %v1995 = vld [vmem:[#allocation3 + $0x30] sm:$0xff]
      %v1996 = vld [vmem:[#allocation3 + $0x38] sm:$0xff]
      %v1997 = vld [vmem:[#allocation3 + $0x40] sm:$0xff]
      %v1998 = vld [vmem:[#allocation3 + $0x48] sm:$0xff]
      %v1999 = vld [vmem:[#allocation3 + $0x50] sm:$0xff]
      %v2000 = vld [vmem:[#allocation3 + $0x58] sm:$0xff]
      %v2001 = vld [vmem:[#allocation3 + $0x60] sm:$0xff]
      %v2002 = vld [vmem:[#allocation3 + $0x68] sm:$0xff]
      %v2003 = vld [vmem:[#allocation3 + $0x70] sm:$0xff]
      %v2004 = vld [vmem:[#allocation3 + $0x78] sm:$0xff]
      %v2005 = vpack.c.bf16 %v1991, %v1989
      %v2006 = vpack.c.bf16 %v1992, %v1990
      %v2007 = vpack.c.bf16 %v1995, %v1993
      %v2008 = vpack.c.bf16 %v1996, %v1994
      %v2009 = vpack.c.bf16 %v1999, %v1997
      %v2010 = vpack.c.bf16 %v2000, %v1998
      %v2011 = vpack.c.bf16 %v2003, %v2001
      %v2012 = vpack.c.bf16 %v2004, %v2002
      %v2013 = vld [vmem:[%s8] sm:$0xf]
      %v2014 = vld [vmem:[%s8 + $0x4] sm:$0xf]
      %v2015 = vld [vmem:[%s8 + $0x8] sm:$0xf]
      %v2016 = vld [vmem:[%s8 + $0xc] sm:$0xf]
      %v2017 = vld [vmem:[%s8 + $0x10] sm:$0xf]
      %v2018 = vld [vmem:[%s8 + $0x14] sm:$0xf]
      %v2019 = vld [vmem:[%s8 + $0x18] sm:$0xf]
      %v2020 = vld [vmem:[%s8 + $0x1c] sm:$0xf]
      %v2021 = vld [vmem:[%s8 + $0x20] sm:$0xf]
      %v2022 = vld [vmem:[%s8 + $0x24] sm:$0xf]
      %v2023 = vld [vmem:[%s8 + $0x28] sm:$0xf]
      %v2024 = vld [vmem:[%s8 + $0x2c] sm:$0xf]
      %v2025 = vld [vmem:[%s8 + $0x30] sm:$0xf]
      %v2026 = vld [vmem:[%s8 + $0x34] sm:$0xf]
      %v2027 = vld [vmem:[%s8 + $0x38] sm:$0xf]
      %v2028 = vld [vmem:[%s8 + $0x3c] sm:$0xf]
      %v2029 = vld [vmem:[%s8 + $0x40] sm:$0xf]
      %v2030 = vld [vmem:[%s8 + $0x44] sm:$0xf]
      %v2031 = vld [vmem:[%s8 + $0x48] sm:$0xf]
      %v2032 = vld [vmem:[%s8 + $0x4c] sm:$0xf]
      %v2033 = vld [vmem:[%s8 + $0x50] sm:$0xf]
      %v2034 = vld [vmem:[%s8 + $0x54] sm:$0xf]
      %v2035 = vld [vmem:[%s8 + $0x58] sm:$0xf]
      %v2036 = vld [vmem:[%s8 + $0x5c] sm:$0xf]
      %v2037 = vld [vmem:[%s8 + $0x60] sm:$0xf]
      %v2038 = vld [vmem:[%s8 + $0x64] sm:$0xf]
      %v2039 = vld [vmem:[%s8 + $0x68] sm:$0xf]
      %v2040 = vld [vmem:[%s8 + $0x6c] sm:$0xf]
      %v2041 = vld [vmem:[%s8 + $0x70] sm:$0xf]
      %v2042 = vld [vmem:[%s8 + $0x74] sm:$0xf]
      %v2043 = vld [vmem:[%s8 + $0x78] sm:$0xf]
      %v2044 = vld [vmem:[%s8 + $0x7c] sm:$0xf]
      %v2045 = vld [vmem:[#allocation3] sm:$0xfe]
      %v2046 = vld [vmem:[#allocation3 + $0x8] sm:$0xfe]
      %v2047 = vld [vmem:[#allocation3 + $0x80] sm:$0x1]
      %v2048 = vld [vmem:[#allocation3 + $0x88] sm:$0x1]
      %v2049 = vpack.c.bf16 %v1991, %v2045
      %v2050 = vpack.c.bf16 %v1992, %v2046
      %v2051 = vpack.c.bf16 %v2047, %v2047
      %v2052 = vpack.c.bf16 %v2048, %v2048
      %s2053 = scalar_lea.vmem %s8, 128
      %v2054 = vld [vmem:[%s2053] sm:$0xf]
      %v2055 = vld [vmem:[%s2053 + $0x4] sm:$0xf]
      %v2056 = vld [vmem:[%s2053 + $0x8] sm:$0xf]
      %v2057 = vld [vmem:[%s2053 + $0xc] sm:$0xf]
      %v2058 = vld [vmem:[%s2053 + $0x10] sm:$0xf]
      %v2059 = vld [vmem:[%s2053 + $0x14] sm:$0xf]
      %v2060 = vld [vmem:[%s2053 + $0x18] sm:$0xf]
      %v2061 = vld [vmem:[%s2053 + $0x1c] sm:$0xf]
      %v2062 = vld [vmem:[%s2053 + $0x20] sm:$0xf]
      %v2063 = vld [vmem:[%s2053 + $0x24] sm:$0xf]
      %v2064 = vld [vmem:[%s2053 + $0x28] sm:$0xf]
      %v2065 = vld [vmem:[%s2053 + $0x2c] sm:$0xf]
      %v2066 = vld [vmem:[%s2053 + $0x30] sm:$0xf]
      %v2067 = vld [vmem:[%s2053 + $0x34] sm:$0xf]
      %v2068 = vld [vmem:[%s2053 + $0x38] sm:$0xf]
      %v2069 = vld [vmem:[%s2053 + $0x3c] sm:$0xf]
      %v2070 = vld [vmem:[%s2053 + $0x40] sm:$0xf]
      %v2071 = vld [vmem:[%s2053 + $0x44] sm:$0xf]
      %v2072 = vld [vmem:[%s2053 + $0x48] sm:$0xf]
      %v2073 = vld [vmem:[%s2053 + $0x4c] sm:$0xf]
      %v2074 = vld [vmem:[%s2053 + $0x50] sm:$0xf]
      %v2075 = vld [vmem:[%s2053 + $0x54] sm:$0xf]
      %v2076 = vld [vmem:[%s2053 + $0x58] sm:$0xf]
      %v2077 = vld [vmem:[%s2053 + $0x5c] sm:$0xf]
      %v2078 = vld [vmem:[%s2053 + $0x60] sm:$0xf]
      %v2079 = vld [vmem:[%s2053 + $0x64] sm:$0xf]
      %v2080 = vld [vmem:[%s2053 + $0x68] sm:$0xf]
      %v2081 = vld [vmem:[%s2053 + $0x6c] sm:$0xf]
      %v2082 = vld [vmem:[%s2053 + $0x70] sm:$0xf]
      %v2083 = vld [vmem:[%s2053 + $0x74] sm:$0xf]
      %v2084 = vld [vmem:[%s2053 + $0x78] sm:$0xf]
      %v2085 = vld [vmem:[%s2053 + $0x7c] sm:$0xf]
      %vm2086 = vsmask.f32 7424
      %v2088 = vshrl.u32 %v2049, 16
      %v2090 = vshll.u32 %v2049, 16
      %v2092 = vrot.slane %v2090, 1
      %v2093 = vor.u32 %v2088, %v2092
      %v2095 = vshll.u32 %v2007, 16
      %v2097 = vrot.slane %v2095, 1
      %v2098 = vsel %vm2086, %v2093, %v2097
      %v2100 = vshrl.u32 %v2050, 16
      %v2102 = vshll.u32 %v2050, 16
      %v2104 = vrot.slane %v2102, 1
      %v2105 = vor.u32 %v2100, %v2104
      %v2107 = vshll.u32 %v2008, 16
      %v2109 = vrot.slane %v2107, 1
      %v2110 = vsel %vm2086, %v2105, %v2109
      %v2111 = vshrl.u32 %v2007, 16
      %v2113 = vor.u32 %v2111, %v2097
      %v2115 = vshll.u32 %v2009, 16
      %v2117 = vrot.slane %v2115, 1
      %v2118 = vsel %vm2086, %v2113, %v2117
      %v2119 = vshrl.u32 %v2008, 16
      %v2121 = vor.u32 %v2119, %v2109
      %v2123 = vshll.u32 %v2010, 16
      %v2125 = vrot.slane %v2123, 1
      %v2126 = vsel %vm2086, %v2121, %v2125
      %v2127 = vshrl.u32 %v2009, 16
      %v2129 = vor.u32 %v2127, %v2117
      %v2131 = vshll.u32 %v2011, 16
      %v2133 = vrot.slane %v2131, 1
      %v2134 = vsel %vm2086, %v2129, %v2133
      %v2135 = vshrl.u32 %v2010, 16
      %v2137 = vor.u32 %v2135, %v2125
      %v2139 = vshll.u32 %v2012, 16
      %v2141 = vrot.slane %v2139, 1
      %v2142 = vsel %vm2086, %v2137, %v2141
      %v2143 = vshrl.u32 %v2011, 16
      %v2145 = vor.u32 %v2143, %v2133
      %v2147 = vshll.u32 %v2051, 16
      %v2149 = vrot.slane %v2147, 1
      %v2150 = vsel %vm2086, %v2145, %v2149
      %v2151 = vshrl.u32 %v2012, 16
      %v2153 = vor.u32 %v2151, %v2141
      %v2155 = vshll.u32 %v2052, 16
      %v2157 = vrot.slane %v2155, 1
      %v2158 = vsel %vm2086, %v2153, %v2157
      %v2199 = vunpack.c.l.b16 %v2054
      %v2200 = vunpack.c.l.b16 %v2055
      %v2201 = vunpack.c.l.b16 %v2056
      %v2202 = vunpack.c.l.b16 %v2057
      %v2203 = vunpack.c.l.b16 %v2058
      %v2204 = vunpack.c.l.b16 %v2059
      %v2205 = vunpack.c.l.b16 %v2060
      %v2206 = vunpack.c.l.b16 %v2061
      %v2207 = vunpack.c.l.b16 %v2062
      %v2208 = vunpack.c.l.b16 %v2063
      %v2209 = vunpack.c.l.b16 %v2064
      %v2210 = vunpack.c.l.b16 %v2065
      %v2211 = vunpack.c.l.b16 %v2066
      %v2212 = vunpack.c.l.b16 %v2067
      %v2213 = vunpack.c.l.b16 %v2068
      %v2214 = vunpack.c.l.b16 %v2069
      %v2215 = vunpack.c.l.b16 %v2070
      %v2216 = vunpack.c.l.b16 %v2071
      %v2217 = vunpack.c.l.b16 %v2072
      %v2218 = vunpack.c.l.b16 %v2073
      %v2219 = vunpack.c.l.b16 %v2074
      %v2220 = vunpack.c.l.b16 %v2075
      %v2221 = vunpack.c.l.b16 %v2076
      %v2222 = vunpack.c.l.b16 %v2077
      %v2223 = vunpack.c.l.b16 %v2078
      %v2224 = vunpack.c.l.b16 %v2079
      %v2225 = vunpack.c.l.b16 %v2080
      %v2226 = vunpack.c.l.b16 %v2081
      %v2227 = vunpack.c.l.b16 %v2082
      %v2228 = vunpack.c.l.b16 %v2083
      %v2229 = vunpack.c.l.b16 %v2084
      %v2230 = vunpack.c.l.b16 %v2085
      %v2231 = vpack.c.b16 %v2200, %v2199
      %v2232 = vpack.c.b16 %v2202, %v2201
      %v2233 = vpack.c.b16 %v2204, %v2203
      %v2234 = vpack.c.b16 %v2206, %v2205
      %v2235 = vpack.c.b16 %v2208, %v2207
      %v2236 = vpack.c.b16 %v2210, %v2209
      %v2237 = vpack.c.b16 %v2212, %v2211
      %v2238 = vpack.c.b16 %v2214, %v2213
      %v2239 = vpack.c.b16 %v2216, %v2215
      %v2240 = vpack.c.b16 %v2218, %v2217
      %v2241 = vpack.c.b16 %v2220, %v2219
      %v2242 = vpack.c.b16 %v2222, %v2221
      %v2243 = vpack.c.b16 %v2224, %v2223
      %v2244 = vpack.c.b16 %v2226, %v2225
      %v2245 = vpack.c.b16 %v2228, %v2227
      %v2246 = vpack.c.b16 %v2230, %v2229
      %2263 = vmatpush.bf16.msra.mxu0 %v2238
      %2264 = vmatpush.bf16.msra.mxu0 %v2237
      %2265 = vmatpush.bf16.msra.mxu0 %v2236
      %2266 = vmatpush.bf16.msra.mxu0 %v2235
      %2267 = vmatpush.bf16.msra.mxu0 %v2234
      %2268 = vmatpush.bf16.msra.mxu0 %v2233
      %2269 = vmatpush.bf16.msra.mxu0 %v2232
      %2270 = vmatpush.bf16.msra.mxu0 %v2231
      %2271 = vmatmul.bf16.gmra.mxu0 %v2098
      %v2272 = vpop.f32.mrf.mxu0
      %v2273 = vadd.f32 0.0, %v2272
      %v2274 = vpop.f32.mrf.mxu0
      %v2275 = vadd.f32 0.0, %v2274
      %2276 = vmatmul.bf16.gmra.mxu0 %v2118
      %v2277 = vpop.f32.mrf.mxu0
      %v2278 = vadd.f32 0.0, %v2277
      %v2279 = vpop.f32.mrf.mxu0
      %v2280 = vadd.f32 0.0, %v2279
      %2281 = vmatmul.bf16.gmra.mxu0 %v2134
      %v2282 = vpop.f32.mrf.mxu0
      %v2283 = vadd.f32 0.0, %v2282
      %v2284 = vpop.f32.mrf.mxu0
      %v2285 = vadd.f32 0.0, %v2284
      %2286 = vmatmul.bf16.gmra.mxu0 %v2150
      %v2287 = vpop.f32.mrf.mxu0
      %v2288 = vadd.f32 0.0, %v2287
      %v2289 = vpop.f32.mrf.mxu0
      %v2290 = vadd.f32 0.0, %v2289
      %2291 = vdwg.mxu0
      %2292 = vmatpush.bf16.msra.mxu0 %v2246
      %2293 = vmatpush.bf16.msra.mxu0 %v2245
      %2294 = vmatpush.bf16.msra.mxu0 %v2244
      %2295 = vmatpush.bf16.msra.mxu0 %v2243
      %2296 = vmatpush.bf16.msra.mxu0 %v2242
      %2297 = vmatpush.bf16.msra.mxu0 %v2241
      %2298 = vmatpush.bf16.msra.mxu0 %v2240
      %2299 = vmatpush.bf16.msra.mxu0 %v2239
      %2300 = vmatmul.bf16.gmra.mxu0 %v2110
      %v2301 = vpop.f32.mrf.mxu0
      %v2302 = vadd.f32 %v2273, %v2301
      %v2303 = vpop.f32.mrf.mxu0
      %v2304 = vadd.f32 %v2275, %v2303
      %2305 = vmatmul.bf16.gmra.mxu0 %v2126
      %v2306 = vpop.f32.mrf.mxu0
      %v2307 = vadd.f32 %v2278, %v2306
      %v2308 = vpop.f32.mrf.mxu0
      %v2309 = vadd.f32 %v2280, %v2308
      %2310 = vmatmul.bf16.gmra.mxu0 %v2142
      %v2311 = vpop.f32.mrf.mxu0
      %v2312 = vadd.f32 %v2283, %v2311
      %v2313 = vpop.f32.mrf.mxu0
      %v2314 = vadd.f32 %v2285, %v2313
      %2315 = vmatmul.bf16.gmra.mxu0 %v2158
      %v2316 = vpop.f32.mrf.mxu0
      %v2317 = vadd.f32 %v2288, %v2316
      %v2318 = vpop.f32.mrf.mxu0
      %v2319 = vadd.f32 %v2290, %v2318
      %2320 = vdwg.mxu0
      %v2353 = vunpack.c.l.b16 %v2013
      %v2354 = vunpack.c.l.b16 %v2014
      %v2355 = vunpack.c.l.b16 %v2015
      %v2356 = vunpack.c.l.b16 %v2016
      %v2357 = vunpack.c.l.b16 %v2017
      %v2358 = vunpack.c.l.b16 %v2018
      %v2359 = vunpack.c.l.b16 %v2019
      %v2360 = vunpack.c.l.b16 %v2020
      %v2361 = vunpack.c.l.b16 %v2021
      %v2362 = vunpack.c.l.b16 %v2022
      %v2363 = vunpack.c.l.b16 %v2023
      %v2364 = vunpack.c.l.b16 %v2024
      %v2365 = vunpack.c.l.b16 %v2025
      %v2366 = vunpack.c.l.b16 %v2026
      %v2367 = vunpack.c.l.b16 %v2027
      %v2368 = vunpack.c.l.b16 %v2028
      %v2369 = vunpack.c.l.b16 %v2029
      %v2370 = vunpack.c.l.b16 %v2030
      %v2371 = vunpack.c.l.b16 %v2031
      %v2372 = vunpack.c.l.b16 %v2032
      %v2373 = vunpack.c.l.b16 %v2033
      %v2374 = vunpack.c.l.b16 %v2034
      %v2375 = vunpack.c.l.b16 %v2035
      %v2376 = vunpack.c.l.b16 %v2036
      %v2377 = vunpack.c.l.b16 %v2037
      %v2378 = vunpack.c.l.b16 %v2038
      %v2379 = vunpack.c.l.b16 %v2039
      %v2380 = vunpack.c.l.b16 %v2040
      %v2381 = vunpack.c.l.b16 %v2041
      %v2382 = vunpack.c.l.b16 %v2042
      %v2383 = vunpack.c.l.b16 %v2043
      %v2384 = vunpack.c.l.b16 %v2044
      %v2385 = vpack.c.b16 %v2354, %v2353
      %v2386 = vpack.c.b16 %v2356, %v2355
      %v2387 = vpack.c.b16 %v2358, %v2357
      %v2388 = vpack.c.b16 %v2360, %v2359
      %v2389 = vpack.c.b16 %v2362, %v2361
      %v2390 = vpack.c.b16 %v2364, %v2363
      %v2391 = vpack.c.b16 %v2366, %v2365
      %v2392 = vpack.c.b16 %v2368, %v2367
      %v2393 = vpack.c.b16 %v2370, %v2369
      %v2394 = vpack.c.b16 %v2372, %v2371
      %v2395 = vpack.c.b16 %v2374, %v2373
      %v2396 = vpack.c.b16 %v2376, %v2375
      %v2397 = vpack.c.b16 %v2378, %v2377
      %v2398 = vpack.c.b16 %v2380, %v2379
      %v2399 = vpack.c.b16 %v2382, %v2381
      %v2400 = vpack.c.b16 %v2384, %v2383
      %2417 = vmatpush.bf16.msra.mxu0 %v2392
      %2418 = vmatpush.bf16.msra.mxu0 %v2391
      %2419 = vmatpush.bf16.msra.mxu0 %v2390
      %2420 = vmatpush.bf16.msra.mxu0 %v2389
      %2421 = vmatpush.bf16.msra.mxu0 %v2388
      %2422 = vmatpush.bf16.msra.mxu0 %v2387
      %2423 = vmatpush.bf16.msra.mxu0 %v2386
      %2424 = vmatpush.bf16.msra.mxu0 %v2385
      %2425 = vmatmul.bf16.gmra.mxu0 %v2005
      %v2426 = vpop.f32.mrf.mxu0
      %v2427 = vadd.f32 %v2302, %v2426
      %v2428 = vpop.f32.mrf.mxu0
      %v2429 = vadd.f32 %v2304, %v2428
      %2430 = vmatmul.bf16.gmra.mxu0 %v2007
      %v2431 = vpop.f32.mrf.mxu0
      %v2432 = vadd.f32 %v2307, %v2431
      %v2433 = vpop.f32.mrf.mxu0
      %v2434 = vadd.f32 %v2309, %v2433
      %2435 = vmatmul.bf16.gmra.mxu0 %v2009
      %v2436 = vpop.f32.mrf.mxu0
      %v2437 = vadd.f32 %v2312, %v2436
      %v2438 = vpop.f32.mrf.mxu0
      %v2439 = vadd.f32 %v2314, %v2438
      %2440 = vmatmul.bf16.gmra.mxu0 %v2011
      %v2441 = vpop.f32.mrf.mxu0
      %v2442 = vadd.f32 %v2317, %v2441
      %v2443 = vpop.f32.mrf.mxu0
      %v2444 = vadd.f32 %v2319, %v2443
      %2445 = vdwg.mxu0
      %2446 = vmatpush.bf16.msra.mxu0 %v2400
      %2447 = vmatpush.bf16.msra.mxu0 %v2399
      %2448 = vmatpush.bf16.msra.mxu0 %v2398
      %2449 = vmatpush.bf16.msra.mxu0 %v2397
      %2450 = vmatpush.bf16.msra.mxu0 %v2396
      %2451 = vmatpush.bf16.msra.mxu0 %v2395
      %2452 = vmatpush.bf16.msra.mxu0 %v2394
      %2453 = vmatpush.bf16.msra.mxu0 %v2393
      %2454 = vmatmul.bf16.gmra.mxu0 %v2006
      %v2455 = vpop.f32.mrf.mxu0
      %v2456 = vadd.f32 %v2427, %v2455
      %v2457 = vpop.f32.mrf.mxu0
      %v2458 = vadd.f32 %v2429, %v2457
      %2459 = vmatmul.bf16.gmra.mxu0 %v2008
      %v2460 = vpop.f32.mrf.mxu0
      %v2461 = vadd.f32 %v2432, %v2460
      %v2462 = vpop.f32.mrf.mxu0
      %v2463 = vadd.f32 %v2434, %v2462
      %2464 = vmatmul.bf16.gmra.mxu0 %v2010
      %v2465 = vpop.f32.mrf.mxu0
      %v2466 = vadd.f32 %v2437, %v2465
      %v2467 = vpop.f32.mrf.mxu0
      %v2468 = vadd.f32 %v2439, %v2467
      %2469 = vmatmul.bf16.gmra.mxu0 %v2012
      %v2470 = vpop.f32.mrf.mxu0
      %v2471 = vadd.f32 %v2442, %v2470
      %v2472 = vpop.f32.mrf.mxu0
      %v2473 = vadd.f32 %v2444, %v2472
      %2474 = vdwg.mxu0
      %v2475 = vld [vmem:[#allocation3] sm:$0xfc]
      %v2476 = vld [vmem:[#allocation3 + $0x8] sm:$0xfc]
      %v2477 = vld [vmem:[#allocation3 + $0x80] sm:$0x3]
      %v2478 = vld [vmem:[#allocation3 + $0x88] sm:$0x3]
      %v2479 = vpack.c.bf16 %v1991, %v2475
      %v2480 = vpack.c.bf16 %v1992, %v2476
      %v2481 = vpack.c.bf16 %v2477, %v2477
      %v2482 = vpack.c.bf16 %v2478, %v2478
      %s2483 = scalar_lea.vmem %s8, 256
      %v2484 = vld [vmem:[%s2483] sm:$0xf]
      %v2485 = vld [vmem:[%s2483 + $0x4] sm:$0xf]
      %v2486 = vld [vmem:[%s2483 + $0x8] sm:$0xf]
      %v2487 = vld [vmem:[%s2483 + $0xc] sm:$0xf]
      %v2488 = vld [vmem:[%s2483 + $0x10] sm:$0xf]
      %v2489 = vld [vmem:[%s2483 + $0x14] sm:$0xf]
      %v2490 = vld [vmem:[%s2483 + $0x18] sm:$0xf]
      %v2491 = vld [vmem:[%s2483 + $0x1c] sm:$0xf]
      %v2492 = vld [vmem:[%s2483 + $0x20] sm:$0xf]
      %v2493 = vld [vmem:[%s2483 + $0x24] sm:$0xf]
      %v2494 = vld [vmem:[%s2483 + $0x28] sm:$0xf]
      %v2495 = vld [vmem:[%s2483 + $0x2c] sm:$0xf]
      %v2496 = vld [vmem:[%s2483 + $0x30] sm:$0xf]
      %v2497 = vld [vmem:[%s2483 + $0x34] sm:$0xf]
      %v2498 = vld [vmem:[%s2483 + $0x38] sm:$0xf]
      %v2499 = vld [vmem:[%s2483 + $0x3c] sm:$0xf]
      %v2500 = vld [vmem:[%s2483 + $0x40] sm:$0xf]
      %v2501 = vld [vmem:[%s2483 + $0x44] sm:$0xf]
      %v2502 = vld [vmem:[%s2483 + $0x48] sm:$0xf]
      %v2503 = vld [vmem:[%s2483 + $0x4c] sm:$0xf]
      %v2504 = vld [vmem:[%s2483 + $0x50] sm:$0xf]
      %v2505 = vld [vmem:[%s2483 + $0x54] sm:$0xf]
      %v2506 = vld [vmem:[%s2483 + $0x58] sm:$0xf]
      %v2507 = vld [vmem:[%s2483 + $0x5c] sm:$0xf]
      %v2508 = vld [vmem:[%s2483 + $0x60] sm:$0xf]
      %v2509 = vld [vmem:[%s2483 + $0x64] sm:$0xf]
      %v2510 = vld [vmem:[%s2483 + $0x68] sm:$0xf]
      %v2511 = vld [vmem:[%s2483 + $0x6c] sm:$0xf]
      %v2512 = vld [vmem:[%s2483 + $0x70] sm:$0xf]
      %v2513 = vld [vmem:[%s2483 + $0x74] sm:$0xf]
      %v2514 = vld [vmem:[%s2483 + $0x78] sm:$0xf]
      %v2515 = vld [vmem:[%s2483 + $0x7c] sm:$0xf]
      %vm2526 = vcmask 1046528
      %v2527 = vrot.slane %v2479, 1
      %v2528 = vrot.slane %v2007, 1
      %v2529 = vsel %vm2526, %v2527, %v2528
      %v2530 = vrot.slane %v2480, 1
      %v2531 = vrot.slane %v2008, 1
      %v2532 = vsel %vm2526, %v2530, %v2531
      %v2533 = vrot.slane %v2009, 1
      %v2534 = vsel %vm2526, %v2528, %v2533
      %v2535 = vrot.slane %v2010, 1
      %v2536 = vsel %vm2526, %v2531, %v2535
      %v2537 = vrot.slane %v2011, 1
      %v2538 = vsel %vm2526, %v2533, %v2537
      %v2539 = vrot.slane %v2012, 1
      %v2540 = vsel %vm2526, %v2535, %v2539
      %v2541 = vrot.slane %v2481, 1
      %v2542 = vsel %vm2526, %v2537, %v2541
      %v2543 = vrot.slane %v2482, 1
      %v2544 = vsel %vm2526, %v2539, %v2543
      %v2585 = vunpack.c.l.b16 %v2484
      %v2586 = vunpack.c.l.b16 %v2485
      %v2587 = vunpack.c.l.b16 %v2486
      %v2588 = vunpack.c.l.b16 %v2487
      %v2589 = vunpack.c.l.b16 %v2488
      %v2590 = vunpack.c.l.b16 %v2489
      %v2591 = vunpack.c.l.b16 %v2490
      %v2592 = vunpack.c.l.b16 %v2491
      %v2593 = vunpack.c.l.b16 %v2492
      %v2594 = vunpack.c.l.b16 %v2493
      %v2595 = vunpack.c.l.b16 %v2494
      %v2596 = vunpack.c.l.b16 %v2495
      %v2597 = vunpack.c.l.b16 %v2496
      %v2598 = vunpack.c.l.b16 %v2497
      %v2599 = vunpack.c.l.b16 %v2498
      %v2600 = vunpack.c.l.b16 %v2499
      %v2601 = vunpack.c.l.b16 %v2500
      %v2602 = vunpack.c.l.b16 %v2501
      %v2603 = vunpack.c.l.b16 %v2502
      %v2604 = vunpack.c.l.b16 %v2503
      %v2605 = vunpack.c.l.b16 %v2504
      %v2606 = vunpack.c.l.b16 %v2505
      %v2607 = vunpack.c.l.b16 %v2506
      %v2608 = vunpack.c.l.b16 %v2507
      %v2609 = vunpack.c.l.b16 %v2508
      %v2610 = vunpack.c.l.b16 %v2509
      %v2611 = vunpack.c.l.b16 %v2510
      %v2612 = vunpack.c.l.b16 %v2511
      %v2613 = vunpack.c.l.b16 %v2512
      %v2614 = vunpack.c.l.b16 %v2513
      %v2615 = vunpack.c.l.b16 %v2514
      %v2616 = vunpack.c.l.b16 %v2515
      %v2617 = vpack.c.b16 %v2586, %v2585
      %v2618 = vpack.c.b16 %v2588, %v2587
      %v2619 = vpack.c.b16 %v2590, %v2589
      %v2620 = vpack.c.b16 %v2592, %v2591
      %v2621 = vpack.c.b16 %v2594, %v2593
      %v2622 = vpack.c.b16 %v2596, %v2595
      %v2623 = vpack.c.b16 %v2598, %v2597
      %v2624 = vpack.c.b16 %v2600, %v2599
      %v2625 = vpack.c.b16 %v2602, %v2601
      %v2626 = vpack.c.b16 %v2604, %v2603
      %v2627 = vpack.c.b16 %v2606, %v2605
      %v2628 = vpack.c.b16 %v2608, %v2607
      %v2629 = vpack.c.b16 %v2610, %v2609
      %v2630 = vpack.c.b16 %v2612, %v2611
      %v2631 = vpack.c.b16 %v2614, %v2613
      %v2632 = vpack.c.b16 %v2616, %v2615
      %2649 = vmatpush.bf16.msra.mxu0 %v2624
      %2650 = vmatpush.bf16.msra.mxu0 %v2623
      %2651 = vmatpush.bf16.msra.mxu0 %v2622
      %2652 = vmatpush.bf16.msra.mxu0 %v2621
      %2653 = vmatpush.bf16.msra.mxu0 %v2620
      %2654 = vmatpush.bf16.msra.mxu0 %v2619
      %2655 = vmatpush.bf16.msra.mxu0 %v2618
      %2656 = vmatpush.bf16.msra.mxu0 %v2617
      %2657 = vmatmul.bf16.gmra.mxu0 %v2529
      %v2658 = vpop.f32.mrf.mxu0
      %v2659 = vadd.f32 0.0, %v2658
      %v2660 = vpop.f32.mrf.mxu0
      %v2661 = vadd.f32 0.0, %v2660
      %2662 = vmatmul.bf16.gmra.mxu0 %v2534
      %v2663 = vpop.f32.mrf.mxu0
      %v2664 = vadd.f32 0.0, %v2663
      %v2665 = vpop.f32.mrf.mxu0
      %v2666 = vadd.f32 0.0, %v2665
      %2667 = vmatmul.bf16.gmra.mxu0 %v2538
      %v2668 = vpop.f32.mrf.mxu0
      %v2669 = vadd.f32 0.0, %v2668
      %v2670 = vpop.f32.mrf.mxu0
      %v2671 = vadd.f32 0.0, %v2670
      %2672 = vmatmul.bf16.gmra.mxu0 %v2542
      %v2673 = vpop.f32.mrf.mxu0
      %v2674 = vadd.f32 0.0, %v2673
      %v2675 = vpop.f32.mrf.mxu0
      %v2676 = vadd.f32 0.0, %v2675
      %2677 = vdwg.mxu0
      %2678 = vmatpush.bf16.msra.mxu0 %v2632
      %2679 = vmatpush.bf16.msra.mxu0 %v2631
      %2680 = vmatpush.bf16.msra.mxu0 %v2630
      %2681 = vmatpush.bf16.msra.mxu0 %v2629
      %2682 = vmatpush.bf16.msra.mxu0 %v2628
      %2683 = vmatpush.bf16.msra.mxu0 %v2627
      %2684 = vmatpush.bf16.msra.mxu0 %v2626
      %2685 = vmatpush.bf16.msra.mxu0 %v2625
      %2686 = vmatmul.bf16.gmra.mxu0 %v2532
      %v2687 = vpop.f32.mrf.mxu0
      %v2688 = vadd.f32 %v2659, %v2687
      %v2689 = vpop.f32.mrf.mxu0
      %v2690 = vadd.f32 %v2661, %v2689
      %2691 = vmatmul.bf16.gmra.mxu0 %v2536
      %v2692 = vpop.f32.mrf.mxu0
      %v2693 = vadd.f32 %v2664, %v2692
      %v2694 = vpop.f32.mrf.mxu0
      %v2695 = vadd.f32 %v2666, %v2694
      %2696 = vmatmul.bf16.gmra.mxu0 %v2540
      %v2697 = vpop.f32.mrf.mxu0
      %v2698 = vadd.f32 %v2669, %v2697
      %v2699 = vpop.f32.mrf.mxu0
      %v2700 = vadd.f32 %v2671, %v2699
      %2701 = vmatmul.bf16.gmra.mxu0 %v2544
      %v2702 = vpop.f32.mrf.mxu0
      %v2703 = vadd.f32 %v2674, %v2702
      %v2704 = vpop.f32.mrf.mxu0
      %v2705 = vadd.f32 %v2676, %v2704
      %2706 = vdwg.mxu0
      %v2707 = vadd.f32 %v2456, %v2688
      %v2708 = vadd.f32 %v2458, %v2690
      %v2709 = vadd.f32 %v2461, %v2693
      %v2710 = vadd.f32 %v2463, %v2695
      %v2711 = vadd.f32 %v2466, %v2698
      %v2712 = vadd.f32 %v2468, %v2700
      %v2713 = vadd.f32 %v2471, %v2703
      %v2714 = vadd.f32 %v2473, %v2705
      %v2715 = vld [vmem:[%s9] sm:$0x1]
      %v2717 = vperm.slane %v2715, 0
      %v2719 = vmul.f32 %v2707, %v2717
      %v2720 = vmul.f32 %v2708, %v2717
      %v2721 = vmul.f32 %v2709, %v2717
      %v2722 = vmul.f32 %v2710, %v2717
      %v2723 = vmul.f32 %v2711, %v2717
      %v2724 = vmul.f32 %v2712, %v2717
      %v2725 = vmul.f32 %v2713, %v2717
      %v2726 = vmul.f32 %v2714, %v2717
      %v2727 = vld [vmem:[%s10] sm:$0x1]
      %v2729 = vperm.slane %v2727, 0
      %v2731 = vadd.f32 %v2719, %v2729
      %v2732 = vadd.f32 %v2720, %v2729
      %v2733 = vadd.f32 %v2721, %v2729
      %v2734 = vadd.f32 %v2722, %v2729
      %v2735 = vadd.f32 %v2723, %v2729
      %v2736 = vadd.f32 %v2724, %v2729
      %v2737 = vadd.f32 %v2725, %v2729
      %v2738 = vadd.f32 %v2726, %v2729
      %v2739 = vmax.f32 %v2731, 0.0
      %v2740 = vmax.f32 %v2732, 0.0
      %v2741 = vmax.f32 %v2733, 0.0
      %v2742 = vmax.f32 %v2734, 0.0
      %v2743 = vmax.f32 %v2735, 0.0
      %v2744 = vmax.f32 %v2736, 0.0
      %v2745 = vmax.f32 %v2737, 0.0
      %v2746 = vmax.f32 %v2738, 0.0
      %v2747 = vadd.f32 %v2739, %v2740
      %v2748 = vadd.f32 %v2747, %v2741
      %v2749 = vadd.f32 %v2748, %v2742
      %v2750 = vadd.f32 %v2749, %v2743
      %v2751 = vadd.f32 %v2750, %v2744
      %v2752 = vadd.f32 %v2751, %v2745
      %v2753 = vadd.f32 %v2752, %v2746
      %v2754 = vrot.slane %v2753, 4
      %v2755 = vadd.f32 %v2753, %v2754
      %v2756 = vrot.slane %v2755, 2
      %v2757 = vadd.f32 %v2755, %v2756
      %v2758 = vrot.slane %v2757, 1
      %v2759 = vadd.f32 %v2757, %v2758
      %v2760 = vrcp.pop 64.0
      %v2761 = vmul.f32 64.0, %v2760
      %v2762 = vsub.f32 1.0, %v2761
      %v2763 = vmul.f32 %v2760, %v2762
      %v2764 = vadd.f32 %v2760, %v2763
      %vm2765 = vweird.f32 %v2760
      %v2766 = vsel %vm2765, %v2760, %v2764
      %v2767 = vmul.f32 %v2759, %v2766
      %2768 = vst [vmem:[%s402] sm:$0x1] %v2767
      %p2769 = scmp.lt.s32.totalorder %s22, 1
      %s2770 = scalar_select %p2769, %s22, 1
      %s2771 = scalar_lea.vmem %s11, %s2770
      // Predicated region
      $region65: #{forward.4} parent=63 // pred_check
        %p2772 = pneg %p281
      $region66: #{forward.4} parent=63 // pred_check_branch
        %2774 = sbr.rel (%p2772) target = $region68
      $region67: #{forward.4} parent=63 // pred_region
        _
      $region68: #{forward.4} parent=63 // pred_fallthru
        _
    $region64: #{forward.4} parent=5 // pred_fallthru
      _
    %p2775 = scmp.le.s32.totalorder 2, %s17
    // Predicated region
    $region69: #{forward.4} parent=5 // pred_check
      %p2776 = pneg %p2775
    $region70: #{forward.4} parent=5 // pred_check_branch
      %2778 = sbr.rel (%p2776) target = $region72
    $region71: #{forward.4} parent=5 // pred_region
      %s2779 = ssub.s32 %s17, 2
      // Predicated region
      $region73: #{forward.4} parent=71 // pred_check
        %p2780 = pneg %p287
      $region74: #{forward.4} parent=71 // pred_check_branch
        %2782 = sbr.rel (%p2780) target = $region76
      $region75: #{forward.4} parent=71 // pred_region
        %p2783 = scmp.lt.s32.totalorder %s23, 1
        %s2784 = scalar_select %p2783, %s23, 1
        %s2785 = scalar_lea.vmem %s11, %s2784
      $region76: #{forward.4} parent=71 // pred_fallthru
        _
    $region72: #{forward.4} parent=5 // pred_fallthru
      _
  $region6: #{forward.4} parent=0 // loop_footer
    %s21 = sadd.s32 1, %s17
  $region7: #{forward.4} parent=0 // loop_footer_branch
    %16 = sbr.rel target = $region3
  $region8: #{forward.4} parent=0 // loop_exit
    _

</llo_original>
